<compile_context>
chip_gen: v5e
topology: v5e:2x2
jax: 0.10.0
libtpu: 0.0.40
codegen_flags: <defaults>
</compile_context>

<pallas_src>
import functools

import jax
import jax.numpy as jnp
from jax import lax
from jax.experimental import pallas as pl
from jax.experimental.pallas import tpu as pltpu

LANE = 128


def _round_up(x, m):
    return (x + m - 1) // m * m


def _pick_tile_h(H, W, P, target_rows=512):
    """Smallest divisor tH of H with tH*W >= target_rows (fills the MXU M dim,
    amortizes the ~0.35us/step grid overhead); tH >= P keeps the zero-pad rows
    confined to the first/last row tile. Falls back to the full H."""
    for t in range(max(1, P), H):
        if H % t == 0 and t * W >= target_rows:
            return t
    return H


def _fold_bn(params):
    """Fold the BN scales into the conv weights (f32); keep only the biases."""
    w1 = params["w1"] * params["s1"]        # (C_in, D) * (1, D)
    w2 = params["w2"] * params["s2"][0]     # (K, K, D, D) * (D,)
    w3 = params["w3"] * params["s3"]        # (D, C_out) * (1, C_out)
    return w1, params["b1"], w2, params["b2"], w3, params["b3"]


def _mobile_block_kernel(K, P, tH, Hp, res_flag,
                         x_hbm, w1_ref, b1_ref, w2_ref, b2_ref, w3_ref, b3_ref,
                         o_ref, xbuf, t1p, dma_sem):
    """One (batch, row-tile) per grid step; all three convs run on the MXU."""
    tHe = tH + 2 * P
    _, W, Cp_in = xbuf.shape
    Dp = w1_ref.shape[1]
    Cp_out = w3_ref.shape[1]

    n = pl.program_id(0)
    h = pl.program_id(1)

    # Fetch only this step's halo'd row tile of the H-padded image (contiguous
    # slice of the (N*Hp, W, Cp_in) HBM array).
    # TODO(synk): overlap this copy with compute via a 2-slot cross-step
    # prefetch once a megacore-safe "first iteration" guard is available.
    row0 = n * Hp + h * tH
    cp = pltpu.make_async_copy(x_hbm.at[pl.ds(row0, tHe)], xbuf, dma_sem)
    cp.start()
    cp.wait()

    # ---- conv1 (1x1, BN scale folded into w1) + bias + ReLU ----------------
    xf = xbuf[...].reshape(tHe * W, Cp_in).astype(jnp.bfloat16)
    t1 = jnp.dot(xf, w1_ref[...], preferred_element_type=jnp.float32)
    t1 = jnp.maximum(t1 + b1_ref[...], 0.0)

    # Stage t1 into a W-padded scratch so conv2's kw shift is a plain static
    # slice (no im2col slab / whole-tile concat).
    t1p[:, P:P + W, :] = t1.reshape(tHe, W, Dp).astype(jnp.bfloat16)
    if P > 0:
        zcol = jnp.zeros((tHe, P, Dp), jnp.bfloat16)
        t1p[:, 0:P, :] = zcol
        t1p[:, P + W:, :] = zcol

        # conv1 of a zero-padded image border row is relu(b1), not the zero
        # padding conv2 expects; only the first/last row tiles touch them.
        zrow = jnp.zeros((P, W, Dp), jnp.bfloat16)

        @pl.when(h == 0)
        def _():
            t1p[0:P, P:P + W, :] = zrow

        @pl.when(h == pl.num_programs(1) - 1)
        def _():
            t1p[tHe - P:, P:P + W, :] = zrow

    # ---- conv2 (KxK, stride 1, BN scale folded into w2) + bias + ReLU ------
    # K*K matmuls with contraction Dp; kh/kw shifts are static slices of t1p.
    acc = None
    for kh in range(K):
        for kw in range(K):
            lhs = t1p[kh:kh + tH, kw:kw + W, :].reshape(tH * W, Dp)
            term = jnp.dot(lhs, w2_ref[kh * K + kw],
                           preferred_element_type=jnp.float32)
            acc = term if acc is None else acc + term
    t2 = jnp.maximum(acc + b2_ref[...], 0.0).astype(jnp.bfloat16)

    # ---- conv3 (1x1, BN scale folded into w3) + bias (+ residual) + ReLU ---
    y = jnp.dot(t2, w3_ref[...], preferred_element_type=jnp.float32)
    y = y + b3_ref[...]
    if res_flag:
        # Residual added in f32; only the inner tH rows are re-read/cast.
        y = y + xbuf[P:P + tH].reshape(tH * W, Cp_in).astype(jnp.float32)
    o_ref[...] = jnp.maximum(y, 0.0).reshape(tH, W, Cp_out).astype(o_ref.dtype)


def mobile_block_forward(x_nchw, params, kernel_size, stride, tile_h=None):
    # TODO(synk): stride > 1 not implemented in this kernel (demo uses stride=1).
    assert stride == 1, "kernel currently supports stride == 1 only"
    K = kernel_size
    P = {1: 0, 3: 1, 5: 2, 7: 3}[K]

    N, C_in, H, W = x_nchw.shape
    D = params["w1"].shape[1]
    C_out = params["w3"].shape[1]
    res_flag = (C_in == C_out) and (stride == 1)

    # Lane-pad channel dims so every matmul operand / the output store is
    # lane-dense (unmasked vst).
    Cp_in = _round_up(C_in, LANE)
    Dp = _round_up(D, LANE)
    Cp_out = _round_up(C_out, LANE)

    tH = tile_h if tile_h is not None else _pick_tile_h(H, W, P)
    assert H % tH == 0 and (tH >= P or H == tH), "invalid tile_h"
    nH = H // tH
    tHe = tH + 2 * P
    Hp = H + 2 * P

    # NCHW -> NHWC, pad channels to the lane width and H by the conv halo.
    # TODO(synk): if the surrounding model keeps NHWC (and bf16) end-to-end,
    # drop these layout passes and feed the kernel directly.
    x = jnp.transpose(x_nchw, (0, 2, 3, 1))
    x = jnp.pad(x, ((0, 0), (P, P), (0, 0), (0, Cp_in - C_in)))
    x_rows = x.reshape(N * Hp, W, Cp_in)     # flat rows for the halo'd DMA

    # Fold BN scales into the weights once outside the kernel; lane-pad; cast
    # weights to bf16 (MXU input dtype). Padded bias lanes stay exactly zero.
    f32 = jnp.float32
    w1f, b1f, w2f, b2f, w3f, b3f = _fold_bn(params)
    w1 = jnp.pad(w1f, ((0, Cp_in - C_in), (0, Dp - D))).astype(jnp.bfloat16)
    w2 = jnp.pad(w2f, ((0, 0), (0, 0), (0, Dp - D), (0, Dp - D)))
    w2 = w2.reshape(K * K, Dp, Dp).astype(jnp.bfloat16)
    w3 = jnp.pad(w3f, ((0, Dp - D), (0, Cp_out - C_out))).astype(jnp.bfloat16)
    b1 = jnp.pad(b1f.astype(f32), ((0, 0), (0, Dp - D)))
    b2 = jnp.pad(b2f.astype(f32), ((0, 0), (0, Dp - D)))
    b3 = jnp.pad(b3f.astype(f32), ((0, 0), (0, Cp_out - C_out)))

    kern = functools.partial(_mobile_block_kernel, K, P, tH, Hp, res_flag)

    # VMEM budget derived from actual buffers (double-buffered weights, x row
    # tile, W-padded t1 scratch, double-buffered output tile, f32 accumulators)
    # with ~1.5x slack, clamped to [32, 64] MiB so it is also valid on v7x.
    itemsize = x.dtype.itemsize
    weight_bytes = 2 * (2 * (Cp_in * Dp + K * K * Dp * Dp + Dp * Cp_out)
                        + 4 * (2 * Dp + Cp_out))
    step_bytes = (tHe * W * Cp_in * itemsize
                  + tHe * (W + 2 * P) * Dp * 2
                  + 2 * tH * W * Cp_out * itemsize
                  + 3 * tH * W * Dp * 4
                  + tHe * W * max(Cp_in, Dp) * 4)
    vmem_limit = int(min(max(1.5 * (weight_bytes + step_bytes), 32 * 2 ** 20),
                         64 * 2 ** 20))

    # Advisory cost estimate on the true (unpadded) channel counts.
    flops = 2 * N * H * W * (C_in * D + K * K * D * D + D * C_out)
    bytes_accessed = (x_rows.size * itemsize + N * H * W * C_out * itemsize
                      + 2 * (w1.size + w2.size + w3.size)
                      + 4 * (b1.size + b2.size + b3.size))

    # Steer the megacore split onto the batch axis when N >= 2 so both cores
    # never duplicate the same per-image work.
    dim_sem = ("parallel", "arbitrary") if N >= 2 else ("arbitrary", "parallel")

    # TODO(synk): on v7x, single-buffer the grid-invariant weight/bias blocks
    # (pipeline_mode=pl.Buffered(1)) to halve their VMEM footprint.
    out = pl.pallas_call(
        kern,
        out_shape=jax.ShapeDtypeStruct((N, H, W, Cp_out), x.dtype),
        grid=(N, nH),
        in_specs=[
            pl.BlockSpec(memory_space=pl.ANY),                      # x rows, HBM
            pl.BlockSpec((Cp_in, Dp), lambda n, h: (0, 0)),         # w1
            pl.BlockSpec((1, Dp), lambda n, h: (0, 0)),             # b1
            pl.BlockSpec((K * K, Dp, Dp), lambda n, h: (0, 0, 0)),  # w2
            pl.BlockSpec((1, Dp), lambda n, h: (0, 0)),             # b2
            pl.BlockSpec((Dp, Cp_out), lambda n, h: (0, 0)),        # w3
            pl.BlockSpec((1, Cp_out), lambda n, h: (0, 0)),         # b3
        ],
        out_specs=pl.BlockSpec((None, tH, W, Cp_out), lambda n, h: (n, h, 0, 0)),
        scratch_shapes=[
            pltpu.VMEM((tHe, W, Cp_in), x.dtype),                   # halo'd x rows
            pltpu.VMEM((tHe, W + 2 * P, Dp), jnp.bfloat16),         # W-padded t1
            pltpu.SemaphoreType.DMA,                                # x DMA done
        ],
        compiler_params=pltpu.CompilerParams(
            dimension_semantics=dim_sem,
            vmem_limit_bytes=vmem_limit),
        cost_estimate=pl.CostEstimate(flops=flops, transcendentals=0,
                                      bytes_accessed=bytes_accessed),
    )(x_rows, w1, b1, w2, b2, w3, b3)

    out = out[..., :C_out]                        # drop lane padding
    return jnp.transpose(out, (0, 3, 1, 2))       # NHWC -> NCHW


def init_params(key, C_in, C_out, kernel_size, expansion):
    """Deterministic synthetic weights. Convs are HWIO; BN folded to scale/bias."""
    inner = int(C_in * expansion)
    if inner == 0:
        inner = 1
    ks = jax.random.split(key, 15)

    def conv_w(k, shape, fan_in):
        return jax.random.normal(k, shape, jnp.float32) / jnp.sqrt(float(fan_in))

    w1 = conv_w(ks[0], (C_in, inner), C_in)
    w2 = conv_w(ks[1], (kernel_size, kernel_size, inner, inner),
                kernel_size * kernel_size * inner)
    w3 = conv_w(ks[2], (inner, C_out), inner)

    def bn_fold(kg, kb, km, kv, C, eps=1e-5):
        gamma = 1.0 + 0.1 * jax.random.normal(kg, (1, C), jnp.float32)
        beta = 0.1 * jax.random.normal(kb, (1, C), jnp.float32)
        mean = 0.1 * jax.random.normal(km, (1, C), jnp.float32)
        var = jnp.abs(1.0 + 0.1 * jax.random.normal(kv, (1, C), jnp.float32))
        scale = gamma * lax.rsqrt(var + eps)
        bias = beta - mean * scale
        return scale, bias

    s1, b1 = bn_fold(ks[3], ks[4], ks[5], ks[6], inner)
    s2, b2 = bn_fold(ks[7], ks[8], ks[9], ks[10], inner)
    s3, b3 = bn_fold(ks[11], ks[12], ks[13], ks[14], C_out)

    return dict(w1=w1, s1=s1, b1=b1, w2=w2, s2=s2, b2=b2, w3=w3, s3=s3, b3=b3)


def ref_forward(x_nchw, params, kernel_size, stride,
                matmul_dtype=jnp.float32, fold_scales=False):
    """Pure-JAX reference (folded-BN eval semantics). With fold_scales=True and
    matmul_dtype=bf16 it folds the BN scales into the weights before the bf16
    cast, matching the kernel's exact rounding (f32 accumulation either way)."""
    pad = {1: 0, 3: 1, 5: 2, 7: 3}[kernel_size]
    N, C_in, H, W = x_nchw.shape
    C_out = params["w3"].shape[1]
    res_flag = (C_in == C_out) and (stride == 1)
    dn = ("NHWC", "HWIO", "NHWC")
    md = matmul_dtype

    if fold_scales:
        w1, b1, w2, b2, w3, b3 = _fold_bn(params)
        s1 = s2 = s3 = 1.0
    else:
        w1, w2, w3 = params["w1"], params["w2"], params["w3"]
        b1, b2, b3 = params["b1"], params["b2"], params["b3"]
        s1, s2, s3 = params["s1"], params["s2"], params["s3"]

    def conv(u, w, strides, padding):
        return lax.conv_general_dilated(
            u.astype(md), w.astype(md), strides, padding,
            dimension_numbers=dn, preferred_element_type=jnp.float32)

    x = jnp.transpose(x_nchw, (0, 2, 3, 1))
    t = conv(x, w1[None, None], (1, 1), "VALID")
    t = jnp.maximum(t * s1 + b1, 0.0)
    t = conv(t, w2, (stride, stride), [(pad, pad), (pad, pad)])
    t = jnp.maximum(t * s2 + b2, 0.0)
    t = conv(t, w3[None, None], (1, 1), "VALID")
    t = t * s3 + b3
    if res_flag:
        t = t + x
    t = jnp.maximum(t, 0.0)
    return jnp.transpose(t, (0, 3, 1, 2))


if __name__ == "__main__":
    C_in, C_out, kernel_size, stride, expansion = 4, 4, 3, 1, 2.0
    N, H, W = 2, 16, 16

    key = jax.random.PRNGKey(0)
    kx, kp = jax.random.split(key)
    x = jax.random.normal(kx, (N, C_in, H, W), jnp.float32)
    params = init_params(kp, C_in, C_out, kernel_size, expansion)

    out = mobile_block_forward(x, params, kernel_size, stride)
    out = jax.block_until_ready(out)
    assert out.shape == (N, C_out, H, W)

    # Tight check against a reference using the kernel's exact precision recipe
    # (BN scales folded before the bf16 cast, bf16 MXU inputs, f32 accumulation).
    ref = ref_forward(x, params, kernel_size, stride,
                      matmul_dtype=jnp.bfloat16, fold_scales=True)
    err = float(jnp.max(jnp.abs(out - ref)))
    assert jnp.allclose(out, ref, atol=2e-3, rtol=2e-3), f"max abs err {err}"

    print("KERNEL_OK")
</pallas_src>

<mosaic_0001>
module attributes {stable_mosaic.version = 11 : i64} {
  func.func @_mobile_block_kernel(%arg0: i32, %arg1: i32, %arg2: memref<36x16x128xf32, #tpu.memory_space<any>>, %arg3: memref<128x128xbf16, #tpu.memory_space<vmem>>, %arg4: memref<1x128xf32, #tpu.memory_space<vmem>>, %arg5: memref<9x128x128xbf16, #tpu.memory_space<vmem>>, %arg6: memref<1x128xf32, #tpu.memory_space<vmem>>, %arg7: memref<128x128xbf16, #tpu.memory_space<vmem>>, %arg8: memref<1x128xf32, #tpu.memory_space<vmem>>, %arg9: memref<1x16x16x128xf32, #tpu.memory_space<vmem>>, %arg10: memref<18x16x128xf32, #tpu.memory_space<vmem>>, %arg11: memref<18x18x128xbf16, #tpu.memory_space<vmem>>, %arg12: memref<!tpu.dma_semaphore, #tpu.memory_space<semaphore_mem>>) attributes {dimension_semantics = [#tpu.dimension_semantics<parallel>, #tpu.dimension_semantics<arbitrary>], iteration_bounds = array<i64: 2, 1>, scalar_prefetch = 0 : i64, scratch_operands = 3 : i64, tpu.core_type = #tpu.core_type<tc>, window_params = [{}, {pipeline_mode = #tpu.pipeline_mode<synchronous>, transform_indices = @transform_1, window_bounds = array<i64: 128, 128>}, {pipeline_mode = #tpu.pipeline_mode<synchronous>, transform_indices = @transform_2, window_bounds = array<i64: 1, 128>}, {pipeline_mode = #tpu.pipeline_mode<synchronous>, transform_indices = @transform_3, window_bounds = array<i64: 9, 128, 128>}, {pipeline_mode = #tpu.pipeline_mode<synchronous>, transform_indices = @transform_4, window_bounds = array<i64: 1, 128>}, {pipeline_mode = #tpu.pipeline_mode<synchronous>, transform_indices = @transform_5, window_bounds = array<i64: 128, 128>}, {pipeline_mode = #tpu.pipeline_mode<synchronous>, transform_indices = @transform_6, window_bounds = array<i64: 1, 128>}, {transform_indices = @transform_7, window_bounds = array<i64: 1, 16, 16, 128>}]} {
    %c18_i32 = arith.constant 18 : i32
    %0 = arith.muli %arg0, %c18_i32 : i32
    %c16_i32 = arith.constant 16 : i32
    %1 = arith.muli %arg1, %c16_i32 : i32
    %2 = arith.addi %0, %1 : i32
    %c0_i32 = arith.constant 0 : i32
    %c0_i32_0 = arith.constant 0 : i32
    %3 = tpu.memref_slice %arg2[%2, %c0_i32, %c0_i32_0] : memref<36x16x128xf32, #tpu.memory_space<any>> -> memref<18x16x128xf32, #tpu.memory_space<any>>
    tpu.enqueue_dma source(%3 : memref<18x16x128xf32, #tpu.memory_space<any>>) target(%arg10 : memref<18x16x128xf32, #tpu.memory_space<vmem>>) target_semaphore(%arg12 : memref<!tpu.dma_semaphore, #tpu.memory_space<semaphore_mem>>)
    %c0_i32_1 = arith.constant 0 : i32
    %c0_i32_2 = arith.constant 0 : i32
    %4 = tpu.memref_slice %arg2[%2, %c0_i32_1, %c0_i32_2] : memref<36x16x128xf32, #tpu.memory_space<any>> -> memref<18x16x128xf32, #tpu.memory_space<any>>
    tpu.wait_dma2 semaphore(%arg12 : memref<!tpu.dma_semaphore, #tpu.memory_space<semaphore_mem>>) src(%4 : memref<18x16x128xf32, #tpu.memory_space<any>>) dst(%arg10 : memref<18x16x128xf32, #tpu.memory_space<vmem>>)
    %c0 = arith.constant 0 : index
    %c0_3 = arith.constant 0 : index
    %c0_4 = arith.constant 0 : index
    %5 = vector.load %arg10[%c0, %c0_3, %c0_4] : memref<18x16x128xf32, #tpu.memory_space<vmem>>, vector<18x16x128xf32>
    %6 = vector.shape_cast %5 : vector<18x16x128xf32> to vector<288x128xf32>
    %7 = arith.truncf %6 : vector<288x128xf32> to vector<288x128xbf16>
    %c0_5 = arith.constant 0 : index
    %c0_6 = arith.constant 0 : index
    %8 = vector.load %arg3[%c0_5, %c0_6] : memref<128x128xbf16, #tpu.memory_space<vmem>>, vector<128x128xbf16>
    %cst = arith.constant dense<0.000000e+00> : vector<288x128xf32>
    %9 = tpu.matmul %7, %8, %cst {dimension_numbers = #tpu.dot_dimension_numbers<[1], [0], [0], [1], [0, 0, 1, 1], [], []>} : vector<288x128xbf16>, vector<128x128xbf16>, vector<288x128xf32> -> vector<288x128xf32>
    %c0_7 = arith.constant 0 : index
    %c0_8 = arith.constant 0 : index
    %10 = vector.load %arg4[%c0_7, %c0_8] : memref<1x128xf32, #tpu.memory_space<vmem>>, vector<1x128xf32>
    %11 = vector.broadcast %10 : vector<1x128xf32> to vector<288x128xf32>
    %12 = arith.addf %9, %11 : vector<288x128xf32>
    %cst_9 = arith.constant 0.000000e+00 : f32
    %13 = vector.broadcast %cst_9 : f32 to vector<288x128xf32>
    %14 = arith.maximumf %12, %13 : vector<288x128xf32>
    %15 = vector.shape_cast %14 : vector<288x128xf32> to vector<18x16x128xf32>
    %16 = arith.truncf %15 : vector<18x16x128xf32> to vector<18x16x128xbf16>
    %c0_10 = arith.constant 0 : index
    %c1 = arith.constant 1 : index
    %c0_11 = arith.constant 0 : index
    %17 = vector.load %arg11[%c0_10, %c1, %c0_11] : memref<18x18x128xbf16, #tpu.memory_space<vmem>>, vector<18x16x128xbf16>
    tpu.vector_store %arg11[%c0_10, %c1, %c0_11], %16 {strides = array<i32>} : memref<18x18x128xbf16, #tpu.memory_space<vmem>>, vector<18x16x128xbf16>,
    %cst_12 = arith.constant 0.000000e+00 : bf16
    %18 = vector.broadcast %cst_12 : bf16 to vector<18x1x128xbf16>
    %c0_13 = arith.constant 0 : index
    %c0_14 = arith.constant 0 : index
    %c0_15 = arith.constant 0 : index
    %19 = vector.load %arg11[%c0_13, %c0_14, %c0_15] : memref<18x18x128xbf16, #tpu.memory_space<vmem>>, vector<18x1x128xbf16>
    tpu.vector_store %arg11[%c0_13, %c0_14, %c0_15], %18 {strides = array<i32>} : memref<18x18x128xbf16, #tpu.memory_space<vmem>>, vector<18x1x128xbf16>,
    %c0_16 = arith.constant 0 : index
    %c17 = arith.constant 17 : index
    %c0_17 = arith.constant 0 : index
    %20 = vector.load %arg11[%c0_16, %c17, %c0_17] : memref<18x18x128xbf16, #tpu.memory_space<vmem>>, vector<18x1x128xbf16>
    tpu.vector_store %arg11[%c0_16, %c17, %c0_17], %18 {strides = array<i32>} : memref<18x18x128xbf16, #tpu.memory_space<vmem>>, vector<18x1x128xbf16>,
    %cst_18 = arith.constant 0.000000e+00 : bf16
    %21 = vector.broadcast %cst_18 : bf16 to vector<1x16x128xbf16>
    %c0_i32_19 = arith.constant 0 : i32
    %22 = arith.cmpi eq, %arg1, %c0_i32_19 : i32
    %23 = arith.extui %22 : i1 to i32
    %c0_i32_20 = arith.constant 0 : i32
    %24 = arith.cmpi ne, %23, %c0_i32_20 : i32
    scf.if %24 {
      %c0_95 = arith.constant 0 : index
      %c1_96 = arith.constant 1 : index
      %c0_97 = arith.constant 0 : index
      %101 = vector.load %arg11[%c0_95, %c1_96, %c0_97] : memref<18x18x128xbf16, #tpu.memory_space<vmem>>, vector<1x16x128xbf16>
      tpu.vector_store %arg11[%c0_95, %c1_96, %c0_97], %21 {strides = array<i32>} : memref<18x18x128xbf16, #tpu.memory_space<vmem>>, vector<1x16x128xbf16>,
    } else {
    }
    %c0_i32_21 = arith.constant 0 : i32
    %25 = arith.cmpi eq, %arg1, %c0_i32_21 : i32
    %26 = arith.extui %25 : i1 to i32
    %c0_i32_22 = arith.constant 0 : i32
    %27 = arith.cmpi ne, %26, %c0_i32_22 : i32
    scf.if %27 {
      %c17_95 = arith.constant 17 : index
      %c1_96 = arith.constant 1 : index
      %c0_97 = arith.constant 0 : index
      %101 = vector.load %arg11[%c17_95, %c1_96, %c0_97] : memref<18x18x128xbf16, #tpu.memory_space<vmem>>, vector<1x16x128xbf16>
      tpu.vector_store %arg11[%c17_95, %c1_96, %c0_97], %21 {strides = array<i32>} : memref<18x18x128xbf16, #tpu.memory_space<vmem>>, vector<1x16x128xbf16>,
    } else {
    }
    %c0_23 = arith.constant 0 : index
    %c0_24 = arith.constant 0 : index
    %c0_25 = arith.constant 0 : index
    %28 = vector.load %arg11[%c0_23, %c0_24, %c0_25] : memref<18x18x128xbf16, #tpu.memory_space<vmem>>, vector<16x16x128xbf16>
    %29 = vector.shape_cast %28 : vector<16x16x128xbf16> to vector<256x128xbf16>
    %c0_26 = arith.constant 0 : index
    %c0_27 = arith.constant 0 : index
    %c0_28 = arith.constant 0 : index
    %30 = vector.load %arg5[%c0_26, %c0_27, %c0_28] : memref<9x128x128xbf16, #tpu.memory_space<vmem>>, vector<1x128x128xbf16>
    %31 = vector.shape_cast %30 : vector<1x128x128xbf16> to vector<128x128xbf16>
    %cst_29 = arith.constant dense<0.000000e+00> : vector<256x128xf32>
    %32 = tpu.matmul %29, %31, %cst_29 {dimension_numbers = #tpu.dot_dimension_numbers<[1], [0], [0], [1], [0, 0, 1, 1], [], []>} : vector<256x128xbf16>, vector<128x128xbf16>, vector<256x128xf32> -> vector<256x128xf32>
    %c0_30 = arith.constant 0 : index
    %c1_31 = arith.constant 1 : index
    %c0_32 = arith.constant 0 : index
    %33 = vector.load %arg11[%c0_30, %c1_31, %c0_32] : memref<18x18x128xbf16, #tpu.memory_space<vmem>>, vector<16x16x128xbf16>
    %34 = vector.shape_cast %33 : vector<16x16x128xbf16> to vector<256x128xbf16>
    %c1_33 = arith.constant 1 : index
    %c0_34 = arith.constant 0 : index
    %c0_35 = arith.constant 0 : index
    %35 = vector.load %arg5[%c1_33, %c0_34, %c0_35] : memref<9x128x128xbf16, #tpu.memory_space<vmem>>, vector<1x128x128xbf16>
    %36 = vector.shape_cast %35 : vector<1x128x128xbf16> to vector<128x128xbf16>
    %cst_36 = arith.constant dense<0.000000e+00> : vector<256x128xf32>
    %37 = tpu.matmul %34, %36, %cst_36 {dimension_numbers = #tpu.dot_dimension_numbers<[1], [0], [0], [1], [0, 0, 1, 1], [], []>} : vector<256x128xbf16>, vector<128x128xbf16>, vector<256x128xf32> -> vector<256x128xf32>
    %38 = arith.addf %32, %37 : vector<256x128xf32>
    %c0_37 = arith.constant 0 : index
    %c2 = arith.constant 2 : index
    %c0_38 = arith.constant 0 : index
    %39 = vector.load %arg11[%c0_37, %c2, %c0_38] : memref<18x18x128xbf16, #tpu.memory_space<vmem>>, vector<16x16x128xbf16>
    %40 = vector.shape_cast %39 : vector<16x16x128xbf16> to vector<256x128xbf16>
    %c2_39 = arith.constant 2 : index
    %c0_40 = arith.constant 0 : index
    %c0_41 = arith.constant 0 : index
    %41 = vector.load %arg5[%c2_39, %c0_40, %c0_41] : memref<9x128x128xbf16, #tpu.memory_space<vmem>>, vector<1x128x128xbf16>
    %42 = vector.shape_cast %41 : vector<1x128x128xbf16> to vector<128x128xbf16>
    %cst_42 = arith.constant dense<0.000000e+00> : vector<256x128xf32>
    %43 = tpu.matmul %40, %42, %cst_42 {dimension_numbers = #tpu.dot_dimension_numbers<[1], [0], [0], [1], [0, 0, 1, 1], [], []>} : vector<256x128xbf16>, vector<128x128xbf16>, vector<256x128xf32> -> vector<256x128xf32>
    %44 = arith.addf %38, %43 : vector<256x128xf32>
    %c1_43 = arith.constant 1 : index
    %c0_44 = arith.constant 0 : index
    %c0_45 = arith.constant 0 : index
    %45 = vector.load %arg11[%c1_43, %c0_44, %c0_45] : memref<18x18x128xbf16, #tpu.memory_space<vmem>>, vector<16x16x128xbf16>
    %46 = vector.shape_cast %45 : vector<16x16x128xbf16> to vector<256x128xbf16>
    %c3 = arith.constant 3 : index
    %c0_46 = arith.constant 0 : index
    %c0_47 = arith.constant 0 : index
    %47 = vector.load %arg5[%c3, %c0_46, %c0_47] : memref<9x128x128xbf16, #tpu.memory_space<vmem>>, vector<1x128x128xbf16>
    %48 = vector.shape_cast %47 : vector<1x128x128xbf16> to vector<128x128xbf16>
    %cst_48 = arith.constant dense<0.000000e+00> : vector<256x128xf32>
    %49 = tpu.matmul %46, %48, %cst_48 {dimension_numbers = #tpu.dot_dimension_numbers<[1], [0], [0], [1], [0, 0, 1, 1], [], []>} : vector<256x128xbf16>, vector<128x128xbf16>, vector<256x128xf32> -> vector<256x128xf32>
    %50 = arith.addf %44, %49 : vector<256x128xf32>
    %c1_49 = arith.constant 1 : index
    %c1_50 = arith.constant 1 : index
    %c0_51 = arith.constant 0 : index
    %51 = vector.load %arg11[%c1_49, %c1_50, %c0_51] : memref<18x18x128xbf16, #tpu.memory_space<vmem>>, vector<16x16x128xbf16>
    %52 = vector.shape_cast %51 : vector<16x16x128xbf16> to vector<256x128xbf16>
    %c4 = arith.constant 4 : index
    %c0_52 = arith.constant 0 : index
    %c0_53 = arith.constant 0 : index
    %53 = vector.load %arg5[%c4, %c0_52, %c0_53] : memref<9x128x128xbf16, #tpu.memory_space<vmem>>, vector<1x128x128xbf16>
    %54 = vector.shape_cast %53 : vector<1x128x128xbf16> to vector<128x128xbf16>
    %cst_54 = arith.constant dense<0.000000e+00> : vector<256x128xf32>
    %55 = tpu.matmul %52, %54, %cst_54 {dimension_numbers = #tpu.dot_dimension_numbers<[1], [0], [0], [1], [0, 0, 1, 1], [], []>} : vector<256x128xbf16>, vector<128x128xbf16>, vector<256x128xf32> -> vector<256x128xf32>
    %56 = arith.addf %50, %55 : vector<256x128xf32>
    %c1_55 = arith.constant 1 : index
    %c2_56 = arith.constant 2 : index
    %c0_57 = arith.constant 0 : index
    %57 = vector.load %arg11[%c1_55, %c2_56, %c0_57] : memref<18x18x128xbf16, #tpu.memory_space<vmem>>, vector<16x16x128xbf16>
    %58 = vector.shape_cast %57 : vector<16x16x128xbf16> to vector<256x128xbf16>
    %c5 = arith.constant 5 : index
    %c0_58 = arith.constant 0 : index
    %c0_59 = arith.constant 0 : index
    %59 = vector.load %arg5[%c5, %c0_58, %c0_59] : memref<9x128x128xbf16, #tpu.memory_space<vmem>>, vector<1x128x128xbf16>
    %60 = vector.shape_cast %59 : vector<1x128x128xbf16> to vector<128x128xbf16>
    %cst_60 = arith.constant dense<0.000000e+00> : vector<256x128xf32>
    %61 = tpu.matmul %58, %60, %cst_60 {dimension_numbers = #tpu.dot_dimension_numbers<[1], [0], [0], [1], [0, 0, 1, 1], [], []>} : vector<256x128xbf16>, vector<128x128xbf16>, vector<256x128xf32> -> vector<256x128xf32>
    %62 = arith.addf %56, %61 : vector<256x128xf32>
    %c2_61 = arith.constant 2 : index
    %c0_62 = arith.constant 0 : index
    %c0_63 = arith.constant 0 : index
    %63 = vector.load %arg11[%c2_61, %c0_62, %c0_63] : memref<18x18x128xbf16, #tpu.memory_space<vmem>>, vector<16x16x128xbf16>
    %64 = vector.shape_cast %63 : vector<16x16x128xbf16> to vector<256x128xbf16>
    %c6 = arith.constant 6 : index
    %c0_64 = arith.constant 0 : index
    %c0_65 = arith.constant 0 : index
    %65 = vector.load %arg5[%c6, %c0_64, %c0_65] : memref<9x128x128xbf16, #tpu.memory_space<vmem>>, vector<1x128x128xbf16>
    %66 = vector.shape_cast %65 : vector<1x128x128xbf16> to vector<128x128xbf16>
    %cst_66 = arith.constant dense<0.000000e+00> : vector<256x128xf32>
    %67 = tpu.matmul %64, %66, %cst_66 {dimension_numbers = #tpu.dot_dimension_numbers<[1], [0], [0], [1], [0, 0, 1, 1], [], []>} : vector<256x128xbf16>, vector<128x128xbf16>, vector<256x128xf32> -> vector<256x128xf32>
    %68 = arith.addf %62, %67 : vector<256x128xf32>
    %c2_67 = arith.constant 2 : index
    %c1_68 = arith.constant 1 : index
    %c0_69 = arith.constant 0 : index
    %69 = vector.load %arg11[%c2_67, %c1_68, %c0_69] : memref<18x18x128xbf16, #tpu.memory_space<vmem>>, vector<16x16x128xbf16>
    %70 = vector.shape_cast %69 : vector<16x16x128xbf16> to vector<256x128xbf16>
    %c7 = arith.constant 7 : index
    %c0_70 = arith.constant 0 : index
    %c0_71 = arith.constant 0 : index
    %71 = vector.load %arg5[%c7, %c0_70, %c0_71] : memref<9x128x128xbf16, #tpu.memory_space<vmem>>, vector<1x128x128xbf16>
    %72 = vector.shape_cast %71 : vector<1x128x128xbf16> to vector<128x128xbf16>
    %cst_72 = arith.constant dense<0.000000e+00> : vector<256x128xf32>
    %73 = tpu.matmul %70, %72, %cst_72 {dimension_numbers = #tpu.dot_dimension_numbers<[1], [0], [0], [1], [0, 0, 1, 1], [], []>} : vector<256x128xbf16>, vector<128x128xbf16>, vector<256x128xf32> -> vector<256x128xf32>
    %74 = arith.addf %68, %73 : vector<256x128xf32>
    %c2_73 = arith.constant 2 : index
    %c2_74 = arith.constant 2 : index
    %c0_75 = arith.constant 0 : index
    %75 = vector.load %arg11[%c2_73, %c2_74, %c0_75] : memref<18x18x128xbf16, #tpu.memory_space<vmem>>, vector<16x16x128xbf16>
    %76 = vector.shape_cast %75 : vector<16x16x128xbf16> to vector<256x128xbf16>
    %c8 = arith.constant 8 : index
    %c0_76 = arith.constant 0 : index
    %c0_77 = arith.constant 0 : index
    %77 = vector.load %arg5[%c8, %c0_76, %c0_77] : memref<9x128x128xbf16, #tpu.memory_space<vmem>>, vector<1x128x128xbf16>
    %78 = vector.shape_cast %77 : vector<1x128x128xbf16> to vector<128x128xbf16>
    %cst_78 = arith.constant dense<0.000000e+00> : vector<256x128xf32>
    %79 = tpu.matmul %76, %78, %cst_78 {dimension_numbers = #tpu.dot_dimension_numbers<[1], [0], [0], [1], [0, 0, 1, 1], [], []>} : vector<256x128xbf16>, vector<128x128xbf16>, vector<256x128xf32> -> vector<256x128xf32>
    %80 = arith.addf %74, %79 : vector<256x128xf32>
    %c0_79 = arith.constant 0 : index
    %c0_80 = arith.constant 0 : index
    %81 = vector.load %arg6[%c0_79, %c0_80] : memref<1x128xf32, #tpu.memory_space<vmem>>, vector<1x128xf32>
    %82 = vector.broadcast %81 : vector<1x128xf32> to vector<256x128xf32>
    %83 = arith.addf %80, %82 : vector<256x128xf32>
    %cst_81 = arith.constant 0.000000e+00 : f32
    %84 = vector.broadcast %cst_81 : f32 to vector<256x128xf32>
    %85 = arith.maximumf %83, %84 : vector<256x128xf32>
    %86 = arith.truncf %85 : vector<256x128xf32> to vector<256x128xbf16>
    %c0_82 = arith.constant 0 : index
    %c0_83 = arith.constant 0 : index
    %87 = vector.load %arg7[%c0_82, %c0_83] : memref<128x128xbf16, #tpu.memory_space<vmem>>, vector<128x128xbf16>
    %cst_84 = arith.constant dense<0.000000e+00> : vector<256x128xf32>
    %88 = tpu.matmul %86, %87, %cst_84 {dimension_numbers = #tpu.dot_dimension_numbers<[1], [0], [0], [1], [0, 0, 1, 1], [], []>} : vector<256x128xbf16>, vector<128x128xbf16>, vector<256x128xf32> -> vector<256x128xf32>
    %c0_85 = arith.constant 0 : index
    %c0_86 = arith.constant 0 : index
    %89 = vector.load %arg8[%c0_85, %c0_86] : memref<1x128xf32, #tpu.memory_space<vmem>>, vector<1x128xf32>
    %90 = vector.broadcast %89 : vector<1x128xf32> to vector<256x128xf32>
    %91 = arith.addf %88, %90 : vector<256x128xf32>
    %c1_87 = arith.constant 1 : index
    %c0_88 = arith.constant 0 : index
    %c0_89 = arith.constant 0 : index
    %92 = vector.load %arg10[%c1_87, %c0_88, %c0_89] : memref<18x16x128xf32, #tpu.memory_space<vmem>>, vector<16x16x128xf32>
    %93 = vector.shape_cast %92 : vector<16x16x128xf32> to vector<256x128xf32>
    %94 = arith.addf %91, %93 : vector<256x128xf32>
    %cst_90 = arith.constant 0.000000e+00 : f32
    %95 = vector.broadcast %cst_90 : f32 to vector<256x128xf32>
    %96 = arith.maximumf %94, %95 : vector<256x128xf32>
    %97 = vector.shape_cast %96 : vector<256x128xf32> to vector<16x16x128xf32>
    %c0_91 = arith.constant 0 : index
    %c0_92 = arith.constant 0 : index
    %c0_93 = arith.constant 0 : index
    %c0_94 = arith.constant 0 : index
    %98 = vector.load %arg9[%c0_91, %c0_92, %c0_93, %c0_94] : memref<1x16x16x128xf32, #tpu.memory_space<vmem>>, vector<1x16x16x128xf32>
    %99 = vector.shape_cast %98 : vector<1x16x16x128xf32> to vector<16x16x128xf32>
    %100 = vector.shape_cast %97 : vector<16x16x128xf32> to vector<1x16x16x128xf32>
    tpu.vector_store %arg9[%c0_91, %c0_92, %c0_93, %c0_94], %100 {strides = array<i32>} : memref<1x16x16x128xf32, #tpu.memory_space<vmem>>, vector<1x16x16x128xf32>,
    return
  }
  func.func @transform_1(%arg0: i32, %arg1: i32) -> (i32, i32) {
    %c0_i32 = arith.constant 0 : i32
    %c0_i32_0 = arith.constant 0 : i32
    %c0_i32_1 = arith.constant 0 : i32
    return %c0_i32, %c0_i32_0 : i32, i32
  }
  func.func @transform_2(%arg0: i32, %arg1: i32) -> (i32, i32) {
    %c0_i32 = arith.constant 0 : i32
    %c0_i32_0 = arith.constant 0 : i32
    %c0_i32_1 = arith.constant 0 : i32
    return %c0_i32, %c0_i32_0 : i32, i32
  }
  func.func @transform_3(%arg0: i32, %arg1: i32) -> (i32, i32, i32) {
    %c0_i32 = arith.constant 0 : i32
    %c0_i32_0 = arith.constant 0 : i32
    %c0_i32_1 = arith.constant 0 : i32
    %c0_i32_2 = arith.constant 0 : i32
    return %c0_i32, %c0_i32_0, %c0_i32_1 : i32, i32, i32
  }
  func.func @transform_4(%arg0: i32, %arg1: i32) -> (i32, i32) {
    %c0_i32 = arith.constant 0 : i32
    %c0_i32_0 = arith.constant 0 : i32
    %c0_i32_1 = arith.constant 0 : i32
    return %c0_i32, %c0_i32_0 : i32, i32
  }
  func.func @transform_5(%arg0: i32, %arg1: i32) -> (i32, i32) {
    %c0_i32 = arith.constant 0 : i32
    %c0_i32_0 = arith.constant 0 : i32
    %c0_i32_1 = arith.constant 0 : i32
    return %c0_i32, %c0_i32_0 : i32, i32
  }
  func.func @transform_6(%arg0: i32, %arg1: i32) -> (i32, i32) {
    %c0_i32 = arith.constant 0 : i32
    %c0_i32_0 = arith.constant 0 : i32
    %c0_i32_1 = arith.constant 0 : i32
    return %c0_i32, %c0_i32_0 : i32, i32
  }
  func.func @transform_7(%arg0: i32, %arg1: i32) -> (i32, i32, i32, i32) {
    %c0_i32 = arith.constant 0 : i32
    %c0_i32_0 = arith.constant 0 : i32
    %c0_i32_1 = arith.constant 0 : i32
    return %arg0, %arg1, %c0_i32, %c0_i32_0 : i32, i32, i32, i32
  }
}

</mosaic_0001>

<llo_original>
// kernel: tpu_custom_call.1
$region0: #{tpu_custom_call.1}
  #allocation0 [shape = 'u32[]', space=smem, size = 0x4, offset = 0x4, fixed_abs, tag = 'smem constant byte address 0x4 - core index']
  #allocation1 [shape = 'u32[72,128]{1,0:T(1,128)}', space=vmem, size = 0x9000, scoped, tag = 'internal scratch']
  #allocation2 [shape = 'f32[18,16,128]{2,1,0:T(8,128)}', space=vmem, size = 0x24000, scoped, tag = 'scratch operand']
  #allocation3 [shape = 'bf16[18,18,128]{2,1,0:T(8,128)(2,1)}', space=vmem, size = 0x1b000, scoped, tag = 'scratch operand']
  #allocation4 [shape = 's32[1]{0}', space=sflag, size = 0x4, scoped, tag = 'scratch operand']
  #allocation12 [shape = 's32[]', space=sflag, size = 0x4, offset = 0, fixed_abs, tag = 'sflag constant byte address 0x0 - dummy sync flag']
  #allocation13 [shape = 's32[]', space=sflag, size = 0x4, offset = 0, fixed_abs, tag = 'sflag constant byte address 0x0 - dummy sync flag']
  #allocation14 [shape = 'u32[]', space=smem, size = 0x4, offset = 0x44, fixed_abs, tag = 'smem constant byte address 0x44 - assertion arg 0']
  #allocation15 [shape = 'u32[]', space=smem, size = 0x4, offset = 0x48, fixed_abs, tag = 'smem constant byte address 0x48 - assertion arg 1']
  %s0 = inlined_call_operand.hbm [shape: f32[36,16,128], index: 0, kind: input, shape index: {}]
  %s1 = inlined_call_operand.hbm [shape: bf16[128,128], index: 1, kind: input, shape index: {}]
  %s2 = inlined_call_operand.vmem [shape: f32[1,128], index: 2, kind: input, shape index: {}]
  %s3 = inlined_call_operand.hbm [shape: bf16[9,128,128], index: 3, kind: input, shape index: {}]
  %s4 = inlined_call_operand.vmem [shape: f32[1,128], index: 4, kind: input, shape index: {}]
  %s5 = inlined_call_operand.hbm [shape: bf16[128,128], index: 5, kind: input, shape index: {}]
  %s6 = inlined_call_operand.vmem [shape: f32[1,128], index: 6, kind: input, shape index: {}]
  %s7 = inlined_call_operand.hbm [shape: f32[2,16,16,128], index: 7, kind: output, shape index: {}]
  %s8 = sld [smem:[#allocation0]]
  $region77: #{tpu_custom_call.1} parent=0
    _
  %s10 = ssub.s32 1, %s8
  %s11 = scalar_select 0, %s10, %s8
  $region1: #{tpu_custom_call.1} parent=0
    #allocation5 [shape = 'u8[32768]{0}', space=vmem, size = 0x8000, scoped, tag = 'input window, operand 1, single buffered']
    #allocation6 [shape = 's32[2]{0}', space=sflag, size = 0x8, scoped, tag = 'scoped memory for tpu_custom_call.1']
    #allocation7 [shape = 's32[2]{0}', space=sflag, size = 0x8, scoped, tag = 'scoped memory for tpu_custom_call.1']
    #allocation8 [shape = 'u8[294912]{0}', space=vmem, size = 0x48000, scoped, tag = 'input window, operand 3, single buffered']
    #allocation9 [shape = 's32[1]{0}', space=sflag, size = 0x4, scoped, tag = 'scoped memory for tpu_custom_call.1']
    #allocation10 [shape = 'u8[32768]{0}', space=vmem, size = 0x8000, scoped, tag = 'input window, operand 5, single buffered']
    #allocation11 [shape = 'u8[262144]{0}', space=vmem, size = 0x40000, scoped, tag = 'output window, operand 0']
    %12 = vsyncpa [#allocation6], 0
    %13 = vsyncpa [#allocation9], 0
    %14 = vsyncpa [#allocation7], 0
    %s15 = scalar_lea.sflag [#allocation7], 1
    %16 = vsyncpa %s15, 0
    loop: start=0, step=1, limit=4
    $region2: #{tpu_custom_call.1} parent=1 // loop_pre_header
      _
    $region3: #{tpu_custom_call.1} parent=1 // loop_header
      %s18 = sphi 0, %s22
      %p19 = scmp.ge.s32.totalorder %s18, 4
      %s25 = sphi 0, %s37
      %s26 = sphi 0, %s33
      %s27 = sphi 0, %s25
      %s28 = sphi 0, %s26
      %s29 = sphi 0, %s27
      %s30 = sphi 0, %s28
      %s38 = sphi 0, %s38
      %s40 = sphi 0, %s38
      %s41 = sphi 0, %s40
      %s55 = sphi 0, %s41
      %s59 = sphi 0, %s59
      %s61 = sphi 0, %s59
      %s62 = sphi 0, %s61
      %s76 = sphi 0, %s62
      %s80 = sphi 0, %s80
      %s82 = sphi 0, %s80
      %s83 = sphi 0, %s82
      %s97 = sphi 0, %s83
      %s101 = sphi 0, %s101
      %s103 = sphi 0, %s101
      %s104 = sphi 0, %s103
      %s118 = sphi 0, %s104
      %s122 = sphi 0, %s122
      %s124 = sphi 0, %s122
      %s125 = sphi 0, %s124
      %s139 = sphi 0, %s125
      %s143 = sphi 0, %s143
      %s145 = sphi 0, %s143
      %s146 = sphi 0, %s145
      %s160 = sphi 0, %s146
      %s168 = sphi 0, %s170
      %s171 = sphi 0, %s168
      %s172 = sphi 0, %s171
      %s188 = sphi 0, %s172
    $region4: #{tpu_custom_call.1} parent=1 // loop_header_branch
      %21 = sbr.rel (%p19) target = $region8
    $region5: #{tpu_custom_call.1} parent=1 // loop_body
      %s23 = ssub.s32 %s18, 1
      %s24 = ssub.s32 %s18, 2
      %s31 = sadd.s32 1, %s26
      %p32 = scmp.ge.s32.totalorder %s31, 1
      %s33 = scalar_select %p32, 0, %s31
      %s34 = sadd.s32 1, %s25
      %s35 = scalar_select %p32, %s34, %s25
      %p36 = scmp.ge.s32.totalorder %s35, 2
      %s37 = scalar_select %p36, 0, %s35
      %s39 = sadd.s32 %s38, 1
      %p42 = scmp.eq.s32.totalorder %s18, 1
      %p43 = scmp.ne.s32.totalorder %s38, %s40
      %p44 = scmp.eq.s32.totalorder %s18, 0
      %p45 = por %p43, %p44
      %p46 = scmp.ne.s32.totalorder %s38, %s40
      %p47 = scmp.eq.s32.totalorder %s23, 1
      %p48 = por %p46, %p47
      %p49 = scmp.ne.s32.totalorder %s40, %s41
      %p50 = scmp.eq.s32.totalorder %s23, 0
      %p51 = por %p49, %p50
      %p52 = scmp.ne.s32.totalorder %s40, %s41
      %p53 = scmp.eq.s32.totalorder %s24, 1
      %p54 = por %p52, %p53
      %p56 = scmp.ne.s32.totalorder %s41, %s55
      %p57 = scmp.eq.s32.totalorder %s24, 0
      %p58 = por %p56, %p57
      %s60 = sadd.s32 %s59, 1
      %p63 = scmp.eq.s32.totalorder %s18, 1
      %p64 = scmp.ne.s32.totalorder %s59, %s61
      %p65 = scmp.eq.s32.totalorder %s18, 0
      %p66 = por %p64, %p65
      %p67 = scmp.ne.s32.totalorder %s59, %s61
      %p68 = scmp.eq.s32.totalorder %s23, 1
      %p69 = por %p67, %p68
      %p70 = scmp.ne.s32.totalorder %s61, %s62
      %p71 = scmp.eq.s32.totalorder %s23, 0
      %p72 = por %p70, %p71
      %p73 = scmp.ne.s32.totalorder %s61, %s62
      %p74 = scmp.eq.s32.totalorder %s24, 1
      %p75 = por %p73, %p74
      %p77 = scmp.ne.s32.totalorder %s62, %s76
      %p78 = scmp.eq.s32.totalorder %s24, 0
      %p79 = por %p77, %p78
      %s81 = sadd.s32 %s80, 1
      %p84 = scmp.eq.s32.totalorder %s18, 1
      %p85 = scmp.ne.s32.totalorder %s80, %s82
      %p86 = scmp.eq.s32.totalorder %s18, 0
      %p87 = por %p85, %p86
      %p88 = scmp.ne.s32.totalorder %s80, %s82
      %p89 = scmp.eq.s32.totalorder %s23, 1
      %p90 = por %p88, %p89
      %p91 = scmp.ne.s32.totalorder %s82, %s83
      %p92 = scmp.eq.s32.totalorder %s23, 0
      %p93 = por %p91, %p92
      %p94 = scmp.ne.s32.totalorder %s82, %s83
      %p95 = scmp.eq.s32.totalorder %s24, 1
      %p96 = por %p94, %p95
      %p98 = scmp.ne.s32.totalorder %s83, %s97
      %p99 = scmp.eq.s32.totalorder %s24, 0
      %p100 = por %p98, %p99
      %s102 = sadd.s32 %s101, 1
      %p105 = scmp.eq.s32.totalorder %s18, 1
      %p106 = scmp.ne.s32.totalorder %s101, %s103
      %p107 = scmp.eq.s32.totalorder %s18, 0
      %p108 = por %p106, %p107
      %p109 = scmp.ne.s32.totalorder %s101, %s103
      %p110 = scmp.eq.s32.totalorder %s23, 1
      %p111 = por %p109, %p110
      %p112 = scmp.ne.s32.totalorder %s103, %s104
      %p113 = scmp.eq.s32.totalorder %s23, 0
      %p114 = por %p112, %p113
      %p115 = scmp.ne.s32.totalorder %s103, %s104
      %p116 = scmp.eq.s32.totalorder %s24, 1
      %p117 = por %p115, %p116
      %p119 = scmp.ne.s32.totalorder %s104, %s118
      %p120 = scmp.eq.s32.totalorder %s24, 0
      %p121 = por %p119, %p120
      %s123 = sadd.s32 %s122, 1
      %p126 = scmp.eq.s32.totalorder %s18, 1
      %p127 = scmp.ne.s32.totalorder %s122, %s124
      %p128 = scmp.eq.s32.totalorder %s18, 0
      %p129 = por %p127, %p128
      %p130 = scmp.ne.s32.totalorder %s122, %s124
      %p131 = scmp.eq.s32.totalorder %s23, 1
      %p132 = por %p130, %p131
      %p133 = scmp.ne.s32.totalorder %s124, %s125
      %p134 = scmp.eq.s32.totalorder %s23, 0
      %p135 = por %p133, %p134
      %p136 = scmp.ne.s32.totalorder %s124, %s125
      %p137 = scmp.eq.s32.totalorder %s24, 1
      %p138 = por %p136, %p137
      %p140 = scmp.ne.s32.totalorder %s125, %s139
      %p141 = scmp.eq.s32.totalorder %s24, 0
      %p142 = por %p140, %p141
      %s144 = sadd.s32 %s143, 1
      %p147 = scmp.eq.s32.totalorder %s18, 1
      %p148 = scmp.ne.s32.totalorder %s143, %s145
      %p149 = scmp.eq.s32.totalorder %s18, 0
      %p150 = por %p148, %p149
      %p151 = scmp.ne.s32.totalorder %s143, %s145
      %p152 = scmp.eq.s32.totalorder %s23, 1
      %p153 = por %p151, %p152
      %p154 = scmp.ne.s32.totalorder %s145, %s146
      %p155 = scmp.eq.s32.totalorder %s23, 0
      %p156 = por %p154, %p155
      %p157 = scmp.ne.s32.totalorder %s145, %s146
      %p158 = scmp.eq.s32.totalorder %s24, 1
      %p159 = por %p157, %p158
      %p161 = scmp.ne.s32.totalorder %s146, %s160
      %p162 = scmp.eq.s32.totalorder %s24, 0
      %p163 = por %p161, %p162
      %s164 = ssub.s32 %s25, %s37
      %s165 = ssub.s32 %s26, %s33
      %s166 = sor.u32 %s164, %s165
      %p167 = scmp.eq.s32.totalorder %s166, 0
      %s169 = sadd.s32 %s168, 1
      %s170 = scalar_select %p167, %s168, %s169
      %p173 = pneg %p167
      %p174 = scmp.eq.s32.totalorder %s18, 1
      %p175 = por %p173, %p174
      %p176 = scmp.ne.s32.totalorder %s168, %s171
      %p177 = scmp.eq.s32.totalorder %s18, 0
      %p178 = por %p176, %p177
      %p179 = scmp.ne.s32.totalorder %s168, %s171
      %p180 = scmp.eq.s32.totalorder %s23, 1
      %p181 = por %p179, %p180
      %p182 = scmp.ne.s32.totalorder %s171, %s172
      %p183 = scmp.eq.s32.totalorder %s23, 0
      %p184 = por %p182, %p183
      %p185 = scmp.ne.s32.totalorder %s171, %s172
      %p186 = scmp.eq.s32.totalorder %s24, 1
      %p187 = por %p185, %p186
      %p189 = scmp.ne.s32.totalorder %s172, %s188
      %p190 = scmp.eq.s32.totalorder %s24, 0
      %p191 = por %p189, %p190
      %p192 = scmp.le.s32.totalorder 1, %s18
      %p193 = scmp.lt.s32.totalorder %s18, 3
      %p194 = pnand %p192, %p193
      %p195 = pneg %p194
      // Predicated region
      $region9: #{tpu_custom_call.1} parent=5 // pred_check
        _
      $region10: #{tpu_custom_call.1} parent=5 // pred_check_branch
        %197 = sbr.rel (%p194) target = $region12
      $region11: #{tpu_custom_call.1} parent=5 // pred_region
        %s198 = ssub.s32 %s18, 1
        // Predicated region
        $region13: #{tpu_custom_call.1} parent=11 // pred_check
          %p199 = pneg %p51
        $region14: #{tpu_custom_call.1} parent=11 // pred_check_branch
          %201 = sbr.rel (%p199) target = $region16
        $region15: #{tpu_custom_call.1} parent=11 // pred_region
          %203 = vsyncadd [#allocation6], 0
          %s204 = sshll.u32 %s1, 4
          %s205 = int_to_ptr.hbm [resolvable:$true] %s204
          %s206 = sshll.u32 [#allocation5], 4
          %s207 = int_to_ptr.vmem [resolvable:$true] %s206
          %212 = dma.hbm_to_vmem [thread:$0]  %s205, 1024, %s207, [#allocation6], 64, 64, 4
        $region16: #{tpu_custom_call.1} parent=11 // pred_fallthru
          _
        // Predicated region
        $region17: #{tpu_custom_call.1} parent=11 // pred_check
          %p213 = pneg %p72
        $region18: #{tpu_custom_call.1} parent=11 // pred_check_branch
          %215 = sbr.rel (%p213) target = $region20
        $region19: #{tpu_custom_call.1} parent=11 // pred_region
          _
        $region20: #{tpu_custom_call.1} parent=11 // pred_fallthru
          _
        // Predicated region
        $region21: #{tpu_custom_call.1} parent=11 // pred_check
          %p216 = pneg %p93
        $region22: #{tpu_custom_call.1} parent=11 // pred_check_branch
          %218 = sbr.rel (%p216) target = $region24
        $region23: #{tpu_custom_call.1} parent=11 // pred_region
          %220 = vsyncadd [#allocation9], 0
          %s221 = sshll.u32 %s3, 4
          %s222 = int_to_ptr.hbm [resolvable:$true] %s221
          %s223 = sshll.u32 [#allocation8], 4
          %s224 = int_to_ptr.vmem [resolvable:$true] %s223
          %229 = dma.hbm_to_vmem [thread:$0]  %s222, 9216, %s224, [#allocation9], 64, 64, 4
        $region24: #{tpu_custom_call.1} parent=11 // pred_fallthru
          _
        // Predicated region
        $region25: #{tpu_custom_call.1} parent=11 // pred_check
          %p230 = pneg %p114
        $region26: #{tpu_custom_call.1} parent=11 // pred_check_branch
          %232 = sbr.rel (%p230) target = $region28
        $region27: #{tpu_custom_call.1} parent=11 // pred_region
          _
        $region28: #{tpu_custom_call.1} parent=11 // pred_fallthru
          _
        // Predicated region
        $region29: #{tpu_custom_call.1} parent=11 // pred_check
          %p233 = pneg %p135
        $region30: #{tpu_custom_call.1} parent=11 // pred_check_branch
          %235 = sbr.rel (%p233) target = $region32
        $region31: #{tpu_custom_call.1} parent=11 // pred_region
          %237 = vsyncadd [#allocation9], 0
          %s238 = sshll.u32 %s5, 4
          %s239 = int_to_ptr.hbm [resolvable:$true] %s238
          %s240 = sshll.u32 [#allocation10], 4
          %s241 = int_to_ptr.vmem [resolvable:$true] %s240
          %246 = dma.hbm_to_vmem [thread:$0]  %s239, 1024, %s241, [#allocation9], 64, 64, 4
        $region32: #{tpu_custom_call.1} parent=11 // pred_fallthru
          _
        // Predicated region
        $region33: #{tpu_custom_call.1} parent=11 // pred_check
          %p247 = pneg %p156
        $region34: #{tpu_custom_call.1} parent=11 // pred_check_branch
          %249 = sbr.rel (%p247) target = $region36
        $region35: #{tpu_custom_call.1} parent=11 // pred_region
          _
        $region36: #{tpu_custom_call.1} parent=11 // pred_fallthru
          _
      $region12: #{tpu_custom_call.1} parent=5 // pred_fallthru
        _
      %p250 = scmp.lt.s32.totalorder %s18, 2
      // Predicated region
      $region37: #{tpu_custom_call.1} parent=5 // pred_check
        %p251 = pneg %p250
      $region38: #{tpu_custom_call.1} parent=5 // pred_check_branch
        %253 = sbr.rel (%p251) target = $region40
      $region39: #{tpu_custom_call.1} parent=5 // pred_region
        _
      $region40: #{tpu_custom_call.1} parent=5 // pred_fallthru
        _
      %p254 = scmp.le.s32.totalorder 1, %s18
      %p255 = scmp.lt.s32.totalorder %s18, 3
      %p256 = pnand %p254, %p255
      %p257 = pneg %p256
      // Predicated region
      $region41: #{tpu_custom_call.1} parent=5 // pred_check
        _
      $region42: #{tpu_custom_call.1} parent=5 // pred_check_branch
        %259 = sbr.rel (%p256) target = $region44
      $region43: #{tpu_custom_call.1} parent=5 // pred_region
        %s260 = ssub.s32 %s18, 1
        // Predicated region
        $region45: #{tpu_custom_call.1} parent=43 // pred_check
          %p261 = pneg %p51
        $region46: #{tpu_custom_call.1} parent=43 // pred_check_branch
          %263 = sbr.rel (%p261) target = $region48
        $region47: #{tpu_custom_call.1} parent=43 // pred_region
          %265 = dma.done [#allocation6], 1024
        $region48: #{tpu_custom_call.1} parent=43 // pred_fallthru
          _
        // Predicated region
        $region49: #{tpu_custom_call.1} parent=43 // pred_check
          %p266 = pneg %p93
        $region50: #{tpu_custom_call.1} parent=43 // pred_check_branch
          %268 = sbr.rel (%p266) target = $region52
        $region51: #{tpu_custom_call.1} parent=43 // pred_region
          %270 = dma.done [#allocation9], 9216
        $region52: #{tpu_custom_call.1} parent=43 // pred_fallthru
          _
        // Predicated region
        $region53: #{tpu_custom_call.1} parent=43 // pred_check
          %p271 = pneg %p135
        $region54: #{tpu_custom_call.1} parent=43 // pred_check_branch
          %273 = sbr.rel (%p271) target = $region56
        $region55: #{tpu_custom_call.1} parent=43 // pred_region
          %275 = dma.done [#allocation9], 1024
        $region56: #{tpu_custom_call.1} parent=43 // pred_fallthru
          _
        %p276 = pneg %p51
        %p277 = pneg %p48
        %p278 = pneg %p72
        %p279 = pneg %p69
        %p280 = pneg %p93
        %p281 = pneg %p90
        %p282 = pneg %p114
        %p283 = pneg %p111
        %p284 = pneg %p135
        %p285 = pneg %p132
        %p286 = pneg %p156
        %p287 = pneg %p153
        %p288 = pneg %p184
        %p289 = pneg %p181
        %s290 = sand.u32 %s171, 1
        %s291 = scalar_lea.sflag [#allocation7], %s290
        %s292 = sand.u32 %s171, 1
        %s293 = smul.addr %s292, 256
        %s294 = scalar_lea.vmem [#allocation11], %s293
        %s295 = smul.u32 16, %s28
        %s297 = smul.u32 %s27, 18
        %s298 = smul.u32 %s28, 16
        %s299 = sadd.s32 %s297, %s298
        %s300 = smul.u32 %s299, 16
        %s301 = scalar_lea.hbm %s0, %s300
        // Predicated region
        $region57: #{tpu_custom_call.1} parent=43 // pred_check
          _
        $region58: #{tpu_custom_call.1} parent=43 // pred_check_branch
          %303 = sbr.rel target = $region60
        $region59: #{tpu_custom_call.1} parent=43 // pred_region
          %304 = sst [smem:[#allocation14]] [#allocation13]
          %305 = sst [smem:[#allocation15]] [#allocation12]
        $region60: #{tpu_custom_call.1} parent=43 // pred_fallthru
          _
        %307 = shalt.err (0)
        %s309 = sshll.u32 %s301, 4
        %s310 = int_to_ptr.hbm [resolvable:$true] %s309
        %s311 = sshll.u32 [#allocation2], 4
        %s312 = int_to_ptr.vmem [resolvable:$true] %s311
        %314 = dma.hbm_to_vmem [thread:$0]  %s310, 4608, %s312, [#allocation4]
        %s315 = smul.u32 18, 16
        %s316 = smul.u32 %s315, 1
        %s317 = sshll.u32 %s316, 4
        %318 = dma.done [#allocation4], %s317
        %v319 = vld [vmem:[#allocation2] sm:$0xff]
        %v320 = vld [vmem:[#allocation2 + $0x8] sm:$0xff]
        %v321 = vld [vmem:[#allocation2 + $0x10] sm:$0xff]
        %v322 = vld [vmem:[#allocation2 + $0x18] sm:$0xff]
        %v323 = vld [vmem:[#allocation2 + $0x20] sm:$0xff]
        %v324 = vld [vmem:[#allocation2 + $0x28] sm:$0xff]
        %v325 = vld [vmem:[#allocation2 + $0x30] sm:$0xff]
        %v326 = vld [vmem:[#allocation2 + $0x38] sm:$0xff]
        %v327 = vld [vmem:[#allocation2 + $0x40] sm:$0xff]
        %v328 = vld [vmem:[#allocation2 + $0x48] sm:$0xff]
        %v329 = vld [vmem:[#allocation2 + $0x50] sm:$0xff]
        %v330 = vld [vmem:[#allocation2 + $0x58] sm:$0xff]
        %v331 = vld [vmem:[#allocation2 + $0x60] sm:$0xff]
        %v332 = vld [vmem:[#allocation2 + $0x68] sm:$0xff]
        %v333 = vld [vmem:[#allocation2 + $0x70] sm:$0xff]
        %v334 = vld [vmem:[#allocation2 + $0x78] sm:$0xff]
        %v335 = vld [vmem:[#allocation2 + $0x80] sm:$0xff]
        %v336 = vld [vmem:[#allocation2 + $0x88] sm:$0xff]
        %v337 = vld [vmem:[#allocation2 + $0x90] sm:$0xff]
        %v338 = vld [vmem:[#allocation2 + $0x98] sm:$0xff]
        %v339 = vld [vmem:[#allocation2 + $0xa0] sm:$0xff]
        %v340 = vld [vmem:[#allocation2 + $0xa8] sm:$0xff]
        %v341 = vld [vmem:[#allocation2 + $0xb0] sm:$0xff]
        %v342 = vld [vmem:[#allocation2 + $0xb8] sm:$0xff]
        %v343 = vld [vmem:[#allocation2 + $0xc0] sm:$0xff]
        %v344 = vld [vmem:[#allocation2 + $0xc8] sm:$0xff]
        %v345 = vld [vmem:[#allocation2 + $0xd0] sm:$0xff]
        %v346 = vld [vmem:[#allocation2 + $0xd8] sm:$0xff]
        %v347 = vld [vmem:[#allocation2 + $0xe0] sm:$0xff]
        %v348 = vld [vmem:[#allocation2 + $0xe8] sm:$0xff]
        %v349 = vld [vmem:[#allocation2 + $0xf0] sm:$0xff]
        %v350 = vld [vmem:[#allocation2 + $0xf8] sm:$0xff]
        %v351 = vld [vmem:[#allocation2 + $0x100] sm:$0xff]
        %v352 = vld [vmem:[#allocation2 + $0x108] sm:$0xff]
        %v353 = vld [vmem:[#allocation2 + $0x110] sm:$0xff]
        %v354 = vld [vmem:[#allocation2 + $0x118] sm:$0xff]
        %v355 = vpack.c.bf16 %v320, %v319
        %v356 = vpack.c.bf16 %v322, %v321
        %v357 = vpack.c.bf16 %v324, %v323
        %v358 = vpack.c.bf16 %v326, %v325
        %v359 = vpack.c.bf16 %v328, %v327
        %v360 = vpack.c.bf16 %v330, %v329
        %v361 = vpack.c.bf16 %v332, %v331
        %v362 = vpack.c.bf16 %v334, %v333
        %v363 = vpack.c.bf16 %v336, %v335
        %v364 = vpack.c.bf16 %v338, %v337
        %v365 = vpack.c.bf16 %v340, %v339
        %v366 = vpack.c.bf16 %v342, %v341
        %v367 = vpack.c.bf16 %v344, %v343
        %v368 = vpack.c.bf16 %v346, %v345
        %v369 = vpack.c.bf16 %v348, %v347
        %v370 = vpack.c.bf16 %v350, %v349
        %v371 = vpack.c.bf16 %v352, %v351
        %v372 = vpack.c.bf16 %v354, %v353
        %v373 = vld [vmem:[#allocation5] sm:$0xf]
        %v374 = vld [vmem:[#allocation5 + $0x4] sm:$0xf]
        %v375 = vld [vmem:[#allocation5 + $0x8] sm:$0xf]
        %v376 = vld [vmem:[#allocation5 + $0xc] sm:$0xf]
        %v377 = vld [vmem:[#allocation5 + $0x10] sm:$0xf]
        %v378 = vld [vmem:[#allocation5 + $0x14] sm:$0xf]
        %v379 = vld [vmem:[#allocation5 + $0x18] sm:$0xf]
        %v380 = vld [vmem:[#allocation5 + $0x1c] sm:$0xf]
        %v381 = vld [vmem:[#allocation5 + $0x20] sm:$0xf]
        %v382 = vld [vmem:[#allocation5 + $0x24] sm:$0xf]
        %v383 = vld [vmem:[#allocation5 + $0x28] sm:$0xf]
        %v384 = vld [vmem:[#allocation5 + $0x2c] sm:$0xf]
        %v385 = vld [vmem:[#allocation5 + $0x30] sm:$0xf]
        %v386 = vld [vmem:[#allocation5 + $0x34] sm:$0xf]
        %v387 = vld [vmem:[#allocation5 + $0x38] sm:$0xf]
        %v388 = vld [vmem:[#allocation5 + $0x3c] sm:$0xf]
        %v389 = vld [vmem:[%s2] sm:$0x1]
        %v391 = vperm.slane %v389, 0
        %v409 = vunpack.c.l.b16 %v373
        %v410 = vunpack.c.l.b16 %v374
        %v411 = vunpack.c.l.b16 %v375
        %v412 = vunpack.c.l.b16 %v376
        %v413 = vunpack.c.l.b16 %v377
        %v414 = vunpack.c.l.b16 %v378
        %v415 = vunpack.c.l.b16 %v379
        %v416 = vunpack.c.l.b16 %v380
        %v417 = vunpack.c.l.b16 %v381
        %v418 = vunpack.c.l.b16 %v382
        %v419 = vunpack.c.l.b16 %v383
        %v420 = vunpack.c.l.b16 %v384
        %v421 = vunpack.c.l.b16 %v385
        %v422 = vunpack.c.l.b16 %v386
        %v423 = vunpack.c.l.b16 %v387
        %v424 = vunpack.c.l.b16 %v388
        %v425 = vpack.c.b16 %v410, %v409
        %v426 = vpack.c.b16 %v412, %v411
        %v427 = vpack.c.b16 %v414, %v413
        %v428 = vpack.c.b16 %v416, %v415
        %v429 = vpack.c.b16 %v418, %v417
        %v430 = vpack.c.b16 %v420, %v419
        %v431 = vpack.c.b16 %v422, %v421
        %v432 = vpack.c.b16 %v424, %v423
        %441 = vmatpush.bf16.msra.mxu0 %v432
        %442 = vmatpush.bf16.msra.mxu0 %v431
        %443 = vmatpush.bf16.msra.mxu0 %v430
        %444 = vmatpush.bf16.msra.mxu0 %v429
        %445 = vmatpush.bf16.msra.mxu0 %v428
        %446 = vmatpush.bf16.msra.mxu0 %v427
        %447 = vmatpush.bf16.msra.mxu0 %v426
        %448 = vmatpush.bf16.msra.mxu0 %v425
        %449 = vmatmul.bf16.gmra.mxu0 %v355
        %v450 = vpop.f32.mrf.mxu0
        %v451 = vadd.f32 %v391, %v450
        %v452 = vpop.f32.mrf.mxu0
        %v453 = vadd.f32 %v391, %v452
        %454 = vmatmul.bf16.gmra.mxu0 %v356
        %v455 = vpop.f32.mrf.mxu0
        %v456 = vadd.f32 %v391, %v455
        %v457 = vpop.f32.mrf.mxu0
        %v458 = vadd.f32 %v391, %v457
        %459 = vmatmul.bf16.gmra.mxu0 %v357
        %v460 = vpop.f32.mrf.mxu0
        %v461 = vadd.f32 %v391, %v460
        %v462 = vpop.f32.mrf.mxu0
        %v463 = vadd.f32 %v391, %v462
        %464 = vmatmul.bf16.gmra.mxu0 %v358
        %v465 = vpop.f32.mrf.mxu0
        %v466 = vadd.f32 %v391, %v465
        %v467 = vpop.f32.mrf.mxu0
        %v468 = vadd.f32 %v391, %v467
        %469 = vmatmul.bf16.gmra.mxu0 %v359
        %v470 = vpop.f32.mrf.mxu0
        %v471 = vadd.f32 %v391, %v470
        %v472 = vpop.f32.mrf.mxu0
        %v473 = vadd.f32 %v391, %v472
        %474 = vmatmul.bf16.gmra.mxu0 %v360
        %v475 = vpop.f32.mrf.mxu0
        %v476 = vadd.f32 %v391, %v475
        %v477 = vpop.f32.mrf.mxu0
        %v478 = vadd.f32 %v391, %v477
        %479 = vmatmul.bf16.gmra.mxu0 %v361
        %v480 = vpop.f32.mrf.mxu0
        %v481 = vadd.f32 %v391, %v480
        %v482 = vpop.f32.mrf.mxu0
        %v483 = vadd.f32 %v391, %v482
        %484 = vmatmul.bf16.gmra.mxu0 %v362
        %v485 = vpop.f32.mrf.mxu0
        %v486 = vadd.f32 %v391, %v485
        %v487 = vpop.f32.mrf.mxu0
        %v488 = vadd.f32 %v391, %v487
        %489 = vmatmul.bf16.gmra.mxu0 %v363
        %v490 = vpop.f32.mrf.mxu0
        %v491 = vadd.f32 %v391, %v490
        %v492 = vpop.f32.mrf.mxu0
        %v493 = vadd.f32 %v391, %v492
        %494 = vmatmul.bf16.gmra.mxu0 %v364
        %v495 = vpop.f32.mrf.mxu0
        %v496 = vadd.f32 %v391, %v495
        %v497 = vpop.f32.mrf.mxu0
        %v498 = vadd.f32 %v391, %v497
        %499 = vmatmul.bf16.gmra.mxu0 %v365
        %v500 = vpop.f32.mrf.mxu0
        %v501 = vadd.f32 %v391, %v500
        %v502 = vpop.f32.mrf.mxu0
        %v503 = vadd.f32 %v391, %v502
        %504 = vmatmul.bf16.gmra.mxu0 %v366
        %v505 = vpop.f32.mrf.mxu0
        %v506 = vadd.f32 %v391, %v505
        %v507 = vpop.f32.mrf.mxu0
        %v508 = vadd.f32 %v391, %v507
        %509 = vmatmul.bf16.gmra.mxu0 %v367
        %v510 = vpop.f32.mrf.mxu0
        %v511 = vadd.f32 %v391, %v510
        %v512 = vpop.f32.mrf.mxu0
        %v513 = vadd.f32 %v391, %v512
        %514 = vmatmul.bf16.gmra.mxu0 %v368
        %v515 = vpop.f32.mrf.mxu0
        %v516 = vadd.f32 %v391, %v515
        %v517 = vpop.f32.mrf.mxu0
        %v518 = vadd.f32 %v391, %v517
        %519 = vmatmul.bf16.gmra.mxu0 %v369
        %v520 = vpop.f32.mrf.mxu0
        %v521 = vadd.f32 %v391, %v520
        %v522 = vpop.f32.mrf.mxu0
        %v523 = vadd.f32 %v391, %v522
        %524 = vmatmul.bf16.gmra.mxu0 %v370
        %v525 = vpop.f32.mrf.mxu0
        %v526 = vadd.f32 %v391, %v525
        %v527 = vpop.f32.mrf.mxu0
        %v528 = vadd.f32 %v391, %v527
        %529 = vmatmul.bf16.gmra.mxu0 %v371
        %v530 = vpop.f32.mrf.mxu0
        %v531 = vadd.f32 %v391, %v530
        %v532 = vpop.f32.mrf.mxu0
        %v533 = vadd.f32 %v391, %v532
        %534 = vmatmul.bf16.gmra.mxu0 %v372
        %v535 = vpop.f32.mrf.mxu0
        %v536 = vadd.f32 %v391, %v535
        %v537 = vpop.f32.mrf.mxu0
        %v538 = vadd.f32 %v391, %v537
        %539 = vdwg.mxu0
        %v540 = vmax.f32 %v451, 0.0
        %v541 = vmax.f32 %v453, 0.0
        %v542 = vmax.f32 %v456, 0.0
        %v543 = vmax.f32 %v458, 0.0
        %v544 = vmax.f32 %v461, 0.0
        %v545 = vmax.f32 %v463, 0.0
        %v546 = vmax.f32 %v466, 0.0
        %v547 = vmax.f32 %v468, 0.0
        %v548 = vmax.f32 %v471, 0.0
        %v549 = vmax.f32 %v473, 0.0
        %v550 = vmax.f32 %v476, 0.0
        %v551 = vmax.f32 %v478, 0.0
        %v552 = vmax.f32 %v481, 0.0
        %v553 = vmax.f32 %v483, 0.0
        %v554 = vmax.f32 %v486, 0.0
        %v555 = vmax.f32 %v488, 0.0
        %v556 = vmax.f32 %v491, 0.0
        %v557 = vmax.f32 %v493, 0.0
        %v558 = vmax.f32 %v496, 0.0
        %v559 = vmax.f32 %v498, 0.0
        %v560 = vmax.f32 %v501, 0.0
        %v561 = vmax.f32 %v503, 0.0
        %v562 = vmax.f32 %v506, 0.0
        %v563 = vmax.f32 %v508, 0.0
        %v564 = vmax.f32 %v511, 0.0
        %v565 = vmax.f32 %v513, 0.0
        %v566 = vmax.f32 %v516, 0.0
        %v567 = vmax.f32 %v518, 0.0
        %v568 = vmax.f32 %v521, 0.0
        %v569 = vmax.f32 %v523, 0.0
        %v570 = vmax.f32 %v526, 0.0
        %v571 = vmax.f32 %v528, 0.0
        %v572 = vmax.f32 %v531, 0.0
        %v573 = vmax.f32 %v533, 0.0
        %v574 = vmax.f32 %v536, 0.0
        %v575 = vmax.f32 %v538, 0.0
        %v576 = vpack.c.bf16 %v540, %v540
        %v577 = vpack.c.bf16 %v541, %v541
        %v578 = vpack.c.bf16 %v542, %v542
        %v579 = vpack.c.bf16 %v543, %v543
        %v580 = vpack.c.bf16 %v544, %v544
        %v581 = vpack.c.bf16 %v545, %v545
        %v582 = vpack.c.bf16 %v546, %v546
        %v583 = vpack.c.bf16 %v547, %v547
        %v584 = vpack.c.bf16 %v548, %v548
        %v585 = vpack.c.bf16 %v549, %v549
        %v586 = vpack.c.bf16 %v550, %v550
        %v587 = vpack.c.bf16 %v551, %v551
        %v588 = vpack.c.bf16 %v552, %v552
        %v589 = vpack.c.bf16 %v553, %v553
        %v590 = vpack.c.bf16 %v554, %v554
        %v591 = vpack.c.bf16 %v555, %v555
        %v592 = vpack.c.bf16 %v556, %v556
        %v593 = vpack.c.bf16 %v557, %v557
        %v594 = vpack.c.bf16 %v558, %v558
        %v595 = vpack.c.bf16 %v559, %v559
        %v596 = vpack.c.bf16 %v560, %v560
        %v597 = vpack.c.bf16 %v561, %v561
        %v598 = vpack.c.bf16 %v562, %v562
        %v599 = vpack.c.bf16 %v563, %v563
        %v600 = vpack.c.bf16 %v564, %v564
        %v601 = vpack.c.bf16 %v565, %v565
        %v602 = vpack.c.bf16 %v566, %v566
        %v603 = vpack.c.bf16 %v567, %v567
        %v604 = vpack.c.bf16 %v568, %v568
        %v605 = vpack.c.bf16 %v569, %v569
        %v606 = vpack.c.bf16 %v570, %v570
        %v607 = vpack.c.bf16 %v571, %v571
        %v608 = vpack.c.bf16 %v572, %v572
        %v609 = vpack.c.bf16 %v573, %v573
        %v610 = vpack.c.bf16 %v574, %v574
        %v611 = vpack.c.bf16 %v575, %v575
        %vm612 = vsmask.f32 256
        %vm613 = vsmask.f32 4368
        %vm614 = vmor %vm612, %vm613
        %v616 = vshrl.u32 %v576, 16
        %v618 = vrot.slane %v616, 7
        %v619 = vshll.u32 %v576, 16
        %v621 = vor.u32 %v618, %v619
        %v622 = vrot.slane %v618, 4
        %v624 = vshrl.u32 %v577, 16
        %v626 = vrot.slane %v624, 7
        %v627 = vshll.u32 %v577, 16
        %v629 = vor.u32 %v626, %v627
        %v630 = vsel %vm614, %v622, %v629
        %v631 = vrot.slane %v626, 4
        %v633 = vshrl.u32 %v578, 16
        %v635 = vrot.slane %v633, 7
        %v636 = vshll.u32 %v578, 16
        %v638 = vor.u32 %v635, %v636
        %v639 = vrot.slane %v635, 4
        %v641 = vshrl.u32 %v579, 16
        %v643 = vrot.slane %v641, 7
        %v644 = vshll.u32 %v579, 16
        %v646 = vor.u32 %v643, %v644
        %v647 = vsel %vm614, %v639, %v646
        %v648 = vrot.slane %v643, 4
        %v650 = vshrl.u32 %v580, 16
        %v652 = vrot.slane %v650, 7
        %v653 = vshll.u32 %v580, 16
        %v655 = vor.u32 %v652, %v653
        %v656 = vrot.slane %v652, 4
        %v658 = vshrl.u32 %v581, 16
        %v660 = vrot.slane %v658, 7
        %v661 = vshll.u32 %v581, 16
        %v663 = vor.u32 %v660, %v661
        %v664 = vsel %vm614, %v656, %v663
        %v665 = vrot.slane %v660, 4
        %v667 = vshrl.u32 %v582, 16
        %v669 = vrot.slane %v667, 7
        %v670 = vshll.u32 %v582, 16
        %v672 = vor.u32 %v669, %v670
        %v673 = vrot.slane %v669, 4
        %v675 = vshrl.u32 %v583, 16
        %v677 = vrot.slane %v675, 7
        %v678 = vshll.u32 %v583, 16
        %v680 = vor.u32 %v677, %v678
        %v681 = vsel %vm614, %v673, %v680
        %v682 = vrot.slane %v677, 4
        %v684 = vshrl.u32 %v584, 16
        %v686 = vrot.slane %v684, 7
        %v687 = vshll.u32 %v584, 16
        %v689 = vor.u32 %v686, %v687
        %v690 = vrot.slane %v686, 4
        %v692 = vshrl.u32 %v585, 16
        %v694 = vrot.slane %v692, 7
        %v695 = vshll.u32 %v585, 16
        %v697 = vor.u32 %v694, %v695
        %v698 = vsel %vm614, %v690, %v697
        %v699 = vrot.slane %v694, 4
        %v701 = vshrl.u32 %v586, 16
        %v703 = vrot.slane %v701, 7
        %v704 = vshll.u32 %v586, 16
        %v706 = vor.u32 %v703, %v704
        %v707 = vrot.slane %v703, 4
        %v709 = vshrl.u32 %v587, 16
        %v711 = vrot.slane %v709, 7
        %v712 = vshll.u32 %v587, 16
        %v714 = vor.u32 %v711, %v712
        %v715 = vsel %vm614, %v707, %v714
        %v716 = vrot.slane %v711, 4
        %v718 = vshrl.u32 %v588, 16
        %v720 = vrot.slane %v718, 7
        %v721 = vshll.u32 %v588, 16
        %v723 = vor.u32 %v720, %v721
        %v724 = vrot.slane %v720, 4
        %v726 = vshrl.u32 %v589, 16
        %v728 = vrot.slane %v726, 7
        %v729 = vshll.u32 %v589, 16
        %v731 = vor.u32 %v728, %v729
        %v732 = vsel %vm614, %v724, %v731
        %v733 = vrot.slane %v728, 4
        %v735 = vshrl.u32 %v590, 16
        %v737 = vrot.slane %v735, 7
        %v738 = vshll.u32 %v590, 16
        %v740 = vor.u32 %v737, %v738
        %v741 = vrot.slane %v737, 4
        %v743 = vshrl.u32 %v591, 16
        %v745 = vrot.slane %v743, 7
        %v746 = vshll.u32 %v591, 16
        %v748 = vor.u32 %v745, %v746
        %v749 = vsel %vm614, %v741, %v748
        %v750 = vrot.slane %v745, 4
        %v752 = vshrl.u32 %v592, 16
        %v754 = vrot.slane %v752, 7
        %v755 = vshll.u32 %v592, 16
        %v757 = vor.u32 %v754, %v755
        %v758 = vrot.slane %v754, 4
        %v760 = vshrl.u32 %v593, 16
        %v762 = vrot.slane %v760, 7
        %v763 = vshll.u32 %v593, 16
        %v765 = vor.u32 %v762, %v763
        %v766 = vsel %vm614, %v758, %v765
        %v767 = vrot.slane %v762, 4
        %v769 = vshrl.u32 %v594, 16
        %v771 = vrot.slane %v769, 7
        %v772 = vshll.u32 %v594, 16
        %v774 = vor.u32 %v771, %v772
        %v775 = vrot.slane %v771, 4
        %v777 = vshrl.u32 %v595, 16
        %v779 = vrot.slane %v777, 7
        %v780 = vshll.u32 %v595, 16
        %v782 = vor.u32 %v779, %v780
        %v783 = vsel %vm614, %v775, %v782
        %v784 = vrot.slane %v779, 4
        %v786 = vshrl.u32 %v596, 16
        %v788 = vrot.slane %v786, 7
        %v789 = vshll.u32 %v596, 16
        %v791 = vor.u32 %v788, %v789
        %v792 = vrot.slane %v788, 4
        %v794 = vshrl.u32 %v597, 16
        %v796 = vrot.slane %v794, 7
        %v797 = vshll.u32 %v597, 16
        %v799 = vor.u32 %v796, %v797
        %v800 = vsel %vm614, %v792, %v799
        %v801 = vrot.slane %v796, 4
        %v803 = vshrl.u32 %v598, 16
        %v805 = vrot.slane %v803, 7
        %v806 = vshll.u32 %v598, 16
        %v808 = vor.u32 %v805, %v806
        %v809 = vrot.slane %v805, 4
        %v811 = vshrl.u32 %v599, 16
        %v813 = vrot.slane %v811, 7
        %v814 = vshll.u32 %v599, 16
        %v816 = vor.u32 %v813, %v814
        %v817 = vsel %vm614, %v809, %v816
        %v818 = vrot.slane %v813, 4
        %v820 = vshrl.u32 %v600, 16
        %v822 = vrot.slane %v820, 7
        %v823 = vshll.u32 %v600, 16
        %v825 = vor.u32 %v822, %v823
        %v826 = vrot.slane %v822, 4
        %v828 = vshrl.u32 %v601, 16
        %v830 = vrot.slane %v828, 7
        %v831 = vshll.u32 %v601, 16
        %v833 = vor.u32 %v830, %v831
        %v834 = vsel %vm614, %v826, %v833
        %v835 = vrot.slane %v830, 4
        %v837 = vshrl.u32 %v602, 16
        %v839 = vrot.slane %v837, 7
        %v840 = vshll.u32 %v602, 16
        %v842 = vor.u32 %v839, %v840
        %v843 = vrot.slane %v839, 4
        %v845 = vshrl.u32 %v603, 16
        %v847 = vrot.slane %v845, 7
        %v848 = vshll.u32 %v603, 16
        %v850 = vor.u32 %v847, %v848
        %v851 = vsel %vm614, %v843, %v850
        %v852 = vrot.slane %v847, 4
        %v854 = vshrl.u32 %v604, 16
        %v856 = vrot.slane %v854, 7
        %v857 = vshll.u32 %v604, 16
        %v859 = vor.u32 %v856, %v857
        %v860 = vrot.slane %v856, 4
        %v862 = vshrl.u32 %v605, 16
        %v864 = vrot.slane %v862, 7
        %v865 = vshll.u32 %v605, 16
        %v867 = vor.u32 %v864, %v865
        %v868 = vsel %vm614, %v860, %v867
        %v869 = vrot.slane %v864, 4
        %v871 = vshrl.u32 %v606, 16
        %v873 = vrot.slane %v871, 7
        %v874 = vshll.u32 %v606, 16
        %v876 = vor.u32 %v873, %v874
        %v877 = vrot.slane %v873, 4
        %v879 = vshrl.u32 %v607, 16
        %v881 = vrot.slane %v879, 7
        %v882 = vshll.u32 %v607, 16
        %v884 = vor.u32 %v881, %v882
        %v885 = vsel %vm614, %v877, %v884
        %v886 = vrot.slane %v881, 4
        %v888 = vshrl.u32 %v608, 16
        %v890 = vrot.slane %v888, 7
        %v891 = vshll.u32 %v608, 16
        %v893 = vor.u32 %v890, %v891
        %v894 = vrot.slane %v890, 4
        %v896 = vshrl.u32 %v609, 16
        %v898 = vrot.slane %v896, 7
        %v899 = vshll.u32 %v609, 16
        %v901 = vor.u32 %v898, %v899
        %v902 = vsel %vm614, %v894, %v901
        %v903 = vrot.slane %v898, 4
        %v905 = vshrl.u32 %v610, 16
        %v907 = vrot.slane %v905, 7
        %v908 = vshll.u32 %v610, 16
        %v910 = vor.u32 %v907, %v908
        %v911 = vrot.slane %v907, 4
        %v913 = vshrl.u32 %v611, 16
        %v915 = vrot.slane %v913, 7
        %v916 = vshll.u32 %v611, 16
        %v918 = vor.u32 %v915, %v916
        %v919 = vsel %vm614, %v911, %v918
        %v920 = vrot.slane %v915, 4
        %vm975 = vcmask 1043456
        %vm976 = vsmask.f32 7938
        %vm977 = vmand %vm975, %vm976
        %v978 = vld [vmem:[#allocation3] sm:$0xf]
        %v979 = vsel %vm977, %v621, %v978
        %980 = vst [vmem:[#allocation3] sm:$0xf] %v979
        %981 = vst [vmem:[#allocation3 + $0x4] sm:$0xf] %v630
        %vm982 = vcmask 1040384
        %vm983 = vmand %vm982, %vm612
        %v984 = vld [vmem:[#allocation3 + $0x8] sm:$0x1]
        %v985 = vsel %vm983, %v631, %v984
        %986 = vst [vmem:[#allocation3 + $0x8] sm:$0x1] %v985
        %v987 = vld [vmem:[#allocation3 + $0xc] sm:$0xf]
        %v988 = vsel %vm977, %v638, %v987
        %989 = vst [vmem:[#allocation3 + $0xc] sm:$0xf] %v988
        %990 = vst [vmem:[#allocation3 + $0x10] sm:$0xf] %v647
        %v991 = vld [vmem:[#allocation3 + $0x14] sm:$0x1]
        %v992 = vsel %vm983, %v648, %v991
        %993 = vst [vmem:[#allocation3 + $0x14] sm:$0x1] %v992
        %v994 = vld [vmem:[#allocation3 + $0x18] sm:$0xf]
        %v995 = vsel %vm977, %v655, %v994
        %996 = vst [vmem:[#allocation3 + $0x18] sm:$0xf] %v995
        %997 = vst [vmem:[#allocation3 + $0x1c] sm:$0xf] %v664
        %v998 = vld [vmem:[#allocation3 + $0x20] sm:$0x1]
        %v999 = vsel %vm983, %v665, %v998
        %1000 = vst [vmem:[#allocation3 + $0x20] sm:$0x1] %v999
        %v1001 = vld [vmem:[#allocation3 + $0x24] sm:$0xf]
        %v1002 = vsel %vm977, %v672, %v1001
        %1003 = vst [vmem:[#allocation3 + $0x24] sm:$0xf] %v1002
        %1004 = vst [vmem:[#allocation3 + $0x28] sm:$0xf] %v681
        %v1005 = vld [vmem:[#allocation3 + $0x2c] sm:$0x1]
        %v1006 = vsel %vm983, %v682, %v1005
        %1007 = vst [vmem:[#allocation3 + $0x2c] sm:$0x1] %v1006
        %v1008 = vld [vmem:[#allocation3 + $0x30] sm:$0xf]
        %v1009 = vsel %vm977, %v689, %v1008
        %1010 = vst [vmem:[#allocation3 + $0x30] sm:$0xf] %v1009
        %1011 = vst [vmem:[#allocation3 + $0x34] sm:$0xf] %v698
        %v1012 = vld [vmem:[#allocation3 + $0x38] sm:$0x1]
        %v1013 = vsel %vm983, %v699, %v1012
        %1014 = vst [vmem:[#allocation3 + $0x38] sm:$0x1] %v1013
        %v1015 = vld [vmem:[#allocation3 + $0x3c] sm:$0xf]
        %v1016 = vsel %vm977, %v706, %v1015
        %1017 = vst [vmem:[#allocation3 + $0x3c] sm:$0xf] %v1016
        %1018 = vst [vmem:[#allocation3 + $0x40] sm:$0xf] %v715
        %v1019 = vld [vmem:[#allocation3 + $0x44] sm:$0x1]
        %v1020 = vsel %vm983, %v716, %v1019
        %1021 = vst [vmem:[#allocation3 + $0x44] sm:$0x1] %v1020
        %v1022 = vld [vmem:[#allocation3 + $0x48] sm:$0xf]
        %v1023 = vsel %vm977, %v723, %v1022
        %1024 = vst [vmem:[#allocation3 + $0x48] sm:$0xf] %v1023
        %1025 = vst [vmem:[#allocation3 + $0x4c] sm:$0xf] %v732
        %v1026 = vld [vmem:[#allocation3 + $0x50] sm:$0x1]
        %v1027 = vsel %vm983, %v733, %v1026
        %1028 = vst [vmem:[#allocation3 + $0x50] sm:$0x1] %v1027
        %v1029 = vld [vmem:[#allocation3 + $0x54] sm:$0xf]
        %v1030 = vsel %vm977, %v740, %v1029
        %1031 = vst [vmem:[#allocation3 + $0x54] sm:$0xf] %v1030
        %1032 = vst [vmem:[#allocation3 + $0x58] sm:$0xf] %v749
        %v1033 = vld [vmem:[#allocation3 + $0x5c] sm:$0x1]
        %v1034 = vsel %vm983, %v750, %v1033
        %1035 = vst [vmem:[#allocation3 + $0x5c] sm:$0x1] %v1034
        %v1036 = vld [vmem:[#allocation3 + $0x60] sm:$0xf]
        %v1037 = vsel %vm977, %v757, %v1036
        %1038 = vst [vmem:[#allocation3 + $0x60] sm:$0xf] %v1037
        %1039 = vst [vmem:[#allocation3 + $0x64] sm:$0xf] %v766
        %v1040 = vld [vmem:[#allocation3 + $0x68] sm:$0x1]
        %v1041 = vsel %vm983, %v767, %v1040
        %1042 = vst [vmem:[#allocation3 + $0x68] sm:$0x1] %v1041
        %v1043 = vld [vmem:[#allocation3 + $0x6c] sm:$0xf]
        %v1044 = vsel %vm977, %v774, %v1043
        %1045 = vst [vmem:[#allocation3 + $0x6c] sm:$0xf] %v1044
        %1046 = vst [vmem:[#allocation3 + $0x70] sm:$0xf] %v783
        %v1047 = vld [vmem:[#allocation3 + $0x74] sm:$0x1]
        %v1048 = vsel %vm983, %v784, %v1047
        %1049 = vst [vmem:[#allocation3 + $0x74] sm:$0x1] %v1048
        %v1050 = vld [vmem:[#allocation3 + $0x78] sm:$0xf]
        %v1051 = vsel %vm977, %v791, %v1050
        %1052 = vst [vmem:[#allocation3 + $0x78] sm:$0xf] %v1051
        %1053 = vst [vmem:[#allocation3 + $0x7c] sm:$0xf] %v800
        %v1054 = vld [vmem:[#allocation3 + $0x80] sm:$0x1]
        %v1055 = vsel %vm983, %v801, %v1054
        %1056 = vst [vmem:[#allocation3 + $0x80] sm:$0x1] %v1055
        %v1057 = vld [vmem:[#allocation3 + $0x84] sm:$0xf]
        %v1058 = vsel %vm977, %v808, %v1057
        %1059 = vst [vmem:[#allocation3 + $0x84] sm:$0xf] %v1058
        %1060 = vst [vmem:[#allocation3 + $0x88] sm:$0xf] %v817
        %v1061 = vld [vmem:[#allocation3 + $0x8c] sm:$0x1]
        %v1062 = vsel %vm983, %v818, %v1061
        %1063 = vst [vmem:[#allocation3 + $0x8c] sm:$0x1] %v1062
        %v1064 = vld [vmem:[#allocation3 + $0x90] sm:$0xf]
        %v1065 = vsel %vm977, %v825, %v1064
        %1066 = vst [vmem:[#allocation3 + $0x90] sm:$0xf] %v1065
        %1067 = vst [vmem:[#allocation3 + $0x94] sm:$0xf] %v834
        %v1068 = vld [vmem:[#allocation3 + $0x98] sm:$0x1]
        %v1069 = vsel %vm983, %v835, %v1068
        %1070 = vst [vmem:[#allocation3 + $0x98] sm:$0x1] %v1069
        %v1071 = vld [vmem:[#allocation3 + $0x9c] sm:$0xf]
        %v1072 = vsel %vm977, %v842, %v1071
        %1073 = vst [vmem:[#allocation3 + $0x9c] sm:$0xf] %v1072
        %1074 = vst [vmem:[#allocation3 + $0xa0] sm:$0xf] %v851
        %v1075 = vld [vmem:[#allocation3 + $0xa4] sm:$0x1]
        %v1076 = vsel %vm983, %v852, %v1075
        %1077 = vst [vmem:[#allocation3 + $0xa4] sm:$0x1] %v1076
        %v1078 = vld [vmem:[#allocation3 + $0xa8] sm:$0xf]
        %v1079 = vsel %vm977, %v859, %v1078
        %1080 = vst [vmem:[#allocation3 + $0xa8] sm:$0xf] %v1079
        %1081 = vst [vmem:[#allocation3 + $0xac] sm:$0xf] %v868
        %v1082 = vld [vmem:[#allocation3 + $0xb0] sm:$0x1]
        %v1083 = vsel %vm983, %v869, %v1082
        %1084 = vst [vmem:[#allocation3 + $0xb0] sm:$0x1] %v1083
        %v1085 = vld [vmem:[#allocation3 + $0xb4] sm:$0xf]
        %v1086 = vsel %vm977, %v876, %v1085
        %1087 = vst [vmem:[#allocation3 + $0xb4] sm:$0xf] %v1086
        %1088 = vst [vmem:[#allocation3 + $0xb8] sm:$0xf] %v885
        %v1089 = vld [vmem:[#allocation3 + $0xbc] sm:$0x1]
        %v1090 = vsel %vm983, %v886, %v1089
        %1091 = vst [vmem:[#allocation3 + $0xbc] sm:$0x1] %v1090
        %v1092 = vld [vmem:[#allocation3 + $0xc0] sm:$0xf]
        %v1093 = vsel %vm977, %v893, %v1092
        %1094 = vst [vmem:[#allocation3 + $0xc0] sm:$0xf] %v1093
        %1095 = vst [vmem:[#allocation3 + $0xc4] sm:$0xf] %v902
        %v1096 = vld [vmem:[#allocation3 + $0xc8] sm:$0x1]
        %v1097 = vsel %vm983, %v903, %v1096
        %1098 = vst [vmem:[#allocation3 + $0xc8] sm:$0x1] %v1097
        %v1099 = vld [vmem:[#allocation3 + $0xcc] sm:$0xf]
        %v1100 = vsel %vm977, %v910, %v1099
        %1101 = vst [vmem:[#allocation3 + $0xcc] sm:$0xf] %v1100
        %1102 = vst [vmem:[#allocation3 + $0xd0] sm:$0xf] %v919
        %v1103 = vld [vmem:[#allocation3 + $0xd4] sm:$0x1]
        %v1104 = vsel %vm983, %v920, %v1103
        %1105 = vst [vmem:[#allocation3 + $0xd4] sm:$0x1] %v1104
        %v1106 = vld [vmem:[#allocation3] sm:$0x1]
        %v1107 = vsel %vm983, 0, %v1106
        %1108 = vst [vmem:[#allocation3] sm:$0x1] %v1107
        %v1109 = vld [vmem:[#allocation3 + $0xc] sm:$0x1]
        %v1110 = vsel %vm983, 0, %v1109
        %1111 = vst [vmem:[#allocation3 + $0xc] sm:$0x1] %v1110
        %v1112 = vld [vmem:[#allocation3 + $0x18] sm:$0x1]
        %v1113 = vsel %vm983, 0, %v1112
        %1114 = vst [vmem:[#allocation3 + $0x18] sm:$0x1] %v1113
        %v1115 = vld [vmem:[#allocation3 + $0x24] sm:$0x1]
        %v1116 = vsel %vm983, 0, %v1115
        %1117 = vst [vmem:[#allocation3 + $0x24] sm:$0x1] %v1116
        %v1118 = vld [vmem:[#allocation3 + $0x30] sm:$0x1]
        %v1119 = vsel %vm983, 0, %v1118
        %1120 = vst [vmem:[#allocation3 + $0x30] sm:$0x1] %v1119
        %v1121 = vld [vmem:[#allocation3 + $0x3c] sm:$0x1]
        %v1122 = vsel %vm983, 0, %v1121
        %1123 = vst [vmem:[#allocation3 + $0x3c] sm:$0x1] %v1122
        %v1124 = vld [vmem:[#allocation3 + $0x48] sm:$0x1]
        %v1125 = vsel %vm983, 0, %v1124
        %1126 = vst [vmem:[#allocation3 + $0x48] sm:$0x1] %v1125
        %v1127 = vld [vmem:[#allocation3 + $0x54] sm:$0x1]
        %v1128 = vsel %vm983, 0, %v1127
        %1129 = vst [vmem:[#allocation3 + $0x54] sm:$0x1] %v1128
        %v1130 = vld [vmem:[#allocation3 + $0x60] sm:$0x1]
        %v1131 = vsel %vm983, 0, %v1130
        %1132 = vst [vmem:[#allocation3 + $0x60] sm:$0x1] %v1131
        %v1133 = vld [vmem:[#allocation3 + $0x6c] sm:$0x1]
        %v1134 = vsel %vm983, 0, %v1133
        %1135 = vst [vmem:[#allocation3 + $0x6c] sm:$0x1] %v1134
        %v1136 = vld [vmem:[#allocation3 + $0x78] sm:$0x1]
        %v1137 = vsel %vm983, 0, %v1136
        %1138 = vst [vmem:[#allocation3 + $0x78] sm:$0x1] %v1137
        %v1139 = vld [vmem:[#allocation3 + $0x84] sm:$0x1]
        %v1140 = vsel %vm983, 0, %v1139
        %1141 = vst [vmem:[#allocation3 + $0x84] sm:$0x1] %v1140
        %v1142 = vld [vmem:[#allocation3 + $0x90] sm:$0x1]
        %v1143 = vsel %vm983, 0, %v1142
        %1144 = vst [vmem:[#allocation3 + $0x90] sm:$0x1] %v1143
        %v1145 = vld [vmem:[#allocation3 + $0x9c] sm:$0x1]
        %v1146 = vsel %vm983, 0, %v1145
        %1147 = vst [vmem:[#allocation3 + $0x9c] sm:$0x1] %v1146
        %v1148 = vld [vmem:[#allocation3 + $0xa8] sm:$0x1]
        %v1149 = vsel %vm983, 0, %v1148
        %1150 = vst [vmem:[#allocation3 + $0xa8] sm:$0x1] %v1149
        %v1151 = vld [vmem:[#allocation3 + $0xb4] sm:$0x1]
        %v1152 = vsel %vm983, 0, %v1151
        %1153 = vst [vmem:[#allocation3 + $0xb4] sm:$0x1] %v1152
        %v1154 = vld [vmem:[#allocation3 + $0xc0] sm:$0x1]
        %v1155 = vsel %vm983, 0, %v1154
        %1156 = vst [vmem:[#allocation3 + $0xc0] sm:$0x1] %v1155
        %v1157 = vld [vmem:[#allocation3 + $0xcc] sm:$0x1]
        %v1158 = vsel %vm983, 0, %v1157
        %1159 = vst [vmem:[#allocation3 + $0xcc] sm:$0x1] %v1158
        %vm1160 = vmand %vm982, %vm976
        %v1161 = vld [vmem:[#allocation3 + $0x8] sm:$0x1]
        %v1162 = vsel %vm1160, 0, %v1161
        %1163 = vst [vmem:[#allocation3 + $0x8] sm:$0x1] %v1162
        %v1164 = vld [vmem:[#allocation3 + $0x14] sm:$0x1]
        %v1165 = vsel %vm1160, 0, %v1164
        %1166 = vst [vmem:[#allocation3 + $0x14] sm:$0x1] %v1165
        %v1167 = vld [vmem:[#allocation3 + $0x20] sm:$0x1]
        %v1168 = vsel %vm1160, 0, %v1167
        %1169 = vst [vmem:[#allocation3 + $0x20] sm:$0x1] %v1168
        %v1170 = vld [vmem:[#allocation3 + $0x2c] sm:$0x1]
        %v1171 = vsel %vm1160, 0, %v1170
        %1172 = vst [vmem:[#allocation3 + $0x2c] sm:$0x1] %v1171
        %v1173 = vld [vmem:[#allocation3 + $0x38] sm:$0x1]
        %v1174 = vsel %vm1160, 0, %v1173
        %1175 = vst [vmem:[#allocation3 + $0x38] sm:$0x1] %v1174
        %v1176 = vld [vmem:[#allocation3 + $0x44] sm:$0x1]
        %v1177 = vsel %vm1160, 0, %v1176
        %1178 = vst [vmem:[#allocation3 + $0x44] sm:$0x1] %v1177
        %v1179 = vld [vmem:[#allocation3 + $0x50] sm:$0x1]
        %v1180 = vsel %vm1160, 0, %v1179
        %1181 = vst [vmem:[#allocation3 + $0x50] sm:$0x1] %v1180
        %v1182 = vld [vmem:[#allocation3 + $0x5c] sm:$0x1]
        %v1183 = vsel %vm1160, 0, %v1182
        %1184 = vst [vmem:[#allocation3 + $0x5c] sm:$0x1] %v1183
        %v1185 = vld [vmem:[#allocation3 + $0x68] sm:$0x1]
        %v1186 = vsel %vm1160, 0, %v1185
        %1187 = vst [vmem:[#allocation3 + $0x68] sm:$0x1] %v1186
        %v1188 = vld [vmem:[#allocation3 + $0x74] sm:$0x1]
        %v1189 = vsel %vm1160, 0, %v1188
        %1190 = vst [vmem:[#allocation3 + $0x74] sm:$0x1] %v1189
        %v1191 = vld [vmem:[#allocation3 + $0x80] sm:$0x1]
        %v1192 = vsel %vm1160, 0, %v1191
        %1193 = vst [vmem:[#allocation3 + $0x80] sm:$0x1] %v1192
        %v1194 = vld [vmem:[#allocation3 + $0x8c] sm:$0x1]
        %v1195 = vsel %vm1160, 0, %v1194
        %1196 = vst [vmem:[#allocation3 + $0x8c] sm:$0x1] %v1195
        %v1197 = vld [vmem:[#allocation3 + $0x98] sm:$0x1]
        %v1198 = vsel %vm1160, 0, %v1197
        %1199 = vst [vmem:[#allocation3 + $0x98] sm:$0x1] %v1198
        %v1200 = vld [vmem:[#allocation3 + $0xa4] sm:$0x1]
        %v1201 = vsel %vm1160, 0, %v1200
        %1202 = vst [vmem:[#allocation3 + $0xa4] sm:$0x1] %v1201
        %v1203 = vld [vmem:[#allocation3 + $0xb0] sm:$0x1]
        %v1204 = vsel %vm1160, 0, %v1203
        %1205 = vst [vmem:[#allocation3 + $0xb0] sm:$0x1] %v1204
        %v1206 = vld [vmem:[#allocation3 + $0xbc] sm:$0x1]
        %v1207 = vsel %vm1160, 0, %v1206
        %1208 = vst [vmem:[#allocation3 + $0xbc] sm:$0x1] %v1207
        %v1209 = vld [vmem:[#allocation3 + $0xc8] sm:$0x1]
        %v1210 = vsel %vm1160, 0, %v1209
        %1211 = vst [vmem:[#allocation3 + $0xc8] sm:$0x1] %v1210
        %v1212 = vld [vmem:[#allocation3 + $0xd4] sm:$0x1]
        %v1213 = vsel %vm1160, 0, %v1212
        %1214 = vst [vmem:[#allocation3 + $0xd4] sm:$0x1] %v1213
        %p1215 = scmp.eq.s32.totalorder %s28, 0
        // Predicated region
        $region61: #{tpu_custom_call.1} parent=43 // pred_check
          %p1216 = pneg %p1215
        $region62: #{tpu_custom_call.1} parent=43 // pred_check_branch
          %1218 = sbr.rel (%p1216) target = $region64
        $region63: #{tpu_custom_call.1} parent=43 // pred_region
          %v1219 = vld [vmem:[#allocation3] sm:$0xf]
          %v1220 = vsel %vm977, 0, %v1219
          %1221 = vst [vmem:[#allocation3] sm:$0xf] %v1220
          %1222 = vst [vmem:[#allocation3 + $0x4] sm:$0xf] 0
          %v1223 = vld [vmem:[#allocation3 + $0x8] sm:$0x1]
          %v1224 = vsel %vm983, 0, %v1223
          %1225 = vst [vmem:[#allocation3 + $0x8] sm:$0x1] %v1224
          %s1226 = scalar_lea.vmem [#allocation3], 204
          %v1227 = vld [vmem:[%s1226] sm:$0xf]
          %v1228 = vsel %vm977, 0, %v1227
          %1229 = vst [vmem:[%s1226] sm:$0xf] %v1228
          %1230 = vst [vmem:[%s1226 + $0x4] sm:$0xf] 0
          %v1231 = vld [vmem:[%s1226 + $0x8] sm:$0x1]
          %v1232 = vsel %vm983, 0, %v1231
          %1233 = vst [vmem:[%s1226 + $0x8] sm:$0x1] %v1232
        $region64: #{tpu_custom_call.1} parent=43 // pred_fallthru
          _
        %v1234 = vld [vmem:[#allocation3] sm:$0xf]
        %v1235 = vld [vmem:[#allocation3 + $0x4] sm:$0xf]
        %v1236 = vld [vmem:[#allocation3 + $0xc] sm:$0xf]
        %v1237 = vld [vmem:[#allocation3 + $0x10] sm:$0xf]
        %v1238 = vld [vmem:[#allocation3 + $0x18] sm:$0xf]
        %v1239 = vld [vmem:[#allocation3 + $0x1c] sm:$0xf]
        %v1240 = vld [vmem:[#allocation3 + $0x24] sm:$0xf]
        %v1241 = vld [vmem:[#allocation3 + $0x28] sm:$0xf]
        %v1242 = vld [vmem:[#allocation3 + $0x30] sm:$0xf]
        %v1243 = vld [vmem:[#allocation3 + $0x34] sm:$0xf]
        %v1244 = vld [vmem:[#allocation3 + $0x3c] sm:$0xf]
        %v1245 = vld [vmem:[#allocation3 + $0x40] sm:$0xf]
        %v1246 = vld [vmem:[#allocation3 + $0x48] sm:$0xf]
        %v1247 = vld [vmem:[#allocation3 + $0x4c] sm:$0xf]
        %v1248 = vld [vmem:[#allocation3 + $0x54] sm:$0xf]
        %v1249 = vld [vmem:[#allocation3 + $0x58] sm:$0xf]
        %v1250 = vld [vmem:[#allocation3 + $0x60] sm:$0xf]
        %v1251 = vld [vmem:[#allocation3 + $0x64] sm:$0xf]
        %v1252 = vld [vmem:[#allocation3 + $0x6c] sm:$0xf]
        %v1253 = vld [vmem:[#allocation3 + $0x70] sm:$0xf]
        %v1254 = vld [vmem:[#allocation3 + $0x78] sm:$0xf]
        %v1255 = vld [vmem:[#allocation3 + $0x7c] sm:$0xf]
        %v1256 = vld [vmem:[#allocation3 + $0x84] sm:$0xf]
        %v1257 = vld [vmem:[#allocation3 + $0x88] sm:$0xf]
        %v1258 = vld [vmem:[#allocation3 + $0x90] sm:$0xf]
        %v1259 = vld [vmem:[#allocation3 + $0x94] sm:$0xf]
        %v1260 = vld [vmem:[#allocation3 + $0x9c] sm:$0xf]
        %v1261 = vld [vmem:[#allocation3 + $0xa0] sm:$0xf]
        %v1262 = vld [vmem:[#allocation3 + $0xa8] sm:$0xf]
        %v1263 = vld [vmem:[#allocation3 + $0xac] sm:$0xf]
        %v1264 = vld [vmem:[#allocation3 + $0xb4] sm:$0xf]
        %v1265 = vld [vmem:[#allocation3 + $0xb8] sm:$0xf]
        %v1266 = vld [vmem:[#allocation8] sm:$0xf]
        %v1267 = vld [vmem:[#allocation8 + $0x4] sm:$0xf]
        %v1268 = vld [vmem:[#allocation8 + $0x8] sm:$0xf]
        %v1269 = vld [vmem:[#allocation8 + $0xc] sm:$0xf]
        %v1270 = vld [vmem:[#allocation8 + $0x10] sm:$0xf]
        %v1271 = vld [vmem:[#allocation8 + $0x14] sm:$0xf]
        %v1272 = vld [vmem:[#allocation8 + $0x18] sm:$0xf]
        %v1273 = vld [vmem:[#allocation8 + $0x1c] sm:$0xf]
        %v1274 = vld [vmem:[#allocation8 + $0x20] sm:$0xf]
        %v1275 = vld [vmem:[#allocation8 + $0x24] sm:$0xf]
        %v1276 = vld [vmem:[#allocation8 + $0x28] sm:$0xf]
        %v1277 = vld [vmem:[#allocation8 + $0x2c] sm:$0xf]
        %v1278 = vld [vmem:[#allocation8 + $0x30] sm:$0xf]
        %v1279 = vld [vmem:[#allocation8 + $0x34] sm:$0xf]
        %v1280 = vld [vmem:[#allocation8 + $0x38] sm:$0xf]
        %v1281 = vld [vmem:[#allocation8 + $0x3c] sm:$0xf]
        %v1282 = vld [vmem:[#allocation3 + $0x8] sm:$0x1]
        %v1283 = vld [vmem:[#allocation3 + $0x14] sm:$0x1]
        %v1284 = vld [vmem:[#allocation3 + $0x20] sm:$0x1]
        %v1285 = vld [vmem:[#allocation3 + $0x2c] sm:$0x1]
        %v1286 = vld [vmem:[#allocation3 + $0x38] sm:$0x1]
        %v1287 = vld [vmem:[#allocation3 + $0x44] sm:$0x1]
        %v1288 = vld [vmem:[#allocation3 + $0x50] sm:$0x1]
        %v1289 = vld [vmem:[#allocation3 + $0x5c] sm:$0x1]
        %v1290 = vld [vmem:[#allocation3 + $0x68] sm:$0x1]
        %v1291 = vld [vmem:[#allocation3 + $0x74] sm:$0x1]
        %v1292 = vld [vmem:[#allocation3 + $0x80] sm:$0x1]
        %v1293 = vld [vmem:[#allocation3 + $0x8c] sm:$0x1]
        %v1294 = vld [vmem:[#allocation3 + $0x98] sm:$0x1]
        %v1295 = vld [vmem:[#allocation3 + $0xa4] sm:$0x1]
        %v1296 = vld [vmem:[#allocation3 + $0xb0] sm:$0x1]
        %v1297 = vld [vmem:[#allocation3 + $0xbc] sm:$0x1]
        %vm1298 = vsmask.f32 3328
        %vm1299 = vsmask.f32 7440
        %vm1300 = vmor %vm1298, %vm1299
        %v1302 = vshrl.u32 %v1234, 16
        %v1304 = vrot.slane %v1302, 4
        %v1305 = vshll.u32 %v1234, 16
        %v1307 = vrot.slane %v1305, 5
        %v1308 = vor.u32 %v1304, %v1307
        %v1309 = vrot.slane %v1308, 4
        %v1311 = vshll.u32 %v1235, 16
        %v1313 = vrot.slane %v1311, 5
        %v1314 = vsel %vm1300, %v1309, %v1313
        %v1315 = vshrl.u32 %v1235, 16
        %v1317 = vrot.slane %v1315, 4
        %v1318 = vor.u32 %v1317, %v1313
        %v1319 = vrot.slane %v1318, 4
        %v1321 = vshll.u32 %v1282, 16
        %v1323 = vrot.slane %v1321, 5
        %v1324 = vsel %vm1300, %v1319, %v1323
        %v1326 = vshrl.u32 %v1236, 16
        %v1328 = vrot.slane %v1326, 4
        %v1329 = vshll.u32 %v1236, 16
        %v1331 = vrot.slane %v1329, 5
        %v1332 = vor.u32 %v1328, %v1331
        %v1333 = vrot.slane %v1332, 4
        %v1335 = vshll.u32 %v1237, 16
        %v1337 = vrot.slane %v1335, 5
        %v1338 = vsel %vm1300, %v1333, %v1337
        %v1339 = vshrl.u32 %v1237, 16
        %v1341 = vrot.slane %v1339, 4
        %v1342 = vor.u32 %v1341, %v1337
        %v1343 = vrot.slane %v1342, 4
        %v1345 = vshll.u32 %v1283, 16
        %v1347 = vrot.slane %v1345, 5
        %v1348 = vsel %vm1300, %v1343, %v1347
        %v1350 = vshrl.u32 %v1238, 16
        %v1352 = vrot.slane %v1350, 4
        %v1353 = vshll.u32 %v1238, 16
        %v1355 = vrot.slane %v1353, 5
        %v1356 = vor.u32 %v1352, %v1355
        %v1357 = vrot.slane %v1356, 4
        %v1359 = vshll.u32 %v1239, 16
        %v1361 = vrot.slane %v1359, 5
        %v1362 = vsel %vm1300, %v1357, %v1361
        %v1363 = vshrl.u32 %v1239, 16
        %v1365 = vrot.slane %v1363, 4
        %v1366 = vor.u32 %v1365, %v1361
        %v1367 = vrot.slane %v1366, 4
        %v1369 = vshll.u32 %v1284, 16
        %v1371 = vrot.slane %v1369, 5
        %v1372 = vsel %vm1300, %v1367, %v1371
        %v1374 = vshrl.u32 %v1240, 16
        %v1376 = vrot.slane %v1374, 4
        %v1377 = vshll.u32 %v1240, 16
        %v1379 = vrot.slane %v1377, 5
        %v1380 = vor.u32 %v1376, %v1379
        %v1381 = vrot.slane %v1380, 4
        %v1383 = vshll.u32 %v1241, 16
        %v1385 = vrot.slane %v1383, 5
        %v1386 = vsel %vm1300, %v1381, %v1385
        %v1387 = vshrl.u32 %v1241, 16
        %v1389 = vrot.slane %v1387, 4
        %v1390 = vor.u32 %v1389, %v1385
        %v1391 = vrot.slane %v1390, 4
        %v1393 = vshll.u32 %v1285, 16
        %v1395 = vrot.slane %v1393, 5
        %v1396 = vsel %vm1300, %v1391, %v1395
        %v1398 = vshrl.u32 %v1242, 16
        %v1400 = vrot.slane %v1398, 4
        %v1401 = vshll.u32 %v1242, 16
        %v1403 = vrot.slane %v1401, 5
        %v1404 = vor.u32 %v1400, %v1403
        %v1405 = vrot.slane %v1404, 4
        %v1407 = vshll.u32 %v1243, 16
        %v1409 = vrot.slane %v1407, 5
        %v1410 = vsel %vm1300, %v1405, %v1409
        %v1411 = vshrl.u32 %v1243, 16
        %v1413 = vrot.slane %v1411, 4
        %v1414 = vor.u32 %v1413, %v1409
        %v1415 = vrot.slane %v1414, 4
        %v1417 = vshll.u32 %v1286, 16
        %v1419 = vrot.slane %v1417, 5
        %v1420 = vsel %vm1300, %v1415, %v1419
        %v1422 = vshrl.u32 %v1244, 16
        %v1424 = vrot.slane %v1422, 4
        %v1425 = vshll.u32 %v1244, 16
        %v1427 = vrot.slane %v1425, 5
        %v1428 = vor.u32 %v1424, %v1427
        %v1429 = vrot.slane %v1428, 4
        %v1431 = vshll.u32 %v1245, 16
        %v1433 = vrot.slane %v1431, 5
        %v1434 = vsel %vm1300, %v1429, %v1433
        %v1435 = vshrl.u32 %v1245, 16
        %v1437 = vrot.slane %v1435, 4
        %v1438 = vor.u32 %v1437, %v1433
        %v1439 = vrot.slane %v1438, 4
        %v1441 = vshll.u32 %v1287, 16
        %v1443 = vrot.slane %v1441, 5
        %v1444 = vsel %vm1300, %v1439, %v1443
        %v1446 = vshrl.u32 %v1246, 16
        %v1448 = vrot.slane %v1446, 4
        %v1449 = vshll.u32 %v1246, 16
        %v1451 = vrot.slane %v1449, 5
        %v1452 = vor.u32 %v1448, %v1451
        %v1453 = vrot.slane %v1452, 4
        %v1455 = vshll.u32 %v1247, 16
        %v1457 = vrot.slane %v1455, 5
        %v1458 = vsel %vm1300, %v1453, %v1457
        %v1459 = vshrl.u32 %v1247, 16
        %v1461 = vrot.slane %v1459, 4
        %v1462 = vor.u32 %v1461, %v1457
        %v1463 = vrot.slane %v1462, 4
        %v1465 = vshll.u32 %v1288, 16
        %v1467 = vrot.slane %v1465, 5
        %v1468 = vsel %vm1300, %v1463, %v1467
        %v1470 = vshrl.u32 %v1248, 16
        %v1472 = vrot.slane %v1470, 4
        %v1473 = vshll.u32 %v1248, 16
        %v1475 = vrot.slane %v1473, 5
        %v1476 = vor.u32 %v1472, %v1475
        %v1477 = vrot.slane %v1476, 4
        %v1479 = vshll.u32 %v1249, 16
        %v1481 = vrot.slane %v1479, 5
        %v1482 = vsel %vm1300, %v1477, %v1481
        %v1483 = vshrl.u32 %v1249, 16
        %v1485 = vrot.slane %v1483, 4
        %v1486 = vor.u32 %v1485, %v1481
        %v1487 = vrot.slane %v1486, 4
        %v1489 = vshll.u32 %v1289, 16
        %v1491 = vrot.slane %v1489, 5
        %v1492 = vsel %vm1300, %v1487, %v1491
        %v1494 = vshrl.u32 %v1250, 16
        %v1496 = vrot.slane %v1494, 4
        %v1497 = vshll.u32 %v1250, 16
        %v1499 = vrot.slane %v1497, 5
        %v1500 = vor.u32 %v1496, %v1499
        %v1501 = vrot.slane %v1500, 4
        %v1503 = vshll.u32 %v1251, 16
        %v1505 = vrot.slane %v1503, 5
        %v1506 = vsel %vm1300, %v1501, %v1505
        %v1507 = vshrl.u32 %v1251, 16
        %v1509 = vrot.slane %v1507, 4
        %v1510 = vor.u32 %v1509, %v1505
        %v1511 = vrot.slane %v1510, 4
        %v1513 = vshll.u32 %v1290, 16
        %v1515 = vrot.slane %v1513, 5
        %v1516 = vsel %vm1300, %v1511, %v1515
        %v1518 = vshrl.u32 %v1252, 16
        %v1520 = vrot.slane %v1518, 4
        %v1521 = vshll.u32 %v1252, 16
        %v1523 = vrot.slane %v1521, 5
        %v1524 = vor.u32 %v1520, %v1523
        %v1525 = vrot.slane %v1524, 4
        %v1527 = vshll.u32 %v1253, 16
        %v1529 = vrot.slane %v1527, 5
        %v1530 = vsel %vm1300, %v1525, %v1529
        %v1531 = vshrl.u32 %v1253, 16
        %v1533 = vrot.slane %v1531, 4
        %v1534 = vor.u32 %v1533, %v1529
        %v1535 = vrot.slane %v1534, 4
        %v1537 = vshll.u32 %v1291, 16
        %v1539 = vrot.slane %v1537, 5
        %v1540 = vsel %vm1300, %v1535, %v1539
        %v1542 = vshrl.u32 %v1254, 16
        %v1544 = vrot.slane %v1542, 4
        %v1545 = vshll.u32 %v1254, 16
        %v1547 = vrot.slane %v1545, 5
        %v1548 = vor.u32 %v1544, %v1547
        %v1549 = vrot.slane %v1548, 4
        %v1551 = vshll.u32 %v1255, 16
        %v1553 = vrot.slane %v1551, 5
        %v1554 = vsel %vm1300, %v1549, %v1553
        %v1555 = vshrl.u32 %v1255, 16
        %v1557 = vrot.slane %v1555, 4
        %v1558 = vor.u32 %v1557, %v1553
        %v1559 = vrot.slane %v1558, 4
        %v1561 = vshll.u32 %v1292, 16
        %v1563 = vrot.slane %v1561, 5
        %v1564 = vsel %vm1300, %v1559, %v1563
        %v1566 = vshrl.u32 %v1256, 16
        %v1568 = vrot.slane %v1566, 4
        %v1569 = vshll.u32 %v1256, 16
        %v1571 = vrot.slane %v1569, 5
        %v1572 = vor.u32 %v1568, %v1571
        %v1573 = vrot.slane %v1572, 4
        %v1575 = vshll.u32 %v1257, 16
        %v1577 = vrot.slane %v1575, 5
        %v1578 = vsel %vm1300, %v1573, %v1577
        %v1579 = vshrl.u32 %v1257, 16
        %v1581 = vrot.slane %v1579, 4
        %v1582 = vor.u32 %v1581, %v1577
        %v1583 = vrot.slane %v1582, 4
        %v1585 = vshll.u32 %v1293, 16
        %v1587 = vrot.slane %v1585, 5
        %v1588 = vsel %vm1300, %v1583, %v1587
        %v1590 = vshrl.u32 %v1258, 16
        %v1592 = vrot.slane %v1590, 4
        %v1593 = vshll.u32 %v1258, 16
        %v1595 = vrot.slane %v1593, 5
        %v1596 = vor.u32 %v1592, %v1595
        %v1597 = vrot.slane %v1596, 4
        %v1599 = vshll.u32 %v1259, 16
        %v1601 = vrot.slane %v1599, 5
        %v1602 = vsel %vm1300, %v1597, %v1601
        %v1603 = vshrl.u32 %v1259, 16
        %v1605 = vrot.slane %v1603, 4
        %v1606 = vor.u32 %v1605, %v1601
        %v1607 = vrot.slane %v1606, 4
        %v1609 = vshll.u32 %v1294, 16
        %v1611 = vrot.slane %v1609, 5
        %v1612 = vsel %vm1300, %v1607, %v1611
        %v1614 = vshrl.u32 %v1260, 16
        %v1616 = vrot.slane %v1614, 4
        %v1617 = vshll.u32 %v1260, 16
        %v1619 = vrot.slane %v1617, 5
        %v1620 = vor.u32 %v1616, %v1619
        %v1621 = vrot.slane %v1620, 4
        %v1623 = vshll.u32 %v1261, 16
        %v1625 = vrot.slane %v1623, 5
        %v1626 = vsel %vm1300, %v1621, %v1625
        %v1627 = vshrl.u32 %v1261, 16
        %v1629 = vrot.slane %v1627, 4
        %v1630 = vor.u32 %v1629, %v1625
        %v1631 = vrot.slane %v1630, 4
        %v1633 = vshll.u32 %v1295, 16
        %v1635 = vrot.slane %v1633, 5
        %v1636 = vsel %vm1300, %v1631, %v1635
        %v1638 = vshrl.u32 %v1262, 16
        %v1640 = vrot.slane %v1638, 4
        %v1641 = vshll.u32 %v1262, 16
        %v1643 = vrot.slane %v1641, 5
        %v1644 = vor.u32 %v1640, %v1643
        %v1645 = vrot.slane %v1644, 4
        %v1647 = vshll.u32 %v1263, 16
        %v1649 = vrot.slane %v1647, 5
        %v1650 = vsel %vm1300, %v1645, %v1649
        %v1651 = vshrl.u32 %v1263, 16
        %v1653 = vrot.slane %v1651, 4
        %v1654 = vor.u32 %v1653, %v1649
        %v1655 = vrot.slane %v1654, 4
        %v1657 = vshll.u32 %v1296, 16
        %v1659 = vrot.slane %v1657, 5
        %v1660 = vsel %vm1300, %v1655, %v1659
        %v1662 = vshrl.u32 %v1264, 16
        %v1664 = vrot.slane %v1662, 4
        %v1665 = vshll.u32 %v1264, 16
        %v1667 = vrot.slane %v1665, 5
        %v1668 = vor.u32 %v1664, %v1667
        %v1669 = vrot.slane %v1668, 4
        %v1671 = vshll.u32 %v1265, 16
        %v1673 = vrot.slane %v1671, 5
        %v1674 = vsel %vm1300, %v1669, %v1673
        %v1675 = vshrl.u32 %v1265, 16
        %v1677 = vrot.slane %v1675, 4
        %v1678 = vor.u32 %v1677, %v1673
        %v1679 = vrot.slane %v1678, 4
        %v1681 = vshll.u32 %v1297, 16
        %v1683 = vrot.slane %v1681, 5
        %v1684 = vsel %vm1300, %v1679, %v1683
        %s1685 = scalar_lea.vmem [#allocation8], 64
        %v1686 = vld [vmem:[%s1685] sm:$0xf]
        %v1687 = vld [vmem:[%s1685 + $0x4] sm:$0xf]
        %v1688 = vld [vmem:[%s1685 + $0x8] sm:$0xf]
        %v1689 = vld [vmem:[%s1685 + $0xc] sm:$0xf]
        %v1690 = vld [vmem:[%s1685 + $0x10] sm:$0xf]
        %v1691 = vld [vmem:[%s1685 + $0x14] sm:$0xf]
        %v1692 = vld [vmem:[%s1685 + $0x18] sm:$0xf]
        %v1693 = vld [vmem:[%s1685 + $0x1c] sm:$0xf]
        %v1694 = vld [vmem:[%s1685 + $0x20] sm:$0xf]
        %v1695 = vld [vmem:[%s1685 + $0x24] sm:$0xf]
        %v1696 = vld [vmem:[%s1685 + $0x28] sm:$0xf]
        %v1697 = vld [vmem:[%s1685 + $0x2c] sm:$0xf]
        %v1698 = vld [vmem:[%s1685 + $0x30] sm:$0xf]
        %v1699 = vld [vmem:[%s1685 + $0x34] sm:$0xf]
        %v1700 = vld [vmem:[%s1685 + $0x38] sm:$0xf]
        %v1701 = vld [vmem:[%s1685 + $0x3c] sm:$0xf]
        %v1702 = vunpack.c.l.b16 %v1314
        %v1703 = vunpack.c.l.b16 %v1324
        %v1704 = vunpack.c.l.b16 %v1338
        %v1705 = vunpack.c.l.b16 %v1348
        %v1706 = vunpack.c.l.b16 %v1362
        %v1707 = vunpack.c.l.b16 %v1372
        %v1708 = vunpack.c.l.b16 %v1386
        %v1709 = vunpack.c.l.b16 %v1396
        %v1710 = vunpack.c.l.b16 %v1410
        %v1711 = vunpack.c.l.b16 %v1420
        %v1712 = vunpack.c.l.b16 %v1434
        %v1713 = vunpack.c.l.b16 %v1444
        %v1714 = vunpack.c.l.b16 %v1458
        %v1715 = vunpack.c.l.b16 %v1468
        %v1716 = vunpack.c.l.b16 %v1482
        %v1717 = vunpack.c.l.b16 %v1492
        %v1718 = vunpack.c.l.b16 %v1506
        %v1719 = vunpack.c.l.b16 %v1516
        %v1720 = vunpack.c.l.b16 %v1530
        %v1721 = vunpack.c.l.b16 %v1540
        %v1722 = vunpack.c.l.b16 %v1554
        %v1723 = vunpack.c.l.b16 %v1564
        %v1724 = vunpack.c.l.b16 %v1578
        %v1725 = vunpack.c.l.b16 %v1588
        %v1726 = vunpack.c.l.b16 %v1602
        %v1727 = vunpack.c.l.b16 %v1612
        %v1728 = vunpack.c.l.b16 %v1626
        %v1729 = vunpack.c.l.b16 %v1636
        %v1730 = vunpack.c.l.b16 %v1650
        %v1731 = vunpack.c.l.b16 %v1660
        %v1732 = vunpack.c.l.b16 %v1674
        %v1733 = vunpack.c.l.b16 %v1684
        %v1734 = vpack.c.b16 %v1703, %v1702
        %v1735 = vpack.c.b16 %v1705, %v1704
        %v1736 = vpack.c.b16 %v1707, %v1706
        %v1737 = vpack.c.b16 %v1709, %v1708
        %v1738 = vpack.c.b16 %v1711, %v1710
        %v1739 = vpack.c.b16 %v1713, %v1712
        %v1740 = vpack.c.b16 %v1715, %v1714
        %v1741 = vpack.c.b16 %v1717, %v1716
        %v1742 = vpack.c.b16 %v1719, %v1718
        %v1743 = vpack.c.b16 %v1721, %v1720
        %v1744 = vpack.c.b16 %v1723, %v1722
        %v1745 = vpack.c.b16 %v1725, %v1724
        %v1746 = vpack.c.b16 %v1727, %v1726
        %v1747 = vpack.c.b16 %v1729, %v1728
        %v1748 = vpack.c.b16 %v1731, %v1730
        %v1749 = vpack.c.b16 %v1733, %v1732
        %v1782 = vunpack.c.l.b16 %v1686
        %v1783 = vunpack.c.l.b16 %v1687
        %v1784 = vunpack.c.l.b16 %v1688
        %v1785 = vunpack.c.l.b16 %v1689
        %v1786 = vunpack.c.l.b16 %v1690
        %v1787 = vunpack.c.l.b16 %v1691
        %v1788 = vunpack.c.l.b16 %v1692
        %v1789 = vunpack.c.l.b16 %v1693
        %v1790 = vunpack.c.l.b16 %v1694
        %v1791 = vunpack.c.l.b16 %v1695
        %v1792 = vunpack.c.l.b16 %v1696
        %v1793 = vunpack.c.l.b16 %v1697
        %v1794 = vunpack.c.l.b16 %v1698
        %v1795 = vunpack.c.l.b16 %v1699
        %v1796 = vunpack.c.l.b16 %v1700
        %v1797 = vunpack.c.l.b16 %v1701
        %v1798 = vpack.c.b16 %v1783, %v1782
        %v1799 = vpack.c.b16 %v1785, %v1784
        %v1800 = vpack.c.b16 %v1787, %v1786
        %v1801 = vpack.c.b16 %v1789, %v1788
        %v1802 = vpack.c.b16 %v1791, %v1790
        %v1803 = vpack.c.b16 %v1793, %v1792
        %v1804 = vpack.c.b16 %v1795, %v1794
        %v1805 = vpack.c.b16 %v1797, %v1796
        %1814 = vmatpush.bf16.msra.mxu0 %v1805
        %1815 = vmatpush.bf16.msra.mxu0 %v1804
        %1816 = vmatpush.bf16.msra.mxu0 %v1803
        %1817 = vmatpush.bf16.msra.mxu0 %v1802
        %1818 = vmatpush.bf16.msra.mxu0 %v1801
        %1819 = vmatpush.bf16.msra.mxu0 %v1800
        %1820 = vmatpush.bf16.msra.mxu0 %v1799
        %1821 = vmatpush.bf16.msra.mxu0 %v1798
        %1822 = vmatmul.bf16.gmra.mxu0 %v1734
        %v1823 = vpop.f32.mrf.mxu0
        %v1824 = vadd.f32 0.0, %v1823
        %v1825 = vpop.f32.mrf.mxu0
        %v1826 = vadd.f32 0.0, %v1825
        %1827 = vmatmul.bf16.gmra.mxu0 %v1735
        %v1828 = vpop.f32.mrf.mxu0
        %v1829 = vadd.f32 0.0, %v1828
        %v1830 = vpop.f32.mrf.mxu0
        %v1831 = vadd.f32 0.0, %v1830
        %1832 = vmatmul.bf16.gmra.mxu0 %v1736
        %v1833 = vpop.f32.mrf.mxu0
        %v1834 = vadd.f32 0.0, %v1833
        %v1835 = vpop.f32.mrf.mxu0
        %v1836 = vadd.f32 0.0, %v1835
        %1837 = vmatmul.bf16.gmra.mxu0 %v1737
        %v1838 = vpop.f32.mrf.mxu0
        %v1839 = vadd.f32 0.0, %v1838
        %v1840 = vpop.f32.mrf.mxu0
        %v1841 = vadd.f32 0.0, %v1840
        %1842 = vmatmul.bf16.gmra.mxu0 %v1738
        %v1843 = vpop.f32.mrf.mxu0
        %v1844 = vadd.f32 0.0, %v1843
        %v1845 = vpop.f32.mrf.mxu0
        %v1846 = vadd.f32 0.0, %v1845
        %1847 = vmatmul.bf16.gmra.mxu0 %v1739
        %v1848 = vpop.f32.mrf.mxu0
        %v1849 = vadd.f32 0.0, %v1848
        %v1850 = vpop.f32.mrf.mxu0
        %v1851 = vadd.f32 0.0, %v1850
        %1852 = vmatmul.bf16.gmra.mxu0 %v1740
        %v1853 = vpop.f32.mrf.mxu0
        %v1854 = vadd.f32 0.0, %v1853
        %v1855 = vpop.f32.mrf.mxu0
        %v1856 = vadd.f32 0.0, %v1855
        %1857 = vmatmul.bf16.gmra.mxu0 %v1741
        %v1858 = vpop.f32.mrf.mxu0
        %v1859 = vadd.f32 0.0, %v1858
        %v1860 = vpop.f32.mrf.mxu0
        %v1861 = vadd.f32 0.0, %v1860
        %1862 = vmatmul.bf16.gmra.mxu0 %v1742
        %v1863 = vpop.f32.mrf.mxu0
        %v1864 = vadd.f32 0.0, %v1863
        %v1865 = vpop.f32.mrf.mxu0
        %v1866 = vadd.f32 0.0, %v1865
        %1867 = vmatmul.bf16.gmra.mxu0 %v1743
        %v1868 = vpop.f32.mrf.mxu0
        %v1869 = vadd.f32 0.0, %v1868
        %v1870 = vpop.f32.mrf.mxu0
        %v1871 = vadd.f32 0.0, %v1870
        %1872 = vmatmul.bf16.gmra.mxu0 %v1744
        %v1873 = vpop.f32.mrf.mxu0
        %v1874 = vadd.f32 0.0, %v1873
        %v1875 = vpop.f32.mrf.mxu0
        %v1876 = vadd.f32 0.0, %v1875
        %1877 = vmatmul.bf16.gmra.mxu0 %v1745
        %v1878 = vpop.f32.mrf.mxu0
        %v1879 = vadd.f32 0.0, %v1878
        %v1880 = vpop.f32.mrf.mxu0
        %v1881 = vadd.f32 0.0, %v1880
        %1882 = vmatmul.bf16.gmra.mxu0 %v1746
        %v1883 = vpop.f32.mrf.mxu0
        %v1884 = vadd.f32 0.0, %v1883
        %v1885 = vpop.f32.mrf.mxu0
        %v1886 = vadd.f32 0.0, %v1885
        %1887 = vmatmul.bf16.gmra.mxu0 %v1747
        %v1888 = vpop.f32.mrf.mxu0
        %v1889 = vadd.f32 0.0, %v1888
        %v1890 = vpop.f32.mrf.mxu0
        %v1891 = vadd.f32 0.0, %v1890
        %1892 = vmatmul.bf16.gmra.mxu0 %v1748
        %v1893 = vpop.f32.mrf.mxu0
        %v1894 = vadd.f32 0.0, %v1893
        %v1895 = vpop.f32.mrf.mxu0
        %v1896 = vadd.f32 0.0, %v1895
        %1897 = vmatmul.bf16.gmra.mxu0 %v1749
        %v1898 = vpop.f32.mrf.mxu0
        %v1899 = vadd.f32 0.0, %v1898
        %v1900 = vpop.f32.mrf.mxu0
        %v1901 = vadd.f32 0.0, %v1900
        %1902 = vdwg.mxu0
        %v1935 = vunpack.c.l.b16 %v1234
        %v1936 = vunpack.c.l.b16 %v1235
        %v1937 = vunpack.c.l.b16 %v1236
        %v1938 = vunpack.c.l.b16 %v1237
        %v1939 = vunpack.c.l.b16 %v1238
        %v1940 = vunpack.c.l.b16 %v1239
        %v1941 = vunpack.c.l.b16 %v1240
        %v1942 = vunpack.c.l.b16 %v1241
        %v1943 = vunpack.c.l.b16 %v1242
        %v1944 = vunpack.c.l.b16 %v1243
        %v1945 = vunpack.c.l.b16 %v1244
        %v1946 = vunpack.c.l.b16 %v1245
        %v1947 = vunpack.c.l.b16 %v1246
        %v1948 = vunpack.c.l.b16 %v1247
        %v1949 = vunpack.c.l.b16 %v1248
        %v1950 = vunpack.c.l.b16 %v1249
        %v1951 = vunpack.c.l.b16 %v1250
        %v1952 = vunpack.c.l.b16 %v1251
        %v1953 = vunpack.c.l.b16 %v1252
        %v1954 = vunpack.c.l.b16 %v1253
        %v1955 = vunpack.c.l.b16 %v1254
        %v1956 = vunpack.c.l.b16 %v1255
        %v1957 = vunpack.c.l.b16 %v1256
        %v1958 = vunpack.c.l.b16 %v1257
        %v1959 = vunpack.c.l.b16 %v1258
        %v1960 = vunpack.c.l.b16 %v1259
        %v1961 = vunpack.c.l.b16 %v1260
        %v1962 = vunpack.c.l.b16 %v1261
        %v1963 = vunpack.c.l.b16 %v1262
        %v1964 = vunpack.c.l.b16 %v1263
        %v1965 = vunpack.c.l.b16 %v1264
        %v1966 = vunpack.c.l.b16 %v1265
        %v1967 = vpack.c.b16 %v1936, %v1935
        %v1968 = vpack.c.b16 %v1938, %v1937
        %v1969 = vpack.c.b16 %v1940, %v1939
        %v1970 = vpack.c.b16 %v1942, %v1941
        %v1971 = vpack.c.b16 %v1944, %v1943
        %v1972 = vpack.c.b16 %v1946, %v1945
        %v1973 = vpack.c.b16 %v1948, %v1947
        %v1974 = vpack.c.b16 %v1950, %v1949
        %v1975 = vpack.c.b16 %v1952, %v1951
        %v1976 = vpack.c.b16 %v1954, %v1953
        %v1977 = vpack.c.b16 %v1956, %v1955
        %v1978 = vpack.c.b16 %v1958, %v1957
        %v1979 = vpack.c.b16 %v1960, %v1959
        %v1980 = vpack.c.b16 %v1962, %v1961
        %v1981 = vpack.c.b16 %v1964, %v1963
        %v1982 = vpack.c.b16 %v1966, %v1965
        %v2015 = vunpack.c.l.b16 %v1266
        %v2016 = vunpack.c.l.b16 %v1267
        %v2017 = vunpack.c.l.b16 %v1268
        %v2018 = vunpack.c.l.b16 %v1269
        %v2019 = vunpack.c.l.b16 %v1270
        %v2020 = vunpack.c.l.b16 %v1271
        %v2021 = vunpack.c.l.b16 %v1272
        %v2022 = vunpack.c.l.b16 %v1273
        %v2023 = vunpack.c.l.b16 %v1274
        %v2024 = vunpack.c.l.b16 %v1275
        %v2025 = vunpack.c.l.b16 %v1276
        %v2026 = vunpack.c.l.b16 %v1277
        %v2027 = vunpack.c.l.b16 %v1278
        %v2028 = vunpack.c.l.b16 %v1279
        %v2029 = vunpack.c.l.b16 %v1280
        %v2030 = vunpack.c.l.b16 %v1281
        %v2031 = vpack.c.b16 %v2016, %v2015
        %v2032 = vpack.c.b16 %v2018, %v2017
        %v2033 = vpack.c.b16 %v2020, %v2019
        %v2034 = vpack.c.b16 %v2022, %v2021
        %v2035 = vpack.c.b16 %v2024, %v2023
        %v2036 = vpack.c.b16 %v2026, %v2025
        %v2037 = vpack.c.b16 %v2028, %v2027
        %v2038 = vpack.c.b16 %v2030, %v2029
        %2047 = vmatpush.bf16.msra.mxu0 %v2038
        %2048 = vmatpush.bf16.msra.mxu0 %v2037
        %2049 = vmatpush.bf16.msra.mxu0 %v2036
        %2050 = vmatpush.bf16.msra.mxu0 %v2035
        %2051 = vmatpush.bf16.msra.mxu0 %v2034
        %2052 = vmatpush.bf16.msra.mxu0 %v2033
        %2053 = vmatpush.bf16.msra.mxu0 %v2032
        %2054 = vmatpush.bf16.msra.mxu0 %v2031
        %2055 = vmatmul.bf16.gmra.mxu0 %v1967
        %v2056 = vpop.f32.mrf.mxu0
        %v2057 = vadd.f32 %v1824, %v2056
        %v2058 = vpop.f32.mrf.mxu0
        %v2059 = vadd.f32 %v1826, %v2058
        %2060 = vmatmul.bf16.gmra.mxu0 %v1968
        %v2061 = vpop.f32.mrf.mxu0
        %v2062 = vadd.f32 %v1829, %v2061
        %v2063 = vpop.f32.mrf.mxu0
        %v2064 = vadd.f32 %v1831, %v2063
        %2065 = vmatmul.bf16.gmra.mxu0 %v1969
        %v2066 = vpop.f32.mrf.mxu0
        %v2067 = vadd.f32 %v1834, %v2066
        %v2068 = vpop.f32.mrf.mxu0
        %v2069 = vadd.f32 %v1836, %v2068
        %2070 = vmatmul.bf16.gmra.mxu0 %v1970
        %v2071 = vpop.f32.mrf.mxu0
        %v2072 = vadd.f32 %v1839, %v2071
        %v2073 = vpop.f32.mrf.mxu0
        %v2074 = vadd.f32 %v1841, %v2073
        %2075 = vmatmul.bf16.gmra.mxu0 %v1971
        %v2076 = vpop.f32.mrf.mxu0
        %v2077 = vadd.f32 %v1844, %v2076
        %v2078 = vpop.f32.mrf.mxu0
        %v2079 = vadd.f32 %v1846, %v2078
        %2080 = vmatmul.bf16.gmra.mxu0 %v1972
        %v2081 = vpop.f32.mrf.mxu0
        %v2082 = vadd.f32 %v1849, %v2081
        %v2083 = vpop.f32.mrf.mxu0
        %v2084 = vadd.f32 %v1851, %v2083
        %2085 = vmatmul.bf16.gmra.mxu0 %v1973
        %v2086 = vpop.f32.mrf.mxu0
        %v2087 = vadd.f32 %v1854, %v2086
        %v2088 = vpop.f32.mrf.mxu0
        %v2089 = vadd.f32 %v1856, %v2088
        %2090 = vmatmul.bf16.gmra.mxu0 %v1974
        %v2091 = vpop.f32.mrf.mxu0
        %v2092 = vadd.f32 %v1859, %v2091
        %v2093 = vpop.f32.mrf.mxu0
        %v2094 = vadd.f32 %v1861, %v2093
        %2095 = vmatmul.bf16.gmra.mxu0 %v1975
        %v2096 = vpop.f32.mrf.mxu0
        %v2097 = vadd.f32 %v1864, %v2096
        %v2098 = vpop.f32.mrf.mxu0
        %v2099 = vadd.f32 %v1866, %v2098
        %2100 = vmatmul.bf16.gmra.mxu0 %v1976
        %v2101 = vpop.f32.mrf.mxu0
        %v2102 = vadd.f32 %v1869, %v2101
        %v2103 = vpop.f32.mrf.mxu0
        %v2104 = vadd.f32 %v1871, %v2103
        %2105 = vmatmul.bf16.gmra.mxu0 %v1977
        %v2106 = vpop.f32.mrf.mxu0
        %v2107 = vadd.f32 %v1874, %v2106
        %v2108 = vpop.f32.mrf.mxu0
        %v2109 = vadd.f32 %v1876, %v2108
        %2110 = vmatmul.bf16.gmra.mxu0 %v1978
        %v2111 = vpop.f32.mrf.mxu0
        %v2112 = vadd.f32 %v1879, %v2111
        %v2113 = vpop.f32.mrf.mxu0
        %v2114 = vadd.f32 %v1881, %v2113
        %2115 = vmatmul.bf16.gmra.mxu0 %v1979
        %v2116 = vpop.f32.mrf.mxu0
        %v2117 = vadd.f32 %v1884, %v2116
        %v2118 = vpop.f32.mrf.mxu0
        %v2119 = vadd.f32 %v1886, %v2118
        %2120 = vmatmul.bf16.gmra.mxu0 %v1980
        %v2121 = vpop.f32.mrf.mxu0
        %v2122 = vadd.f32 %v1889, %v2121
        %v2123 = vpop.f32.mrf.mxu0
        %v2124 = vadd.f32 %v1891, %v2123
        %2125 = vmatmul.bf16.gmra.mxu0 %v1981
        %v2126 = vpop.f32.mrf.mxu0
        %v2127 = vadd.f32 %v1894, %v2126
        %v2128 = vpop.f32.mrf.mxu0
        %v2129 = vadd.f32 %v1896, %v2128
        %2130 = vmatmul.bf16.gmra.mxu0 %v1982
        %v2131 = vpop.f32.mrf.mxu0
        %v2132 = vadd.f32 %v1899, %v2131
        %v2133 = vpop.f32.mrf.mxu0
        %v2134 = vadd.f32 %v1901, %v2133
        %2135 = vdwg.mxu0
        %v2136 = vld [vmem:[#allocation3] sm:$0xe]
        %v2137 = vld [vmem:[#allocation3 + $0xc] sm:$0xe]
        %v2138 = vld [vmem:[#allocation3 + $0x18] sm:$0xe]
        %v2139 = vld [vmem:[#allocation3 + $0x24] sm:$0xe]
        %v2140 = vld [vmem:[#allocation3 + $0x30] sm:$0xe]
        %v2141 = vld [vmem:[#allocation3 + $0x3c] sm:$0xe]
        %v2142 = vld [vmem:[#allocation3 + $0x48] sm:$0xe]
        %v2143 = vld [vmem:[#allocation3 + $0x54] sm:$0xe]
        %v2144 = vld [vmem:[#allocation3 + $0x60] sm:$0xe]
        %v2145 = vld [vmem:[#allocation3 + $0x6c] sm:$0xe]
        %v2146 = vld [vmem:[#allocation3 + $0x78] sm:$0xe]
        %v2147 = vld [vmem:[#allocation3 + $0x84] sm:$0xe]
        %v2148 = vld [vmem:[#allocation3 + $0x90] sm:$0xe]
        %v2149 = vld [vmem:[#allocation3 + $0x9c] sm:$0xe]
        %v2150 = vld [vmem:[#allocation3 + $0xa8] sm:$0xe]
        %v2151 = vld [vmem:[#allocation3 + $0xb4] sm:$0xe]
        %vm2184 = vcmask 1042432
        %vm2185 = vcmask 1046532
        %vm2186 = vmor %vm2184, %vm2185
        %v2187 = vrot.slane %v2136, 5
        %v2188 = vrot.slane %v2187, 4
        %v2189 = vrot.slane %v1235, 5
        %v2190 = vsel %vm2186, %v2188, %v2189
        %v2191 = vrot.slane %v2189, 4
        %v2192 = vrot.slane %v1282, 5
        %v2193 = vsel %vm2186, %v2191, %v2192
        %v2194 = vrot.slane %v2137, 5
        %v2195 = vrot.slane %v2194, 4
        %v2196 = vrot.slane %v1237, 5
        %v2197 = vsel %vm2186, %v2195, %v2196
        %v2198 = vrot.slane %v2196, 4
        %v2199 = vrot.slane %v1283, 5
        %v2200 = vsel %vm2186, %v2198, %v2199
        %v2201 = vrot.slane %v2138, 5
        %v2202 = vrot.slane %v2201, 4
        %v2203 = vrot.slane %v1239, 5
        %v2204 = vsel %vm2186, %v2202, %v2203
        %v2205 = vrot.slane %v2203, 4
        %v2206 = vrot.slane %v1284, 5
        %v2207 = vsel %vm2186, %v2205, %v2206
        %v2208 = vrot.slane %v2139, 5
        %v2209 = vrot.slane %v2208, 4
        %v2210 = vrot.slane %v1241, 5
        %v2211 = vsel %vm2186, %v2209, %v2210
        %v2212 = vrot.slane %v2210, 4
        %v2213 = vrot.slane %v1285, 5
        %v2214 = vsel %vm2186, %v2212, %v2213
        %v2215 = vrot.slane %v2140, 5
        %v2216 = vrot.slane %v2215, 4
        %v2217 = vrot.slane %v1243, 5
        %v2218 = vsel %vm2186, %v2216, %v2217
        %v2219 = vrot.slane %v2217, 4
        %v2220 = vrot.slane %v1286, 5
        %v2221 = vsel %vm2186, %v2219, %v2220
        %v2222 = vrot.slane %v2141, 5
        %v2223 = vrot.slane %v2222, 4
        %v2224 = vrot.slane %v1245, 5
        %v2225 = vsel %vm2186, %v2223, %v2224
        %v2226 = vrot.slane %v2224, 4
        %v2227 = vrot.slane %v1287, 5
        %v2228 = vsel %vm2186, %v2226, %v2227
        %v2229 = vrot.slane %v2142, 5
        %v2230 = vrot.slane %v2229, 4
        %v2231 = vrot.slane %v1247, 5
        %v2232 = vsel %vm2186, %v2230, %v2231
        %v2233 = vrot.slane %v2231, 4
        %v2234 = vrot.slane %v1288, 5
        %v2235 = vsel %vm2186, %v2233, %v2234
        %v2236 = vrot.slane %v2143, 5
        %v2237 = vrot.slane %v2236, 4
        %v2238 = vrot.slane %v1249, 5
        %v2239 = vsel %vm2186, %v2237, %v2238
        %v2240 = vrot.slane %v2238, 4
        %v2241 = vrot.slane %v1289, 5
        %v2242 = vsel %vm2186, %v2240, %v2241
        %v2243 = vrot.slane %v2144, 5
        %v2244 = vrot.slane %v2243, 4
        %v2245 = vrot.slane %v1251, 5
        %v2246 = vsel %vm2186, %v2244, %v2245
        %v2247 = vrot.slane %v2245, 4
        %v2248 = vrot.slane %v1290, 5
        %v2249 = vsel %vm2186, %v2247, %v2248
        %v2250 = vrot.slane %v2145, 5
        %v2251 = vrot.slane %v2250, 4
        %v2252 = vrot.slane %v1253, 5
        %v2253 = vsel %vm2186, %v2251, %v2252
        %v2254 = vrot.slane %v2252, 4
        %v2255 = vrot.slane %v1291, 5
        %v2256 = vsel %vm2186, %v2254, %v2255
        %v2257 = vrot.slane %v2146, 5
        %v2258 = vrot.slane %v2257, 4
        %v2259 = vrot.slane %v1255, 5
        %v2260 = vsel %vm2186, %v2258, %v2259
        %v2261 = vrot.slane %v2259, 4
        %v2262 = vrot.slane %v1292, 5
        %v2263 = vsel %vm2186, %v2261, %v2262
        %v2264 = vrot.slane %v2147, 5
        %v2265 = vrot.slane %v2264, 4
        %v2266 = vrot.slane %v1257, 5
        %v2267 = vsel %vm2186, %v2265, %v2266
        %v2268 = vrot.slane %v2266, 4
        %v2269 = vrot.slane %v1293, 5
        %v2270 = vsel %vm2186, %v2268, %v2269
        %v2271 = vrot.slane %v2148, 5
        %v2272 = vrot.slane %v2271, 4
        %v2273 = vrot.slane %v1259, 5
        %v2274 = vsel %vm2186, %v2272, %v2273
        %v2275 = vrot.slane %v2273, 4
        %v2276 = vrot.slane %v1294, 5
        %v2277 = vsel %vm2186, %v2275, %v2276
        %v2278 = vrot.slane %v2149, 5
        %v2279 = vrot.slane %v2278, 4
        %v2280 = vrot.slane %v1261, 5
        %v2281 = vsel %vm2186, %v2279, %v2280
        %v2282 = vrot.slane %v2280, 4
        %v2283 = vrot.slane %v1295, 5
        %v2284 = vsel %vm2186, %v2282, %v2283
        %v2285 = vrot.slane %v2150, 5
        %v2286 = vrot.slane %v2285, 4
        %v2287 = vrot.slane %v1263, 5
        %v2288 = vsel %vm2186, %v2286, %v2287
        %v2289 = vrot.slane %v2287, 4
        %v2290 = vrot.slane %v1296, 5
        %v2291 = vsel %vm2186, %v2289, %v2290
        %v2292 = vrot.slane %v2151, 5
        %v2293 = vrot.slane %v2292, 4
        %v2294 = vrot.slane %v1265, 5
        %v2295 = vsel %vm2186, %v2293, %v2294
        %v2296 = vrot.slane %v2294, 4
        %v2297 = vrot.slane %v1297, 5
        %v2298 = vsel %vm2186, %v2296, %v2297
        %s2299 = scalar_lea.vmem [#allocation8], 128
        %v2300 = vld [vmem:[%s2299] sm:$0xf]
        %v2301 = vld [vmem:[%s2299 + $0x4] sm:$0xf]
        %v2302 = vld [vmem:[%s2299 + $0x8] sm:$0xf]
        %v2303 = vld [vmem:[%s2299 + $0xc] sm:$0xf]
        %v2304 = vld [vmem:[%s2299 + $0x10] sm:$0xf]
        %v2305 = vld [vmem:[%s2299 + $0x14] sm:$0xf]
        %v2306 = vld [vmem:[%s2299 + $0x18] sm:$0xf]
        %v2307 = vld [vmem:[%s2299 + $0x1c] sm:$0xf]
        %v2308 = vld [vmem:[%s2299 + $0x20] sm:$0xf]
        %v2309 = vld [vmem:[%s2299 + $0x24] sm:$0xf]
        %v2310 = vld [vmem:[%s2299 + $0x28] sm:$0xf]
        %v2311 = vld [vmem:[%s2299 + $0x2c] sm:$0xf]
        %v2312 = vld [vmem:[%s2299 + $0x30] sm:$0xf]
        %v2313 = vld [vmem:[%s2299 + $0x34] sm:$0xf]
        %v2314 = vld [vmem:[%s2299 + $0x38] sm:$0xf]
        %v2315 = vld [vmem:[%s2299 + $0x3c] sm:$0xf]
        %v2316 = vunpack.c.l.b16 %v2190
        %v2317 = vunpack.c.l.b16 %v2193
        %v2318 = vunpack.c.l.b16 %v2197
        %v2319 = vunpack.c.l.b16 %v2200
        %v2320 = vunpack.c.l.b16 %v2204
        %v2321 = vunpack.c.l.b16 %v2207
        %v2322 = vunpack.c.l.b16 %v2211
        %v2323 = vunpack.c.l.b16 %v2214
        %v2324 = vunpack.c.l.b16 %v2218
        %v2325 = vunpack.c.l.b16 %v2221
        %v2326 = vunpack.c.l.b16 %v2225
        %v2327 = vunpack.c.l.b16 %v2228
        %v2328 = vunpack.c.l.b16 %v2232
        %v2329 = vunpack.c.l.b16 %v2235
        %v2330 = vunpack.c.l.b16 %v2239
        %v2331 = vunpack.c.l.b16 %v2242
        %v2332 = vunpack.c.l.b16 %v2246
        %v2333 = vunpack.c.l.b16 %v2249
        %v2334 = vunpack.c.l.b16 %v2253
        %v2335 = vunpack.c.l.b16 %v2256
        %v2336 = vunpack.c.l.b16 %v2260
        %v2337 = vunpack.c.l.b16 %v2263
        %v2338 = vunpack.c.l.b16 %v2267
        %v2339 = vunpack.c.l.b16 %v2270
        %v2340 = vunpack.c.l.b16 %v2274
        %v2341 = vunpack.c.l.b16 %v2277
        %v2342 = vunpack.c.l.b16 %v2281
        %v2343 = vunpack.c.l.b16 %v2284
        %v2344 = vunpack.c.l.b16 %v2288
        %v2345 = vunpack.c.l.b16 %v2291
        %v2346 = vunpack.c.l.b16 %v2295
        %v2347 = vunpack.c.l.b16 %v2298
        %v2348 = vpack.c.b16 %v2317, %v2316
        %v2349 = vpack.c.b16 %v2319, %v2318
        %v2350 = vpack.c.b16 %v2321, %v2320
        %v2351 = vpack.c.b16 %v2323, %v2322
        %v2352 = vpack.c.b16 %v2325, %v2324
        %v2353 = vpack.c.b16 %v2327, %v2326
        %v2354 = vpack.c.b16 %v2329, %v2328
        %v2355 = vpack.c.b16 %v2331, %v2330
        %v2356 = vpack.c.b16 %v2333, %v2332
        %v2357 = vpack.c.b16 %v2335, %v2334
        %v2358 = vpack.c.b16 %v2337, %v2336
        %v2359 = vpack.c.b16 %v2339, %v2338
        %v2360 = vpack.c.b16 %v2341, %v2340
        %v2361 = vpack.c.b16 %v2343, %v2342
        %v2362 = vpack.c.b16 %v2345, %v2344
        %v2363 = vpack.c.b16 %v2347, %v2346
        %v2396 = vunpack.c.l.b16 %v2300
        %v2397 = vunpack.c.l.b16 %v2301
        %v2398 = vunpack.c.l.b16 %v2302
        %v2399 = vunpack.c.l.b16 %v2303
        %v2400 = vunpack.c.l.b16 %v2304
        %v2401 = vunpack.c.l.b16 %v2305
        %v2402 = vunpack.c.l.b16 %v2306
        %v2403 = vunpack.c.l.b16 %v2307
        %v2404 = vunpack.c.l.b16 %v2308
        %v2405 = vunpack.c.l.b16 %v2309
        %v2406 = vunpack.c.l.b16 %v2310
        %v2407 = vunpack.c.l.b16 %v2311
        %v2408 = vunpack.c.l.b16 %v2312
        %v2409 = vunpack.c.l.b16 %v2313
        %v2410 = vunpack.c.l.b16 %v2314
        %v2411 = vunpack.c.l.b16 %v2315
        %v2412 = vpack.c.b16 %v2397, %v2396
        %v2413 = vpack.c.b16 %v2399, %v2398
        %v2414 = vpack.c.b16 %v2401, %v2400
        %v2415 = vpack.c.b16 %v2403, %v2402
        %v2416 = vpack.c.b16 %v2405, %v2404
        %v2417 = vpack.c.b16 %v2407, %v2406
        %v2418 = vpack.c.b16 %v2409, %v2408
        %v2419 = vpack.c.b16 %v2411, %v2410
        %2428 = vmatpush.bf16.msra.mxu0 %v2419
        %2429 = vmatpush.bf16.msra.mxu0 %v2418
        %2430 = vmatpush.bf16.msra.mxu0 %v2417
        %2431 = vmatpush.bf16.msra.mxu0 %v2416
        %2432 = vmatpush.bf16.msra.mxu0 %v2415
        %2433 = vmatpush.bf16.msra.mxu0 %v2414
        %2434 = vmatpush.bf16.msra.mxu0 %v2413
        %2435 = vmatpush.bf16.msra.mxu0 %v2412
        %2436 = vmatmul.bf16.gmra.mxu0 %v2348
        %v2437 = vpop.f32.mrf.mxu0
        %v2438 = vadd.f32 0.0, %v2437
        %v2439 = vpop.f32.mrf.mxu0
        %v2440 = vadd.f32 0.0, %v2439
        %2441 = vmatmul.bf16.gmra.mxu0 %v2349
        %v2442 = vpop.f32.mrf.mxu0
        %v2443 = vadd.f32 0.0, %v2442
        %v2444 = vpop.f32.mrf.mxu0
        %v2445 = vadd.f32 0.0, %v2444
        %2446 = vmatmul.bf16.gmra.mxu0 %v2350
        %v2447 = vpop.f32.mrf.mxu0
        %v2448 = vadd.f32 0.0, %v2447
        %v2449 = vpop.f32.mrf.mxu0
        %v2450 = vadd.f32 0.0, %v2449
        %2451 = vmatmul.bf16.gmra.mxu0 %v2351
        %v2452 = vpop.f32.mrf.mxu0
        %v2453 = vadd.f32 0.0, %v2452
        %v2454 = vpop.f32.mrf.mxu0
        %v2455 = vadd.f32 0.0, %v2454
        %2456 = vmatmul.bf16.gmra.mxu0 %v2352
        %v2457 = vpop.f32.mrf.mxu0
        %v2458 = vadd.f32 0.0, %v2457
        %v2459 = vpop.f32.mrf.mxu0
        %v2460 = vadd.f32 0.0, %v2459
        %2461 = vmatmul.bf16.gmra.mxu0 %v2353
        %v2462 = vpop.f32.mrf.mxu0
        %v2463 = vadd.f32 0.0, %v2462
        %v2464 = vpop.f32.mrf.mxu0
        %v2465 = vadd.f32 0.0, %v2464
        %2466 = vmatmul.bf16.gmra.mxu0 %v2354
        %v2467 = vpop.f32.mrf.mxu0
        %v2468 = vadd.f32 0.0, %v2467
        %v2469 = vpop.f32.mrf.mxu0
        %v2470 = vadd.f32 0.0, %v2469
        %2471 = vmatmul.bf16.gmra.mxu0 %v2355
        %v2472 = vpop.f32.mrf.mxu0
        %v2473 = vadd.f32 0.0, %v2472
        %v2474 = vpop.f32.mrf.mxu0
        %v2475 = vadd.f32 0.0, %v2474
        %2476 = vmatmul.bf16.gmra.mxu0 %v2356
        %v2477 = vpop.f32.mrf.mxu0
        %v2478 = vadd.f32 0.0, %v2477
        %v2479 = vpop.f32.mrf.mxu0
        %v2480 = vadd.f32 0.0, %v2479
        %2481 = vmatmul.bf16.gmra.mxu0 %v2357
        %v2482 = vpop.f32.mrf.mxu0
        %v2483 = vadd.f32 0.0, %v2482
        %v2484 = vpop.f32.mrf.mxu0
        %v2485 = vadd.f32 0.0, %v2484
        %2486 = vmatmul.bf16.gmra.mxu0 %v2358
        %v2487 = vpop.f32.mrf.mxu0
        %v2488 = vadd.f32 0.0, %v2487
        %v2489 = vpop.f32.mrf.mxu0
        %v2490 = vadd.f32 0.0, %v2489
        %2491 = vmatmul.bf16.gmra.mxu0 %v2359
        %v2492 = vpop.f32.mrf.mxu0
        %v2493 = vadd.f32 0.0, %v2492
        %v2494 = vpop.f32.mrf.mxu0
        %v2495 = vadd.f32 0.0, %v2494
        %2496 = vmatmul.bf16.gmra.mxu0 %v2360
        %v2497 = vpop.f32.mrf.mxu0
        %v2498 = vadd.f32 0.0, %v2497
        %v2499 = vpop.f32.mrf.mxu0
        %v2500 = vadd.f32 0.0, %v2499
        %2501 = vmatmul.bf16.gmra.mxu0 %v2361
        %v2502 = vpop.f32.mrf.mxu0
        %v2503 = vadd.f32 0.0, %v2502
        %v2504 = vpop.f32.mrf.mxu0
        %v2505 = vadd.f32 0.0, %v2504
        %2506 = vmatmul.bf16.gmra.mxu0 %v2362
        %v2507 = vpop.f32.mrf.mxu0
        %v2508 = vadd.f32 0.0, %v2507
        %v2509 = vpop.f32.mrf.mxu0
        %v2510 = vadd.f32 0.0, %v2509
        %2511 = vmatmul.bf16.gmra.mxu0 %v2363
        %v2512 = vpop.f32.mrf.mxu0
        %v2513 = vadd.f32 0.0, %v2512
        %v2514 = vpop.f32.mrf.mxu0
        %v2515 = vadd.f32 0.0, %v2514
        %2516 = vdwg.mxu0
        %v2517 = vadd.f32 %v2057, %v2438
        %v2518 = vadd.f32 %v2059, %v2440
        %v2519 = vadd.f32 %v2062, %v2443
        %v2520 = vadd.f32 %v2064, %v2445
        %v2521 = vadd.f32 %v2067, %v2448
        %v2522 = vadd.f32 %v2069, %v2450
        %v2523 = vadd.f32 %v2072, %v2453
        %v2524 = vadd.f32 %v2074, %v2455
        %v2525 = vadd.f32 %v2077, %v2458
        %v2526 = vadd.f32 %v2079, %v2460
        %v2527 = vadd.f32 %v2082, %v2463
        %v2528 = vadd.f32 %v2084, %v2465
        %v2529 = vadd.f32 %v2087, %v2468
        %v2530 = vadd.f32 %v2089, %v2470
        %v2531 = vadd.f32 %v2092, %v2473
        %v2532 = vadd.f32 %v2094, %v2475
        %v2533 = vadd.f32 %v2097, %v2478
        %v2534 = vadd.f32 %v2099, %v2480
        %v2535 = vadd.f32 %v2102, %v2483
        %v2536 = vadd.f32 %v2104, %v2485
        %v2537 = vadd.f32 %v2107, %v2488
        %v2538 = vadd.f32 %v2109, %v2490
        %v2539 = vadd.f32 %v2112, %v2493
        %v2540 = vadd.f32 %v2114, %v2495
        %v2541 = vadd.f32 %v2117, %v2498
        %v2542 = vadd.f32 %v2119, %v2500
        %v2543 = vadd.f32 %v2122, %v2503
        %v2544 = vadd.f32 %v2124, %v2505
        %v2545 = vadd.f32 %v2127, %v2508
        %v2546 = vadd.f32 %v2129, %v2510
        %v2547 = vadd.f32 %v2132, %v2513
        %v2548 = vadd.f32 %v2134, %v2515
        %s2549 = scalar_lea.vmem [#allocation3], 12
        %v2550 = vld [vmem:[%s2549] sm:$0xf]
        %v2551 = vld [vmem:[%s2549 + $0x4] sm:$0xf]
        %v2552 = vld [vmem:[%s2549 + $0xc] sm:$0xf]
        %v2553 = vld [vmem:[%s2549 + $0x10] sm:$0xf]
        %v2554 = vld [vmem:[%s2549 + $0x18] sm:$0xf]
        %v2555 = vld [vmem:[%s2549 + $0x1c] sm:$0xf]
        %v2556 = vld [vmem:[%s2549 + $0x24] sm:$0xf]
        %v2557 = vld [vmem:[%s2549 + $0x28] sm:$0xf]
        %v2558 = vld [vmem:[%s2549 + $0x30] sm:$0xf]
        %v2559 = vld [vmem:[%s2549 + $0x34] sm:$0xf]
        %v2560 = vld [vmem:[%s2549 + $0x3c] sm:$0xf]
        %v2561 = vld [vmem:[%s2549 + $0x40] sm:$0xf]
        %v2562 = vld [vmem:[%s2549 + $0x48] sm:$0xf]
        %v2563 = vld [vmem:[%s2549 + $0x4c] sm:$0xf]
        %v2564 = vld [vmem:[%s2549 + $0x54] sm:$0xf]
        %v2565 = vld [vmem:[%s2549 + $0x58] sm:$0xf]
        %v2566 = vld [vmem:[%s2549 + $0x60] sm:$0xf]
        %v2567 = vld [vmem:[%s2549 + $0x64] sm:$0xf]
        %v2568 = vld [vmem:[%s2549 + $0x6c] sm:$0xf]
        %v2569 = vld [vmem:[%s2549 + $0x70] sm:$0xf]
        %v2570 = vld [vmem:[%s2549 + $0x78] sm:$0xf]
        %v2571 = vld [vmem:[%s2549 + $0x7c] sm:$0xf]
        %v2572 = vld [vmem:[%s2549 + $0x84] sm:$0xf]
        %v2573 = vld [vmem:[%s2549 + $0x88] sm:$0xf]
        %v2574 = vld [vmem:[%s2549 + $0x90] sm:$0xf]
        %v2575 = vld [vmem:[%s2549 + $0x94] sm:$0xf]
        %v2576 = vld [vmem:[%s2549 + $0x9c] sm:$0xf]
        %v2577 = vld [vmem:[%s2549 + $0xa0] sm:$0xf]
        %v2578 = vld [vmem:[%s2549 + $0xa8] sm:$0xf]
        %v2579 = vld [vmem:[%s2549 + $0xac] sm:$0xf]
        %v2580 = vld [vmem:[%s2549 + $0xb4] sm:$0xf]
        %v2581 = vld [vmem:[%s2549 + $0xb8] sm:$0xf]
        %s2582 = scalar_lea.vmem [#allocation8], 192
        %v2583 = vld [vmem:[%s2582] sm:$0xf]
        %v2584 = vld [vmem:[%s2582 + $0x4] sm:$0xf]
        %v2585 = vld [vmem:[%s2582 + $0x8] sm:$0xf]
        %v2586 = vld [vmem:[%s2582 + $0xc] sm:$0xf]
        %v2587 = vld [vmem:[%s2582 + $0x10] sm:$0xf]
        %v2588 = vld [vmem:[%s2582 + $0x14] sm:$0xf]
        %v2589 = vld [vmem:[%s2582 + $0x18] sm:$0xf]
        %v2590 = vld [vmem:[%s2582 + $0x1c] sm:$0xf]
        %v2591 = vld [vmem:[%s2582 + $0x20] sm:$0xf]
        %v2592 = vld [vmem:[%s2582 + $0x24] sm:$0xf]
        %v2593 = vld [vmem:[%s2582 + $0x28] sm:$0xf]
        %v2594 = vld [vmem:[%s2582 + $0x2c] sm:$0xf]
        %v2595 = vld [vmem:[%s2582 + $0x30] sm:$0xf]
        %v2596 = vld [vmem:[%s2582 + $0x34] sm:$0xf]
        %v2597 = vld [vmem:[%s2582 + $0x38] sm:$0xf]
        %v2598 = vld [vmem:[%s2582 + $0x3c] sm:$0xf]
        %v2631 = vunpack.c.l.b16 %v2550
        %v2632 = vunpack.c.l.b16 %v2551
        %v2633 = vunpack.c.l.b16 %v2552
        %v2634 = vunpack.c.l.b16 %v2553
        %v2635 = vunpack.c.l.b16 %v2554
        %v2636 = vunpack.c.l.b16 %v2555
        %v2637 = vunpack.c.l.b16 %v2556
        %v2638 = vunpack.c.l.b16 %v2557
        %v2639 = vunpack.c.l.b16 %v2558
        %v2640 = vunpack.c.l.b16 %v2559
        %v2641 = vunpack.c.l.b16 %v2560
        %v2642 = vunpack.c.l.b16 %v2561
        %v2643 = vunpack.c.l.b16 %v2562
        %v2644 = vunpack.c.l.b16 %v2563
        %v2645 = vunpack.c.l.b16 %v2564
        %v2646 = vunpack.c.l.b16 %v2565
        %v2647 = vunpack.c.l.b16 %v2566
        %v2648 = vunpack.c.l.b16 %v2567
        %v2649 = vunpack.c.l.b16 %v2568
        %v2650 = vunpack.c.l.b16 %v2569
        %v2651 = vunpack.c.l.b16 %v2570
        %v2652 = vunpack.c.l.b16 %v2571
        %v2653 = vunpack.c.l.b16 %v2572
        %v2654 = vunpack.c.l.b16 %v2573
        %v2655 = vunpack.c.l.b16 %v2574
        %v2656 = vunpack.c.l.b16 %v2575
        %v2657 = vunpack.c.l.b16 %v2576
        %v2658 = vunpack.c.l.b16 %v2577
        %v2659 = vunpack.c.l.b16 %v2578
        %v2660 = vunpack.c.l.b16 %v2579
        %v2661 = vunpack.c.l.b16 %v2580
        %v2662 = vunpack.c.l.b16 %v2581
        %v2663 = vpack.c.b16 %v2632, %v2631
        %v2664 = vpack.c.b16 %v2634, %v2633
        %v2665 = vpack.c.b16 %v2636, %v2635
        %v2666 = vpack.c.b16 %v2638, %v2637
        %v2667 = vpack.c.b16 %v2640, %v2639
        %v2668 = vpack.c.b16 %v2642, %v2641
        %v2669 = vpack.c.b16 %v2644, %v2643
        %v2670 = vpack.c.b16 %v2646, %v2645
        %v2671 = vpack.c.b16 %v2648, %v2647
        %v2672 = vpack.c.b16 %v2650, %v2649
        %v2673 = vpack.c.b16 %v2652, %v2651
        %v2674 = vpack.c.b16 %v2654, %v2653
        %v2675 = vpack.c.b16 %v2656, %v2655
        %v2676 = vpack.c.b16 %v2658, %v2657
        %v2677 = vpack.c.b16 %v2660, %v2659
        %v2678 = vpack.c.b16 %v2662, %v2661
        %v2711 = vunpack.c.l.b16 %v2583
        %v2712 = vunpack.c.l.b16 %v2584
        %v2713 = vunpack.c.l.b16 %v2585
        %v2714 = vunpack.c.l.b16 %v2586
        %v2715 = vunpack.c.l.b16 %v2587
        %v2716 = vunpack.c.l.b16 %v2588
        %v2717 = vunpack.c.l.b16 %v2589
        %v2718 = vunpack.c.l.b16 %v2590
        %v2719 = vunpack.c.l.b16 %v2591
        %v2720 = vunpack.c.l.b16 %v2592
        %v2721 = vunpack.c.l.b16 %v2593
        %v2722 = vunpack.c.l.b16 %v2594
        %v2723 = vunpack.c.l.b16 %v2595
        %v2724 = vunpack.c.l.b16 %v2596
        %v2725 = vunpack.c.l.b16 %v2597
        %v2726 = vunpack.c.l.b16 %v2598
        %v2727 = vpack.c.b16 %v2712, %v2711
        %v2728 = vpack.c.b16 %v2714, %v2713
        %v2729 = vpack.c.b16 %v2716, %v2715
        %v2730 = vpack.c.b16 %v2718, %v2717
        %v2731 = vpack.c.b16 %v2720, %v2719
        %v2732 = vpack.c.b16 %v2722, %v2721
        %v2733 = vpack.c.b16 %v2724, %v2723
        %v2734 = vpack.c.b16 %v2726, %v2725
        %2743 = vmatpush.bf16.msra.mxu0 %v2734
        %2744 = vmatpush.bf16.msra.mxu0 %v2733
        %2745 = vmatpush.bf16.msra.mxu0 %v2732
        %2746 = vmatpush.bf16.msra.mxu0 %v2731
        %2747 = vmatpush.bf16.msra.mxu0 %v2730
        %2748 = vmatpush.bf16.msra.mxu0 %v2729
        %2749 = vmatpush.bf16.msra.mxu0 %v2728
        %2750 = vmatpush.bf16.msra.mxu0 %v2727
        %2751 = vmatmul.bf16.gmra.mxu0 %v2663
        %v2752 = vpop.f32.mrf.mxu0
        %v2753 = vadd.f32 0.0, %v2752
        %v2754 = vpop.f32.mrf.mxu0
        %v2755 = vadd.f32 0.0, %v2754
        %2756 = vmatmul.bf16.gmra.mxu0 %v2664
        %v2757 = vpop.f32.mrf.mxu0
        %v2758 = vadd.f32 0.0, %v2757
        %v2759 = vpop.f32.mrf.mxu0
        %v2760 = vadd.f32 0.0, %v2759
        %2761 = vmatmul.bf16.gmra.mxu0 %v2665
        %v2762 = vpop.f32.mrf.mxu0
        %v2763 = vadd.f32 0.0, %v2762
        %v2764 = vpop.f32.mrf.mxu0
        %v2765 = vadd.f32 0.0, %v2764
        %2766 = vmatmul.bf16.gmra.mxu0 %v2666
        %v2767 = vpop.f32.mrf.mxu0
        %v2768 = vadd.f32 0.0, %v2767
        %v2769 = vpop.f32.mrf.mxu0
        %v2770 = vadd.f32 0.0, %v2769
        %2771 = vmatmul.bf16.gmra.mxu0 %v2667
        %v2772 = vpop.f32.mrf.mxu0
        %v2773 = vadd.f32 0.0, %v2772
        %v2774 = vpop.f32.mrf.mxu0
        %v2775 = vadd.f32 0.0, %v2774
        %2776 = vmatmul.bf16.gmra.mxu0 %v2668
        %v2777 = vpop.f32.mrf.mxu0
        %v2778 = vadd.f32 0.0, %v2777
        %v2779 = vpop.f32.mrf.mxu0
        %v2780 = vadd.f32 0.0, %v2779
        %2781 = vmatmul.bf16.gmra.mxu0 %v2669
        %v2782 = vpop.f32.mrf.mxu0
        %v2783 = vadd.f32 0.0, %v2782
        %v2784 = vpop.f32.mrf.mxu0
        %v2785 = vadd.f32 0.0, %v2784
        %2786 = vmatmul.bf16.gmra.mxu0 %v2670
        %v2787 = vpop.f32.mrf.mxu0
        %v2788 = vadd.f32 0.0, %v2787
        %v2789 = vpop.f32.mrf.mxu0
        %v2790 = vadd.f32 0.0, %v2789
        %2791 = vmatmul.bf16.gmra.mxu0 %v2671
        %v2792 = vpop.f32.mrf.mxu0
        %v2793 = vadd.f32 0.0, %v2792
        %v2794 = vpop.f32.mrf.mxu0
        %v2795 = vadd.f32 0.0, %v2794
        %2796 = vmatmul.bf16.gmra.mxu0 %v2672
        %v2797 = vpop.f32.mrf.mxu0
        %v2798 = vadd.f32 0.0, %v2797
        %v2799 = vpop.f32.mrf.mxu0
        %v2800 = vadd.f32 0.0, %v2799
        %2801 = vmatmul.bf16.gmra.mxu0 %v2673
        %v2802 = vpop.f32.mrf.mxu0
        %v2803 = vadd.f32 0.0, %v2802
        %v2804 = vpop.f32.mrf.mxu0
        %v2805 = vadd.f32 0.0, %v2804
        %2806 = vmatmul.bf16.gmra.mxu0 %v2674
        %v2807 = vpop.f32.mrf.mxu0
        %v2808 = vadd.f32 0.0, %v2807
        %v2809 = vpop.f32.mrf.mxu0
        %v2810 = vadd.f32 0.0, %v2809
        %2811 = vmatmul.bf16.gmra.mxu0 %v2675
        %v2812 = vpop.f32.mrf.mxu0
        %v2813 = vadd.f32 0.0, %v2812
        %v2814 = vpop.f32.mrf.mxu0
        %v2815 = vadd.f32 0.0, %v2814
        %2816 = vmatmul.bf16.gmra.mxu0 %v2676
        %v2817 = vpop.f32.mrf.mxu0
        %v2818 = vadd.f32 0.0, %v2817
        %v2819 = vpop.f32.mrf.mxu0
        %v2820 = vadd.f32 0.0, %v2819
        %2821 = vmatmul.bf16.gmra.mxu0 %v2677
        %v2822 = vpop.f32.mrf.mxu0
        %v2823 = vadd.f32 0.0, %v2822
        %v2824 = vpop.f32.mrf.mxu0
        %v2825 = vadd.f32 0.0, %v2824
        %2826 = vmatmul.bf16.gmra.mxu0 %v2678
        %v2827 = vpop.f32.mrf.mxu0
        %v2828 = vadd.f32 0.0, %v2827
        %v2829 = vpop.f32.mrf.mxu0
        %v2830 = vadd.f32 0.0, %v2829
        %2831 = vdwg.mxu0
        %v2832 = vadd.f32 %v2517, %v2753
        %v2833 = vadd.f32 %v2518, %v2755
        %v2834 = vadd.f32 %v2519, %v2758
        %v2835 = vadd.f32 %v2520, %v2760
        %v2836 = vadd.f32 %v2521, %v2763
        %v2837 = vadd.f32 %v2522, %v2765
        %v2838 = vadd.f32 %v2523, %v2768
        %v2839 = vadd.f32 %v2524, %v2770
        %v2840 = vadd.f32 %v2525, %v2773
        %v2841 = vadd.f32 %v2526, %v2775
        %v2842 = vadd.f32 %v2527, %v2778
        %v2843 = vadd.f32 %v2528, %v2780
        %v2844 = vadd.f32 %v2529, %v2783
        %v2845 = vadd.f32 %v2530, %v2785
        %v2846 = vadd.f32 %v2531, %v2788
        %v2847 = vadd.f32 %v2532, %v2790
        %v2848 = vadd.f32 %v2533, %v2793
        %v2849 = vadd.f32 %v2534, %v2795
        %v2850 = vadd.f32 %v2535, %v2798
        %v2851 = vadd.f32 %v2536, %v2800
        %v2852 = vadd.f32 %v2537, %v2803
        %v2853 = vadd.f32 %v2538, %v2805
        %v2854 = vadd.f32 %v2539, %v2808
        %v2855 = vadd.f32 %v2540, %v2810
        %v2856 = vadd.f32 %v2541, %v2813
        %v2857 = vadd.f32 %v2542, %v2815
        %v2858 = vadd.f32 %v2543, %v2818
        %v2859 = vadd.f32 %v2544, %v2820
        %v2860 = vadd.f32 %v2545, %v2823
        %v2861 = vadd.f32 %v2546, %v2825
        %v2862 = vadd.f32 %v2547, %v2828
        %v2863 = vadd.f32 %v2548, %v2830
        %v2864 = vld [vmem:[%s2549] sm:$0xf]
        %v2865 = vld [vmem:[%s2549 + $0x4] sm:$0xf]
        %v2866 = vld [vmem:[%s2549 + $0x8] sm:$0x1]
        %v2867 = vld [vmem:[%s2549 + $0xc] sm:$0xf]
        %v2868 = vld [vmem:[%s2549 + $0x10] sm:$0xf]
        %v2869 = vld [vmem:[%s2549 + $0x14] sm:$0x1]
        %v2870 = vld [vmem:[%s2549 + $0x18] sm:$0xf]
        %v2871 = vld [vmem:[%s2549 + $0x1c] sm:$0xf]
        %v2872 = vld [vmem:[%s2549 + $0x20] sm:$0x1]
        %v2873 = vld [vmem:[%s2549 + $0x24] sm:$0xf]
        %v2874 = vld [vmem:[%s2549 + $0x28] sm:$0xf]
        %v2875 = vld [vmem:[%s2549 + $0x2c] sm:$0x1]
        %v2876 = vld [vmem:[%s2549 + $0x30] sm:$0xf]
        %v2877 = vld [vmem:[%s2549 + $0x34] sm:$0xf]
        %v2878 = vld [vmem:[%s2549 + $0x38] sm:$0x1]
        %v2879 = vld [vmem:[%s2549 + $0x3c] sm:$0xf]
        %v2880 = vld [vmem:[%s2549 + $0x40] sm:$0xf]
        %v2881 = vld [vmem:[%s2549 + $0x44] sm:$0x1]
        %v2882 = vld [vmem:[%s2549 + $0x48] sm:$0xf]
        %v2883 = vld [vmem:[%s2549 + $0x4c] sm:$0xf]
        %v2884 = vld [vmem:[%s2549 + $0x50] sm:$0x1]
        %v2885 = vld [vmem:[%s2549 + $0x54] sm:$0xf]
        %v2886 = vld [vmem:[%s2549 + $0x58] sm:$0xf]
        %v2887 = vld [vmem:[%s2549 + $0x5c] sm:$0x1]
        %v2888 = vld [vmem:[%s2549 + $0x60] sm:$0xf]
        %v2889 = vld [vmem:[%s2549 + $0x64] sm:$0xf]
        %v2890 = vld [vmem:[%s2549 + $0x68] sm:$0x1]
        %v2891 = vld [vmem:[%s2549 + $0x6c] sm:$0xf]
        %v2892 = vld [vmem:[%s2549 + $0x70] sm:$0xf]
        %v2893 = vld [vmem:[%s2549 + $0x74] sm:$0x1]
        %v2894 = vld [vmem:[%s2549 + $0x78] sm:$0xf]
        %v2895 = vld [vmem:[%s2549 + $0x7c] sm:$0xf]
        %v2896 = vld [vmem:[%s2549 + $0x80] sm:$0x1]
        %v2897 = vld [vmem:[%s2549 + $0x84] sm:$0xf]
        %v2898 = vld [vmem:[%s2549 + $0x88] sm:$0xf]
        %v2899 = vld [vmem:[%s2549 + $0x8c] sm:$0x1]
        %v2900 = vld [vmem:[%s2549 + $0x90] sm:$0xf]
        %v2901 = vld [vmem:[%s2549 + $0x94] sm:$0xf]
        %v2902 = vld [vmem:[%s2549 + $0x98] sm:$0x1]
        %v2903 = vld [vmem:[%s2549 + $0x9c] sm:$0xf]
        %v2904 = vld [vmem:[%s2549 + $0xa0] sm:$0xf]
        %v2905 = vld [vmem:[%s2549 + $0xa4] sm:$0x1]
        %v2906 = vld [vmem:[%s2549 + $0xa8] sm:$0xf]
        %v2907 = vld [vmem:[%s2549 + $0xac] sm:$0xf]
        %v2908 = vld [vmem:[%s2549 + $0xb0] sm:$0x1]
        %v2909 = vld [vmem:[%s2549 + $0xb4] sm:$0xf]
        %v2910 = vld [vmem:[%s2549 + $0xb8] sm:$0xf]
        %v2911 = vld [vmem:[%s2549 + $0xbc] sm:$0x1]
        %v2913 = vshrl.u32 %v2864, 16
        %v2915 = vrot.slane %v2913, 4
        %v2916 = vshll.u32 %v2864, 16
        %v2918 = vrot.slane %v2916, 5
        %v2919 = vor.u32 %v2915, %v2918
        %v2920 = vrot.slane %v2919, 4
        %v2922 = vshll.u32 %v2865, 16
        %v2924 = vrot.slane %v2922, 5
        %v2925 = vsel %vm1300, %v2920, %v2924
        %v2926 = vshrl.u32 %v2865, 16
        %v2928 = vrot.slane %v2926, 4
        %v2929 = vor.u32 %v2928, %v2924
        %v2930 = vrot.slane %v2929, 4
        %v2932 = vshll.u32 %v2866, 16
        %v2934 = vrot.slane %v2932, 5
        %v2935 = vsel %vm1300, %v2930, %v2934
        %v2937 = vshrl.u32 %v2867, 16
        %v2939 = vrot.slane %v2937, 4
        %v2940 = vshll.u32 %v2867, 16
        %v2942 = vrot.slane %v2940, 5
        %v2943 = vor.u32 %v2939, %v2942
        %v2944 = vrot.slane %v2943, 4
        %v2946 = vshll.u32 %v2868, 16
        %v2948 = vrot.slane %v2946, 5
        %v2949 = vsel %vm1300, %v2944, %v2948
        %v2950 = vshrl.u32 %v2868, 16
        %v2952 = vrot.slane %v2950, 4
        %v2953 = vor.u32 %v2952, %v2948
        %v2954 = vrot.slane %v2953, 4
        %v2956 = vshll.u32 %v2869, 16
        %v2958 = vrot.slane %v2956, 5
        %v2959 = vsel %vm1300, %v2954, %v2958
        %v2961 = vshrl.u32 %v2870, 16
        %v2963 = vrot.slane %v2961, 4
        %v2964 = vshll.u32 %v2870, 16
        %v2966 = vrot.slane %v2964, 5
        %v2967 = vor.u32 %v2963, %v2966
        %v2968 = vrot.slane %v2967, 4
        %v2970 = vshll.u32 %v2871, 16
        %v2972 = vrot.slane %v2970, 5
        %v2973 = vsel %vm1300, %v2968, %v2972
        %v2974 = vshrl.u32 %v2871, 16
        %v2976 = vrot.slane %v2974, 4
        %v2977 = vor.u32 %v2976, %v2972
        %v2978 = vrot.slane %v2977, 4
        %v2980 = vshll.u32 %v2872, 16
        %v2982 = vrot.slane %v2980, 5
        %v2983 = vsel %vm1300, %v2978, %v2982
        %v2985 = vshrl.u32 %v2873, 16
        %v2987 = vrot.slane %v2985, 4
        %v2988 = vshll.u32 %v2873, 16
        %v2990 = vrot.slane %v2988, 5
        %v2991 = vor.u32 %v2987, %v2990
        %v2992 = vrot.slane %v2991, 4
        %v2994 = vshll.u32 %v2874, 16
        %v2996 = vrot.slane %v2994, 5
        %v2997 = vsel %vm1300, %v2992, %v2996
        %v2998 = vshrl.u32 %v2874, 16
        %v3000 = vrot.slane %v2998, 4
        %v3001 = vor.u32 %v3000, %v2996
        %v3002 = vrot.slane %v3001, 4
        %v3004 = vshll.u32 %v2875, 16
        %v3006 = vrot.slane %v3004, 5
        %v3007 = vsel %vm1300, %v3002, %v3006
        %v3009 = vshrl.u32 %v2876, 16
        %v3011 = vrot.slane %v3009, 4
        %v3012 = vshll.u32 %v2876, 16
        %v3014 = vrot.slane %v3012, 5
        %v3015 = vor.u32 %v3011, %v3014
        %v3016 = vrot.slane %v3015, 4
        %v3018 = vshll.u32 %v2877, 16
        %v3020 = vrot.slane %v3018, 5
        %v3021 = vsel %vm1300, %v3016, %v3020
        %v3022 = vshrl.u32 %v2877, 16
        %v3024 = vrot.slane %v3022, 4
        %v3025 = vor.u32 %v3024, %v3020
        %v3026 = vrot.slane %v3025, 4
        %v3028 = vshll.u32 %v2878, 16
        %v3030 = vrot.slane %v3028, 5
        %v3031 = vsel %vm1300, %v3026, %v3030
        %v3033 = vshrl.u32 %v2879, 16
        %v3035 = vrot.slane %v3033, 4
        %v3036 = vshll.u32 %v2879, 16
        %v3038 = vrot.slane %v3036, 5
        %v3039 = vor.u32 %v3035, %v3038
        %v3040 = vrot.slane %v3039, 4
        %v3042 = vshll.u32 %v2880, 16
        %v3044 = vrot.slane %v3042, 5
        %v3045 = vsel %vm1300, %v3040, %v3044
        %v3046 = vshrl.u32 %v2880, 16
        %v3048 = vrot.slane %v3046, 4
        %v3049 = vor.u32 %v3048, %v3044
        %v3050 = vrot.slane %v3049, 4
        %v3052 = vshll.u32 %v2881, 16
        %v3054 = vrot.slane %v3052, 5
        %v3055 = vsel %vm1300, %v3050, %v3054
        %v3057 = vshrl.u32 %v2882, 16
        %v3059 = vrot.slane %v3057, 4
        %v3060 = vshll.u32 %v2882, 16
        %v3062 = vrot.slane %v3060, 5
        %v3063 = vor.u32 %v3059, %v3062
        %v3064 = vrot.slane %v3063, 4
        %v3066 = vshll.u32 %v2883, 16
        %v3068 = vrot.slane %v3066, 5
        %v3069 = vsel %vm1300, %v3064, %v3068
        %v3070 = vshrl.u32 %v2883, 16
        %v3072 = vrot.slane %v3070, 4
        %v3073 = vor.u32 %v3072, %v3068
        %v3074 = vrot.slane %v3073, 4
        %v3076 = vshll.u32 %v2884, 16
        %v3078 = vrot.slane %v3076, 5
        %v3079 = vsel %vm1300, %v3074, %v3078
        %v3081 = vshrl.u32 %v2885, 16
        %v3083 = vrot.slane %v3081, 4
        %v3084 = vshll.u32 %v2885, 16
        %v3086 = vrot.slane %v3084, 5
        %v3087 = vor.u32 %v3083, %v3086
        %v3088 = vrot.slane %v3087, 4
        %v3090 = vshll.u32 %v2886, 16
        %v3092 = vrot.slane %v3090, 5
        %v3093 = vsel %vm1300, %v3088, %v3092
        %v3094 = vshrl.u32 %v2886, 16
        %v3096 = vrot.slane %v3094, 4
        %v3097 = vor.u32 %v3096, %v3092
        %v3098 = vrot.slane %v3097, 4
        %v3100 = vshll.u32 %v2887, 16
        %v3102 = vrot.slane %v3100, 5
        %v3103 = vsel %vm1300, %v3098, %v3102
        %v3105 = vshrl.u32 %v2888, 16
        %v3107 = vrot.slane %v3105, 4
        %v3108 = vshll.u32 %v2888, 16
        %v3110 = vrot.slane %v3108, 5
        %v3111 = vor.u32 %v3107, %v3110
        %v3112 = vrot.slane %v3111, 4
        %v3114 = vshll.u32 %v2889, 16
        %v3116 = vrot.slane %v3114, 5
        %v3117 = vsel %vm1300, %v3112, %v3116
        %v3118 = vshrl.u32 %v2889, 16
        %v3120 = vrot.slane %v3118, 4
        %v3121 = vor.u32 %v3120, %v3116
        %v3122 = vrot.slane %v3121, 4
        %v3124 = vshll.u32 %v2890, 16
        %v3126 = vrot.slane %v3124, 5
        %v3127 = vsel %vm1300, %v3122, %v3126
        %v3129 = vshrl.u32 %v2891, 16
        %v3131 = vrot.slane %v3129, 4
        %v3132 = vshll.u32 %v2891, 16
        %v3134 = vrot.slane %v3132, 5
        %v3135 = vor.u32 %v3131, %v3134
        %v3136 = vrot.slane %v3135, 4
        %v3138 = vshll.u32 %v2892, 16
        %v3140 = vrot.slane %v3138, 5
        %v3141 = vsel %vm1300, %v3136, %v3140
        %v3142 = vshrl.u32 %v2892, 16
        %v3144 = vrot.slane %v3142, 4
        %v3145 = vor.u32 %v3144, %v3140
        %v3146 = vrot.slane %v3145, 4
        %v3148 = vshll.u32 %v2893, 16
        %v3150 = vrot.slane %v3148, 5
        %v3151 = vsel %vm1300, %v3146, %v3150
        %v3153 = vshrl.u32 %v2894, 16
        %v3155 = vrot.slane %v3153, 4
        %v3156 = vshll.u32 %v2894, 16
        %v3158 = vrot.slane %v3156, 5
        %v3159 = vor.u32 %v3155, %v3158
        %v3160 = vrot.slane %v3159, 4
        %v3162 = vshll.u32 %v2895, 16
        %v3164 = vrot.slane %v3162, 5
        %v3165 = vsel %vm1300, %v3160, %v3164
        %v3166 = vshrl.u32 %v2895, 16
        %v3168 = vrot.slane %v3166, 4
        %v3169 = vor.u32 %v3168, %v3164
        %v3170 = vrot.slane %v3169, 4
        %v3172 = vshll.u32 %v2896, 16
        %v3174 = vrot.slane %v3172, 5
        %v3175 = vsel %vm1300, %v3170, %v3174
        %v3177 = vshrl.u32 %v2897, 16
        %v3179 = vrot.slane %v3177, 4
        %v3180 = vshll.u32 %v2897, 16
        %v3182 = vrot.slane %v3180, 5
        %v3183 = vor.u32 %v3179, %v3182
        %v3184 = vrot.slane %v3183, 4
        %v3186 = vshll.u32 %v2898, 16
        %v3188 = vrot.slane %v3186, 5
        %v3189 = vsel %vm1300, %v3184, %v3188
        %v3190 = vshrl.u32 %v2898, 16
        %v3192 = vrot.slane %v3190, 4
        %v3193 = vor.u32 %v3192, %v3188
        %v3194 = vrot.slane %v3193, 4
        %v3196 = vshll.u32 %v2899, 16
        %v3198 = vrot.slane %v3196, 5
        %v3199 = vsel %vm1300, %v3194, %v3198
        %v3201 = vshrl.u32 %v2900, 16
        %v3203 = vrot.slane %v3201, 4
        %v3204 = vshll.u32 %v2900, 16
        %v3206 = vrot.slane %v3204, 5
        %v3207 = vor.u32 %v3203, %v3206
        %v3208 = vrot.slane %v3207, 4
        %v3210 = vshll.u32 %v2901, 16
        %v3212 = vrot.slane %v3210, 5
        %v3213 = vsel %vm1300, %v3208, %v3212
        %v3214 = vshrl.u32 %v2901, 16
        %v3216 = vrot.slane %v3214, 4
        %v3217 = vor.u32 %v3216, %v3212
        %v3218 = vrot.slane %v3217, 4
        %v3220 = vshll.u32 %v2902, 16
        %v3222 = vrot.slane %v3220, 5
        %v3223 = vsel %vm1300, %v3218, %v3222
        %v3225 = vshrl.u32 %v2903, 16
        %v3227 = vrot.slane %v3225, 4
        %v3228 = vshll.u32 %v2903, 16
        %v3230 = vrot.slane %v3228, 5
        %v3231 = vor.u32 %v3227, %v3230
        %v3232 = vrot.slane %v3231, 4
        %v3234 = vshll.u32 %v2904, 16
        %v3236 = vrot.slane %v3234, 5
        %v3237 = vsel %vm1300, %v3232, %v3236
        %v3238 = vshrl.u32 %v2904, 16
        %v3240 = vrot.slane %v3238, 4
        %v3241 = vor.u32 %v3240, %v3236
        %v3242 = vrot.slane %v3241, 4
        %v3244 = vshll.u32 %v2905, 16
        %v3246 = vrot.slane %v3244, 5
        %v3247 = vsel %vm1300, %v3242, %v3246
        %v3249 = vshrl.u32 %v2906, 16
        %v3251 = vrot.slane %v3249, 4
        %v3252 = vshll.u32 %v2906, 16
        %v3254 = vrot.slane %v3252, 5
        %v3255 = vor.u32 %v3251, %v3254
        %v3256 = vrot.slane %v3255, 4
        %v3258 = vshll.u32 %v2907, 16
        %v3260 = vrot.slane %v3258, 5
        %v3261 = vsel %vm1300, %v3256, %v3260
        %v3262 = vshrl.u32 %v2907, 16
        %v3264 = vrot.slane %v3262, 4
        %v3265 = vor.u32 %v3264, %v3260
        %v3266 = vrot.slane %v3265, 4
        %v3268 = vshll.u32 %v2908, 16
        %v3270 = vrot.slane %v3268, 5
        %v3271 = vsel %vm1300, %v3266, %v3270
        %v3273 = vshrl.u32 %v2909, 16
        %v3275 = vrot.slane %v3273, 4
        %v3276 = vshll.u32 %v2909, 16
        %v3278 = vrot.slane %v3276, 5
        %v3279 = vor.u32 %v3275, %v3278
        %v3280 = vrot.slane %v3279, 4
        %v3282 = vshll.u32 %v2910, 16
        %v3284 = vrot.slane %v3282, 5
        %v3285 = vsel %vm1300, %v3280, %v3284
        %v3286 = vshrl.u32 %v2910, 16
        %v3288 = vrot.slane %v3286, 4
        %v3289 = vor.u32 %v3288, %v3284
        %v3290 = vrot.slane %v3289, 4
        %v3292 = vshll.u32 %v2911, 16
        %v3294 = vrot.slane %v3292, 5
        %v3295 = vsel %vm1300, %v3290, %v3294
        %s3296 = scalar_lea.vmem [#allocation8], 256
        %v3297 = vld [vmem:[%s3296] sm:$0xf]
        %v3298 = vld [vmem:[%s3296 + $0x4] sm:$0xf]
        %v3299 = vld [vmem:[%s3296 + $0x8] sm:$0xf]
        %v3300 = vld [vmem:[%s3296 + $0xc] sm:$0xf]
        %v3301 = vld [vmem:[%s3296 + $0x10] sm:$0xf]
        %v3302 = vld [vmem:[%s3296 + $0x14] sm:$0xf]
        %v3303 = vld [vmem:[%s3296 + $0x18] sm:$0xf]
        %v3304 = vld [vmem:[%s3296 + $0x1c] sm:$0xf]
        %v3305 = vld [vmem:[%s3296 + $0x20] sm:$0xf]
        %v3306 = vld [vmem:[%s3296 + $0x24] sm:$0xf]
        %v3307 = vld [vmem:[%s3296 + $0x28] sm:$0xf]
        %v3308 = vld [vmem:[%s3296 + $0x2c] sm:$0xf]
        %v3309 = vld [vmem:[%s3296 + $0x30] sm:$0xf]
        %v3310 = vld [vmem:[%s3296 + $0x34] sm:$0xf]
        %v3311 = vld [vmem:[%s3296 + $0x38] sm:$0xf]
        %v3312 = vld [vmem:[%s3296 + $0x3c] sm:$0xf]
        %v3313 = vunpack.c.l.b16 %v2925
        %v3314 = vunpack.c.l.b16 %v2935
        %v3315 = vunpack.c.l.b16 %v2949
        %v3316 = vunpack.c.l.b16 %v2959
        %v3317 = vunpack.c.l.b16 %v2973
        %v3318 = vunpack.c.l.b16 %v2983
        %v3319 = vunpack.c.l.b16 %v2997
        %v3320 = vunpack.c.l.b16 %v3007
        %v3321 = vunpack.c.l.b16 %v3021
        %v3322 = vunpack.c.l.b16 %v3031
        %v3323 = vunpack.c.l.b16 %v3045
        %v3324 = vunpack.c.l.b16 %v3055
        %v3325 = vunpack.c.l.b16 %v3069
        %v3326 = vunpack.c.l.b16 %v3079
        %v3327 = vunpack.c.l.b16 %v3093
        %v3328 = vunpack.c.l.b16 %v3103
        %v3329 = vunpack.c.l.b16 %v3117
        %v3330 = vunpack.c.l.b16 %v3127
        %v3331 = vunpack.c.l.b16 %v3141
        %v3332 = vunpack.c.l.b16 %v3151
        %v3333 = vunpack.c.l.b16 %v3165
        %v3334 = vunpack.c.l.b16 %v3175
        %v3335 = vunpack.c.l.b16 %v3189
        %v3336 = vunpack.c.l.b16 %v3199
        %v3337 = vunpack.c.l.b16 %v3213
        %v3338 = vunpack.c.l.b16 %v3223
        %v3339 = vunpack.c.l.b16 %v3237
        %v3340 = vunpack.c.l.b16 %v3247
        %v3341 = vunpack.c.l.b16 %v3261
        %v3342 = vunpack.c.l.b16 %v3271
        %v3343 = vunpack.c.l.b16 %v3285
        %v3344 = vunpack.c.l.b16 %v3295
        %v3345 = vpack.c.b16 %v3314, %v3313
        %v3346 = vpack.c.b16 %v3316, %v3315
        %v3347 = vpack.c.b16 %v3318, %v3317
        %v3348 = vpack.c.b16 %v3320, %v3319
        %v3349 = vpack.c.b16 %v3322, %v3321
        %v3350 = vpack.c.b16 %v3324, %v3323
        %v3351 = vpack.c.b16 %v3326, %v3325
        %v3352 = vpack.c.b16 %v3328, %v3327
        %v3353 = vpack.c.b16 %v3330, %v3329
        %v3354 = vpack.c.b16 %v3332, %v3331
        %v3355 = vpack.c.b16 %v3334, %v3333
        %v3356 = vpack.c.b16 %v3336, %v3335
        %v3357 = vpack.c.b16 %v3338, %v3337
        %v3358 = vpack.c.b16 %v3340, %v3339
        %v3359 = vpack.c.b16 %v3342, %v3341
        %v3360 = vpack.c.b16 %v3344, %v3343
        %v3393 = vunpack.c.l.b16 %v3297
        %v3394 = vunpack.c.l.b16 %v3298
        %v3395 = vunpack.c.l.b16 %v3299
        %v3396 = vunpack.c.l.b16 %v3300
        %v3397 = vunpack.c.l.b16 %v3301
        %v3398 = vunpack.c.l.b16 %v3302
        %v3399 = vunpack.c.l.b16 %v3303
        %v3400 = vunpack.c.l.b16 %v3304
        %v3401 = vunpack.c.l.b16 %v3305
        %v3402 = vunpack.c.l.b16 %v3306
        %v3403 = vunpack.c.l.b16 %v3307
        %v3404 = vunpack.c.l.b16 %v3308
        %v3405 = vunpack.c.l.b16 %v3309
        %v3406 = vunpack.c.l.b16 %v3310
        %v3407 = vunpack.c.l.b16 %v3311
        %v3408 = vunpack.c.l.b16 %v3312
        %v3409 = vpack.c.b16 %v3394, %v3393
        %v3410 = vpack.c.b16 %v3396, %v3395
        %v3411 = vpack.c.b16 %v3398, %v3397
        %v3412 = vpack.c.b16 %v3400, %v3399
        %v3413 = vpack.c.b16 %v3402, %v3401
        %v3414 = vpack.c.b16 %v3404, %v3403
        %v3415 = vpack.c.b16 %v3406, %v3405
        %v3416 = vpack.c.b16 %v3408, %v3407
        %3425 = vmatpush.bf16.msra.mxu0 %v3416
        %3426 = vmatpush.bf16.msra.mxu0 %v3415
        %3427 = vmatpush.bf16.msra.mxu0 %v3414
        %3428 = vmatpush.bf16.msra.mxu0 %v3413
        %3429 = vmatpush.bf16.msra.mxu0 %v3412
        %3430 = vmatpush.bf16.msra.mxu0 %v3411
        %3431 = vmatpush.bf16.msra.mxu0 %v3410
        %3432 = vmatpush.bf16.msra.mxu0 %v3409
        %3433 = vmatmul.bf16.gmra.mxu0 %v3345
        %v3434 = vpop.f32.mrf.mxu0
        %v3435 = vadd.f32 0.0, %v3434
        %v3436 = vpop.f32.mrf.mxu0
        %v3437 = vadd.f32 0.0, %v3436
        %3438 = vmatmul.bf16.gmra.mxu0 %v3346
        %v3439 = vpop.f32.mrf.mxu0
        %v3440 = vadd.f32 0.0, %v3439
        %v3441 = vpop.f32.mrf.mxu0
        %v3442 = vadd.f32 0.0, %v3441
        %3443 = vmatmul.bf16.gmra.mxu0 %v3347
        %v3444 = vpop.f32.mrf.mxu0
        %v3445 = vadd.f32 0.0, %v3444
        %v3446 = vpop.f32.mrf.mxu0
        %v3447 = vadd.f32 0.0, %v3446
        %3448 = vmatmul.bf16.gmra.mxu0 %v3348
        %v3449 = vpop.f32.mrf.mxu0
        %v3450 = vadd.f32 0.0, %v3449
        %v3451 = vpop.f32.mrf.mxu0
        %v3452 = vadd.f32 0.0, %v3451
        %3453 = vmatmul.bf16.gmra.mxu0 %v3349
        %v3454 = vpop.f32.mrf.mxu0
        %v3455 = vadd.f32 0.0, %v3454
        %v3456 = vpop.f32.mrf.mxu0
        %v3457 = vadd.f32 0.0, %v3456
        %3458 = vmatmul.bf16.gmra.mxu0 %v3350
        %v3459 = vpop.f32.mrf.mxu0
        %v3460 = vadd.f32 0.0, %v3459
        %v3461 = vpop.f32.mrf.mxu0
        %v3462 = vadd.f32 0.0, %v3461
        %3463 = vmatmul.bf16.gmra.mxu0 %v3351
        %v3464 = vpop.f32.mrf.mxu0
        %v3465 = vadd.f32 0.0, %v3464
        %v3466 = vpop.f32.mrf.mxu0
        %v3467 = vadd.f32 0.0, %v3466
        %3468 = vmatmul.bf16.gmra.mxu0 %v3352
        %v3469 = vpop.f32.mrf.mxu0
        %v3470 = vadd.f32 0.0, %v3469
        %v3471 = vpop.f32.mrf.mxu0
        %v3472 = vadd.f32 0.0, %v3471
        %3473 = vmatmul.bf16.gmra.mxu0 %v3353
        %v3474 = vpop.f32.mrf.mxu0
        %v3475 = vadd.f32 0.0, %v3474
        %v3476 = vpop.f32.mrf.mxu0
        %v3477 = vadd.f32 0.0, %v3476
        %3478 = vmatmul.bf16.gmra.mxu0 %v3354
        %v3479 = vpop.f32.mrf.mxu0
        %v3480 = vadd.f32 0.0, %v3479
        %v3481 = vpop.f32.mrf.mxu0
        %v3482 = vadd.f32 0.0, %v3481
        %3483 = vmatmul.bf16.gmra.mxu0 %v3355
        %v3484 = vpop.f32.mrf.mxu0
        %v3485 = vadd.f32 0.0, %v3484
        %v3486 = vpop.f32.mrf.mxu0
        %v3487 = vadd.f32 0.0, %v3486
        %3488 = vmatmul.bf16.gmra.mxu0 %v3356
        %v3489 = vpop.f32.mrf.mxu0
        %v3490 = vadd.f32 0.0, %v3489
        %v3491 = vpop.f32.mrf.mxu0
        %v3492 = vadd.f32 0.0, %v3491
        %3493 = vmatmul.bf16.gmra.mxu0 %v3357
        %v3494 = vpop.f32.mrf.mxu0
        %v3495 = vadd.f32 0.0, %v3494
        %v3496 = vpop.f32.mrf.mxu0
        %v3497 = vadd.f32 0.0, %v3496
        %3498 = vmatmul.bf16.gmra.mxu0 %v3358
        %v3499 = vpop.f32.mrf.mxu0
        %v3500 = vadd.f32 0.0, %v3499
        %v3501 = vpop.f32.mrf.mxu0
        %v3502 = vadd.f32 0.0, %v3501
        %3503 = vmatmul.bf16.gmra.mxu0 %v3359
        %v3504 = vpop.f32.mrf.mxu0
        %v3505 = vadd.f32 0.0, %v3504
        %v3506 = vpop.f32.mrf.mxu0
        %v3507 = vadd.f32 0.0, %v3506
        %3508 = vmatmul.bf16.gmra.mxu0 %v3360
        %v3509 = vpop.f32.mrf.mxu0
        %v3510 = vadd.f32 0.0, %v3509
        %v3511 = vpop.f32.mrf.mxu0
        %v3512 = vadd.f32 0.0, %v3511
        %3513 = vdwg.mxu0
        %v3514 = vadd.f32 %v2832, %v3435
        %v3515 = vadd.f32 %v2833, %v3437
        %v3516 = vadd.f32 %v2834, %v3440
        %v3517 = vadd.f32 %v2835, %v3442
        %v3518 = vadd.f32 %v2836, %v3445
        %v3519 = vadd.f32 %v2837, %v3447
        %v3520 = vadd.f32 %v2838, %v3450
        %v3521 = vadd.f32 %v2839, %v3452
        %v3522 = vadd.f32 %v2840, %v3455
        %v3523 = vadd.f32 %v2841, %v3457
        %v3524 = vadd.f32 %v2842, %v3460
        %v3525 = vadd.f32 %v2843, %v3462
        %v3526 = vadd.f32 %v2844, %v3465
        %v3527 = vadd.f32 %v2845, %v3467
        %v3528 = vadd.f32 %v2846, %v3470
        %v3529 = vadd.f32 %v2847, %v3472
        %v3530 = vadd.f32 %v2848, %v3475
        %v3531 = vadd.f32 %v2849, %v3477
        %v3532 = vadd.f32 %v2850, %v3480
        %v3533 = vadd.f32 %v2851, %v3482
        %v3534 = vadd.f32 %v2852, %v3485
        %v3535 = vadd.f32 %v2853, %v3487
        %v3536 = vadd.f32 %v2854, %v3490
        %v3537 = vadd.f32 %v2855, %v3492
        %v3538 = vadd.f32 %v2856, %v3495
        %v3539 = vadd.f32 %v2857, %v3497
        %v3540 = vadd.f32 %v2858, %v3500
        %v3541 = vadd.f32 %v2859, %v3502
        %v3542 = vadd.f32 %v2860, %v3505
        %v3543 = vadd.f32 %v2861, %v3507
        %v3544 = vadd.f32 %v2862, %v3510
        %v3545 = vadd.f32 %v2863, %v3512
        %v3546 = vld [vmem:[%s2549] sm:$0xe]
        %v3547 = vld [vmem:[%s2549 + $0xc] sm:$0xe]
        %v3548 = vld [vmem:[%s2549 + $0x18] sm:$0xe]
        %v3549 = vld [vmem:[%s2549 + $0x24] sm:$0xe]
        %v3550 = vld [vmem:[%s2549 + $0x30] sm:$0xe]
        %v3551 = vld [vmem:[%s2549 + $0x3c] sm:$0xe]
        %v3552 = vld [vmem:[%s2549 + $0x48] sm:$0xe]
        %v3553 = vld [vmem:[%s2549 + $0x54] sm:$0xe]
        %v3554 = vld [vmem:[%s2549 + $0x60] sm:$0xe]
        %v3555 = vld [vmem:[%s2549 + $0x6c] sm:$0xe]
        %v3556 = vld [vmem:[%s2549 + $0x78] sm:$0xe]
        %v3557 = vld [vmem:[%s2549 + $0x84] sm:$0xe]
        %v3558 = vld [vmem:[%s2549 + $0x90] sm:$0xe]
        %v3559 = vld [vmem:[%s2549 + $0x9c] sm:$0xe]
        %v3560 = vld [vmem:[%s2549 + $0xa8] sm:$0xe]
        %v3561 = vld [vmem:[%s2549 + $0xb4] sm:$0xe]
        %v3610 = vrot.slane %v3546, 5
        %v3611 = vrot.slane %v3610, 4
        %v3612 = vrot.slane %v2865, 5
        %v3613 = vsel %vm2186, %v3611, %v3612
        %v3614 = vrot.slane %v3612, 4
        %v3615 = vrot.slane %v2866, 5
        %v3616 = vsel %vm2186, %v3614, %v3615
        %v3617 = vrot.slane %v3547, 5
        %v3618 = vrot.slane %v3617, 4
        %v3619 = vrot.slane %v2868, 5
        %v3620 = vsel %vm2186, %v3618, %v3619
        %v3621 = vrot.slane %v3619, 4
        %v3622 = vrot.slane %v2869, 5
        %v3623 = vsel %vm2186, %v3621, %v3622
        %v3624 = vrot.slane %v3548, 5
        %v3625 = vrot.slane %v3624, 4
        %v3626 = vrot.slane %v2871, 5
        %v3627 = vsel %vm2186, %v3625, %v3626
        %v3628 = vrot.slane %v3626, 4
        %v3629 = vrot.slane %v2872, 5
        %v3630 = vsel %vm2186, %v3628, %v3629
        %v3631 = vrot.slane %v3549, 5
        %v3632 = vrot.slane %v3631, 4
        %v3633 = vrot.slane %v2874, 5
        %v3634 = vsel %vm2186, %v3632, %v3633
        %v3635 = vrot.slane %v3633, 4
        %v3636 = vrot.slane %v2875, 5
        %v3637 = vsel %vm2186, %v3635, %v3636
        %v3638 = vrot.slane %v3550, 5
        %v3639 = vrot.slane %v3638, 4
        %v3640 = vrot.slane %v2877, 5
        %v3641 = vsel %vm2186, %v3639, %v3640
        %v3642 = vrot.slane %v3640, 4
        %v3643 = vrot.slane %v2878, 5
        %v3644 = vsel %vm2186, %v3642, %v3643
        %v3645 = vrot.slane %v3551, 5
        %v3646 = vrot.slane %v3645, 4
        %v3647 = vrot.slane %v2880, 5
        %v3648 = vsel %vm2186, %v3646, %v3647
        %v3649 = vrot.slane %v3647, 4
        %v3650 = vrot.slane %v2881, 5
        %v3651 = vsel %vm2186, %v3649, %v3650
        %v3652 = vrot.slane %v3552, 5
        %v3653 = vrot.slane %v3652, 4
        %v3654 = vrot.slane %v2883, 5
        %v3655 = vsel %vm2186, %v3653, %v3654
        %v3656 = vrot.slane %v3654, 4
        %v3657 = vrot.slane %v2884, 5
        %v3658 = vsel %vm2186, %v3656, %v3657
        %v3659 = vrot.slane %v3553, 5
        %v3660 = vrot.slane %v3659, 4
        %v3661 = vrot.slane %v2886, 5
        %v3662 = vsel %vm2186, %v3660, %v3661
        %v3663 = vrot.slane %v3661, 4
        %v3664 = vrot.slane %v2887, 5
        %v3665 = vsel %vm2186, %v3663, %v3664
        %v3666 = vrot.slane %v3554, 5
        %v3667 = vrot.slane %v3666, 4
        %v3668 = vrot.slane %v2889, 5
        %v3669 = vsel %vm2186, %v3667, %v3668
        %v3670 = vrot.slane %v3668, 4
        %v3671 = vrot.slane %v2890, 5
        %v3672 = vsel %vm2186, %v3670, %v3671
        %v3673 = vrot.slane %v3555, 5
        %v3674 = vrot.slane %v3673, 4
        %v3675 = vrot.slane %v2892, 5
        %v3676 = vsel %vm2186, %v3674, %v3675
        %v3677 = vrot.slane %v3675, 4
        %v3678 = vrot.slane %v2893, 5
        %v3679 = vsel %vm2186, %v3677, %v3678
        %v3680 = vrot.slane %v3556, 5
        %v3681 = vrot.slane %v3680, 4
        %v3682 = vrot.slane %v2895, 5
        %v3683 = vsel %vm2186, %v3681, %v3682
        %v3684 = vrot.slane %v3682, 4
        %v3685 = vrot.slane %v2896, 5
        %v3686 = vsel %vm2186, %v3684, %v3685
        %v3687 = vrot.slane %v3557, 5
        %v3688 = vrot.slane %v3687, 4
        %v3689 = vrot.slane %v2898, 5
        %v3690 = vsel %vm2186, %v3688, %v3689
        %v3691 = vrot.slane %v3689, 4
        %v3692 = vrot.slane %v2899, 5
        %v3693 = vsel %vm2186, %v3691, %v3692
        %v3694 = vrot.slane %v3558, 5
        %v3695 = vrot.slane %v3694, 4
        %v3696 = vrot.slane %v2901, 5
        %v3697 = vsel %vm2186, %v3695, %v3696
        %v3698 = vrot.slane %v3696, 4
        %v3699 = vrot.slane %v2902, 5
        %v3700 = vsel %vm2186, %v3698, %v3699
        %v3701 = vrot.slane %v3559, 5
        %v3702 = vrot.slane %v3701, 4
        %v3703 = vrot.slane %v2904, 5
        %v3704 = vsel %vm2186, %v3702, %v3703
        %v3705 = vrot.slane %v3703, 4
        %v3706 = vrot.slane %v2905, 5
        %v3707 = vsel %vm2186, %v3705, %v3706
        %v3708 = vrot.slane %v3560, 5
        %v3709 = vrot.slane %v3708, 4
        %v3710 = vrot.slane %v2907, 5
        %v3711 = vsel %vm2186, %v3709, %v3710
        %v3712 = vrot.slane %v3710, 4
        %v3713 = vrot.slane %v2908, 5
        %v3714 = vsel %vm2186, %v3712, %v3713
        %v3715 = vrot.slane %v3561, 5
        %v3716 = vrot.slane %v3715, 4
        %v3717 = vrot.slane %v2910, 5
        %v3718 = vsel %vm2186, %v3716, %v3717
        %v3719 = vrot.slane %v3717, 4
        %v3720 = vrot.slane %v2911, 5
        %v3721 = vsel %vm2186, %v3719, %v3720
        %s3722 = scalar_lea.vmem [#allocation8], 320
        %v3723 = vld [vmem:[%s3722] sm:$0xf]
        %v3724 = vld [vmem:[%s3722 + $0x4] sm:$0xf]
        %v3725 = vld [vmem:[%s3722 + $0x8] sm:$0xf]
        %v3726 = vld [vmem:[%s3722 + $0xc] sm:$0xf]
        %v3727 = vld [vmem:[%s3722 + $0x10] sm:$0xf]
        %v3728 = vld [vmem:[%s3722 + $0x14] sm:$0xf]
        %v3729 = vld [vmem:[%s3722 + $0x18] sm:$0xf]
        %v3730 = vld [vmem:[%s3722 + $0x1c] sm:$0xf]
        %v3731 = vld [vmem:[%s3722 + $0x20] sm:$0xf]
        %v3732 = vld [vmem:[%s3722 + $0x24] sm:$0xf]
        %v3733 = vld [vmem:[%s3722 + $0x28] sm:$0xf]
        %v3734 = vld [vmem:[%s3722 + $0x2c] sm:$0xf]
        %v3735 = vld [vmem:[%s3722 + $0x30] sm:$0xf]
        %v3736 = vld [vmem:[%s3722 + $0x34] sm:$0xf]
        %v3737 = vld [vmem:[%s3722 + $0x38] sm:$0xf]
        %v3738 = vld [vmem:[%s3722 + $0x3c] sm:$0xf]
        %v3739 = vunpack.c.l.b16 %v3613
        %v3740 = vunpack.c.l.b16 %v3616
        %v3741 = vunpack.c.l.b16 %v3620
        %v3742 = vunpack.c.l.b16 %v3623
        %v3743 = vunpack.c.l.b16 %v3627
        %v3744 = vunpack.c.l.b16 %v3630
        %v3745 = vunpack.c.l.b16 %v3634
        %v3746 = vunpack.c.l.b16 %v3637
        %v3747 = vunpack.c.l.b16 %v3641
        %v3748 = vunpack.c.l.b16 %v3644
        %v3749 = vunpack.c.l.b16 %v3648
        %v3750 = vunpack.c.l.b16 %v3651
        %v3751 = vunpack.c.l.b16 %v3655
        %v3752 = vunpack.c.l.b16 %v3658
        %v3753 = vunpack.c.l.b16 %v3662
        %v3754 = vunpack.c.l.b16 %v3665
        %v3755 = vunpack.c.l.b16 %v3669
        %v3756 = vunpack.c.l.b16 %v3672
        %v3757 = vunpack.c.l.b16 %v3676
        %v3758 = vunpack.c.l.b16 %v3679
        %v3759 = vunpack.c.l.b16 %v3683
        %v3760 = vunpack.c.l.b16 %v3686
        %v3761 = vunpack.c.l.b16 %v3690
        %v3762 = vunpack.c.l.b16 %v3693
        %v3763 = vunpack.c.l.b16 %v3697
        %v3764 = vunpack.c.l.b16 %v3700
        %v3765 = vunpack.c.l.b16 %v3704
        %v3766 = vunpack.c.l.b16 %v3707
        %v3767 = vunpack.c.l.b16 %v3711
        %v3768 = vunpack.c.l.b16 %v3714
        %v3769 = vunpack.c.l.b16 %v3718
        %v3770 = vunpack.c.l.b16 %v3721
        %v3771 = vpack.c.b16 %v3740, %v3739
        %v3772 = vpack.c.b16 %v3742, %v3741
        %v3773 = vpack.c.b16 %v3744, %v3743
        %v3774 = vpack.c.b16 %v3746, %v3745
        %v3775 = vpack.c.b16 %v3748, %v3747
        %v3776 = vpack.c.b16 %v3750, %v3749
        %v3777 = vpack.c.b16 %v3752, %v3751
        %v3778 = vpack.c.b16 %v3754, %v3753
        %v3779 = vpack.c.b16 %v3756, %v3755
        %v3780 = vpack.c.b16 %v3758, %v3757
        %v3781 = vpack.c.b16 %v3760, %v3759
        %v3782 = vpack.c.b16 %v3762, %v3761
        %v3783 = vpack.c.b16 %v3764, %v3763
        %v3784 = vpack.c.b16 %v3766, %v3765
        %v3785 = vpack.c.b16 %v3768, %v3767
        %v3786 = vpack.c.b16 %v3770, %v3769
        %v3819 = vunpack.c.l.b16 %v3723
        %v3820 = vunpack.c.l.b16 %v3724
        %v3821 = vunpack.c.l.b16 %v3725
        %v3822 = vunpack.c.l.b16 %v3726
        %v3823 = vunpack.c.l.b16 %v3727
        %v3824 = vunpack.c.l.b16 %v3728
        %v3825 = vunpack.c.l.b16 %v3729
        %v3826 = vunpack.c.l.b16 %v3730
        %v3827 = vunpack.c.l.b16 %v3731
        %v3828 = vunpack.c.l.b16 %v3732
        %v3829 = vunpack.c.l.b16 %v3733
        %v3830 = vunpack.c.l.b16 %v3734
        %v3831 = vunpack.c.l.b16 %v3735
        %v3832 = vunpack.c.l.b16 %v3736
        %v3833 = vunpack.c.l.b16 %v3737
        %v3834 = vunpack.c.l.b16 %v3738
        %v3835 = vpack.c.b16 %v3820, %v3819
        %v3836 = vpack.c.b16 %v3822, %v3821
        %v3837 = vpack.c.b16 %v3824, %v3823
        %v3838 = vpack.c.b16 %v3826, %v3825
        %v3839 = vpack.c.b16 %v3828, %v3827
        %v3840 = vpack.c.b16 %v3830, %v3829
        %v3841 = vpack.c.b16 %v3832, %v3831
        %v3842 = vpack.c.b16 %v3834, %v3833
        %3851 = vmatpush.bf16.msra.mxu0 %v3842
        %3852 = vmatpush.bf16.msra.mxu0 %v3841
        %3853 = vmatpush.bf16.msra.mxu0 %v3840
        %3854 = vmatpush.bf16.msra.mxu0 %v3839
        %3855 = vmatpush.bf16.msra.mxu0 %v3838
        %3856 = vmatpush.bf16.msra.mxu0 %v3837
        %3857 = vmatpush.bf16.msra.mxu0 %v3836
        %3858 = vmatpush.bf16.msra.mxu0 %v3835
        %3859 = vmatmul.bf16.gmra.mxu0 %v3771
        %v3860 = vpop.f32.mrf.mxu0
        %v3861 = vadd.f32 0.0, %v3860
        %v3862 = vpop.f32.mrf.mxu0
        %v3863 = vadd.f32 0.0, %v3862
        %3864 = vmatmul.bf16.gmra.mxu0 %v3772
        %v3865 = vpop.f32.mrf.mxu0
        %v3866 = vadd.f32 0.0, %v3865
        %v3867 = vpop.f32.mrf.mxu0
        %v3868 = vadd.f32 0.0, %v3867
        %3869 = vmatmul.bf16.gmra.mxu0 %v3773
        %v3870 = vpop.f32.mrf.mxu0
        %v3871 = vadd.f32 0.0, %v3870
        %v3872 = vpop.f32.mrf.mxu0
        %v3873 = vadd.f32 0.0, %v3872
        %3874 = vmatmul.bf16.gmra.mxu0 %v3774
        %v3875 = vpop.f32.mrf.mxu0
        %v3876 = vadd.f32 0.0, %v3875
        %v3877 = vpop.f32.mrf.mxu0
        %v3878 = vadd.f32 0.0, %v3877
        %3879 = vmatmul.bf16.gmra.mxu0 %v3775
        %v3880 = vpop.f32.mrf.mxu0
        %v3881 = vadd.f32 0.0, %v3880
        %v3882 = vpop.f32.mrf.mxu0
        %v3883 = vadd.f32 0.0, %v3882
        %3884 = vmatmul.bf16.gmra.mxu0 %v3776
        %v3885 = vpop.f32.mrf.mxu0
        %v3886 = vadd.f32 0.0, %v3885
        %v3887 = vpop.f32.mrf.mxu0
        %v3888 = vadd.f32 0.0, %v3887
        %3889 = vmatmul.bf16.gmra.mxu0 %v3777
        %v3890 = vpop.f32.mrf.mxu0
        %v3891 = vadd.f32 0.0, %v3890
        %v3892 = vpop.f32.mrf.mxu0
        %v3893 = vadd.f32 0.0, %v3892
        %3894 = vmatmul.bf16.gmra.mxu0 %v3778
        %v3895 = vpop.f32.mrf.mxu0
        %v3896 = vadd.f32 0.0, %v3895
        %v3897 = vpop.f32.mrf.mxu0
        %v3898 = vadd.f32 0.0, %v3897
        %3899 = vmatmul.bf16.gmra.mxu0 %v3779
        %v3900 = vpop.f32.mrf.mxu0
        %v3901 = vadd.f32 0.0, %v3900
        %v3902 = vpop.f32.mrf.mxu0
        %v3903 = vadd.f32 0.0, %v3902
        %3904 = vmatmul.bf16.gmra.mxu0 %v3780
        %v3905 = vpop.f32.mrf.mxu0
        %v3906 = vadd.f32 0.0, %v3905
        %v3907 = vpop.f32.mrf.mxu0
        %v3908 = vadd.f32 0.0, %v3907
        %3909 = vmatmul.bf16.gmra.mxu0 %v3781
        %v3910 = vpop.f32.mrf.mxu0
        %v3911 = vadd.f32 0.0, %v3910
        %v3912 = vpop.f32.mrf.mxu0
        %v3913 = vadd.f32 0.0, %v3912
        %3914 = vmatmul.bf16.gmra.mxu0 %v3782
        %v3915 = vpop.f32.mrf.mxu0
        %v3916 = vadd.f32 0.0, %v3915
        %v3917 = vpop.f32.mrf.mxu0
        %v3918 = vadd.f32 0.0, %v3917
        %3919 = vmatmul.bf16.gmra.mxu0 %v3783
        %v3920 = vpop.f32.mrf.mxu0
        %v3921 = vadd.f32 0.0, %v3920
        %v3922 = vpop.f32.mrf.mxu0
        %v3923 = vadd.f32 0.0, %v3922
        %3924 = vmatmul.bf16.gmra.mxu0 %v3784
        %v3925 = vpop.f32.mrf.mxu0
        %v3926 = vadd.f32 0.0, %v3925
        %v3927 = vpop.f32.mrf.mxu0
        %v3928 = vadd.f32 0.0, %v3927
        %3929 = vmatmul.bf16.gmra.mxu0 %v3785
        %v3930 = vpop.f32.mrf.mxu0
        %v3931 = vadd.f32 0.0, %v3930
        %v3932 = vpop.f32.mrf.mxu0
        %v3933 = vadd.f32 0.0, %v3932
        %3934 = vmatmul.bf16.gmra.mxu0 %v3786
        %v3935 = vpop.f32.mrf.mxu0
        %v3936 = vadd.f32 0.0, %v3935
        %v3937 = vpop.f32.mrf.mxu0
        %v3938 = vadd.f32 0.0, %v3937
        %3939 = vdwg.mxu0
        %v3940 = vadd.f32 %v3514, %v3861
        %v3941 = vadd.f32 %v3515, %v3863
        %v3942 = vadd.f32 %v3516, %v3866
        %v3943 = vadd.f32 %v3517, %v3868
        %v3944 = vadd.f32 %v3518, %v3871
        %v3945 = vadd.f32 %v3519, %v3873
        %v3946 = vadd.f32 %v3520, %v3876
        %v3947 = vadd.f32 %v3521, %v3878
        %v3948 = vadd.f32 %v3522, %v3881
        %v3949 = vadd.f32 %v3523, %v3883
        %v3950 = vadd.f32 %v3524, %v3886
        %v3951 = vadd.f32 %v3525, %v3888
        %v3952 = vadd.f32 %v3526, %v3891
        %v3953 = vadd.f32 %v3527, %v3893
        %v3954 = vadd.f32 %v3528, %v3896
        %v3955 = vadd.f32 %v3529, %v3898
        %v3956 = vadd.f32 %v3530, %v3901
        %v3957 = vadd.f32 %v3531, %v3903
        %v3958 = vadd.f32 %v3532, %v3906
        %v3959 = vadd.f32 %v3533, %v3908
        %v3960 = vadd.f32 %v3534, %v3911
        %v3961 = vadd.f32 %v3535, %v3913
        %v3962 = vadd.f32 %v3536, %v3916
        %v3963 = vadd.f32 %v3537, %v3918
        %v3964 = vadd.f32 %v3538, %v3921
        %v3965 = vadd.f32 %v3539, %v3923
        %v3966 = vadd.f32 %v3540, %v3926
        %v3967 = vadd.f32 %v3541, %v3928
        %v3968 = vadd.f32 %v3542, %v3931
        %v3969 = vadd.f32 %v3543, %v3933
        %v3970 = vadd.f32 %v3544, %v3936
        %v3971 = vadd.f32 %v3545, %v3938
        %s3972 = scalar_lea.vmem [#allocation3], 24
        %v3973 = vld [vmem:[%s3972] sm:$0xf]
        %v3974 = vld [vmem:[%s3972 + $0x4] sm:$0xf]
        %v3975 = vld [vmem:[%s3972 + $0xc] sm:$0xf]
        %v3976 = vld [vmem:[%s3972 + $0x10] sm:$0xf]
        %v3977 = vld [vmem:[%s3972 + $0x18] sm:$0xf]
        %v3978 = vld [vmem:[%s3972 + $0x1c] sm:$0xf]
        %v3979 = vld [vmem:[%s3972 + $0x24] sm:$0xf]
        %v3980 = vld [vmem:[%s3972 + $0x28] sm:$0xf]
        %v3981 = vld [vmem:[%s3972 + $0x30] sm:$0xf]
        %v3982 = vld [vmem:[%s3972 + $0x34] sm:$0xf]
        %v3983 = vld [vmem:[%s3972 + $0x3c] sm:$0xf]
        %v3984 = vld [vmem:[%s3972 + $0x40] sm:$0xf]
        %v3985 = vld [vmem:[%s3972 + $0x48] sm:$0xf]
        %v3986 = vld [vmem:[%s3972 + $0x4c] sm:$0xf]
        %v3987 = vld [vmem:[%s3972 + $0x54] sm:$0xf]
        %v3988 = vld [vmem:[%s3972 + $0x58] sm:$0xf]
        %v3989 = vld [vmem:[%s3972 + $0x60] sm:$0xf]
        %v3990 = vld [vmem:[%s3972 + $0x64] sm:$0xf]
        %v3991 = vld [vmem:[%s3972 + $0x6c] sm:$0xf]
        %v3992 = vld [vmem:[%s3972 + $0x70] sm:$0xf]
        %v3993 = vld [vmem:[%s3972 + $0x78] sm:$0xf]
        %v3994 = vld [vmem:[%s3972 + $0x7c] sm:$0xf]
        %v3995 = vld [vmem:[%s3972 + $0x84] sm:$0xf]
        %v3996 = vld [vmem:[%s3972 + $0x88] sm:$0xf]
        %v3997 = vld [vmem:[%s3972 + $0x90] sm:$0xf]
        %v3998 = vld [vmem:[%s3972 + $0x94] sm:$0xf]
        %v3999 = vld [vmem:[%s3972 + $0x9c] sm:$0xf]
        %v4000 = vld [vmem:[%s3972 + $0xa0] sm:$0xf]
        %v4001 = vld [vmem:[%s3972 + $0xa8] sm:$0xf]
        %v4002 = vld [vmem:[%s3972 + $0xac] sm:$0xf]
        %v4003 = vld [vmem:[%s3972 + $0xb4] sm:$0xf]
        %v4004 = vld [vmem:[%s3972 + $0xb8] sm:$0xf]
        %s4005 = scalar_lea.vmem [#allocation8], 384
        %v4006 = vld [vmem:[%s4005] sm:$0xf]
        %v4007 = vld [vmem:[%s4005 + $0x4] sm:$0xf]
        %v4008 = vld [vmem:[%s4005 + $0x8] sm:$0xf]
        %v4009 = vld [vmem:[%s4005 + $0xc] sm:$0xf]
        %v4010 = vld [vmem:[%s4005 + $0x10] sm:$0xf]
        %v4011 = vld [vmem:[%s4005 + $0x14] sm:$0xf]
        %v4012 = vld [vmem:[%s4005 + $0x18] sm:$0xf]
        %v4013 = vld [vmem:[%s4005 + $0x1c] sm:$0xf]
        %v4014 = vld [vmem:[%s4005 + $0x20] sm:$0xf]
        %v4015 = vld [vmem:[%s4005 + $0x24] sm:$0xf]
        %v4016 = vld [vmem:[%s4005 + $0x28] sm:$0xf]
        %v4017 = vld [vmem:[%s4005 + $0x2c] sm:$0xf]
        %v4018 = vld [vmem:[%s4005 + $0x30] sm:$0xf]
        %v4019 = vld [vmem:[%s4005 + $0x34] sm:$0xf]
        %v4020 = vld [vmem:[%s4005 + $0x38] sm:$0xf]
        %v4021 = vld [vmem:[%s4005 + $0x3c] sm:$0xf]
        %v4054 = vunpack.c.l.b16 %v3973
        %v4055 = vunpack.c.l.b16 %v3974
        %v4056 = vunpack.c.l.b16 %v3975
        %v4057 = vunpack.c.l.b16 %v3976
        %v4058 = vunpack.c.l.b16 %v3977
        %v4059 = vunpack.c.l.b16 %v3978
        %v4060 = vunpack.c.l.b16 %v3979
        %v4061 = vunpack.c.l.b16 %v3980
        %v4062 = vunpack.c.l.b16 %v3981
        %v4063 = vunpack.c.l.b16 %v3982
        %v4064 = vunpack.c.l.b16 %v3983
        %v4065 = vunpack.c.l.b16 %v3984
        %v4066 = vunpack.c.l.b16 %v3985
        %v4067 = vunpack.c.l.b16 %v3986
        %v4068 = vunpack.c.l.b16 %v3987
        %v4069 = vunpack.c.l.b16 %v3988
        %v4070 = vunpack.c.l.b16 %v3989
        %v4071 = vunpack.c.l.b16 %v3990
        %v4072 = vunpack.c.l.b16 %v3991
        %v4073 = vunpack.c.l.b16 %v3992
        %v4074 = vunpack.c.l.b16 %v3993
        %v4075 = vunpack.c.l.b16 %v3994
        %v4076 = vunpack.c.l.b16 %v3995
        %v4077 = vunpack.c.l.b16 %v3996
        %v4078 = vunpack.c.l.b16 %v3997
        %v4079 = vunpack.c.l.b16 %v3998
        %v4080 = vunpack.c.l.b16 %v3999
        %v4081 = vunpack.c.l.b16 %v4000
        %v4082 = vunpack.c.l.b16 %v4001
        %v4083 = vunpack.c.l.b16 %v4002
        %v4084 = vunpack.c.l.b16 %v4003
        %v4085 = vunpack.c.l.b16 %v4004
        %v4086 = vpack.c.b16 %v4055, %v4054
        %v4087 = vpack.c.b16 %v4057, %v4056
        %v4088 = vpack.c.b16 %v4059, %v4058
        %v4089 = vpack.c.b16 %v4061, %v4060
        %v4090 = vpack.c.b16 %v4063, %v4062
        %v4091 = vpack.c.b16 %v4065, %v4064
        %v4092 = vpack.c.b16 %v4067, %v4066
        %v4093 = vpack.c.b16 %v4069, %v4068
        %v4094 = vpack.c.b16 %v4071, %v4070
        %v4095 = vpack.c.b16 %v4073, %v4072
        %v4096 = vpack.c.b16 %v4075, %v4074
        %v4097 = vpack.c.b16 %v4077, %v4076
        %v4098 = vpack.c.b16 %v4079, %v4078
        %v4099 = vpack.c.b16 %v4081, %v4080
        %v4100 = vpack.c.b16 %v4083, %v4082
        %v4101 = vpack.c.b16 %v4085, %v4084
        %v4134 = vunpack.c.l.b16 %v4006
        %v4135 = vunpack.c.l.b16 %v4007
        %v4136 = vunpack.c.l.b16 %v4008
        %v4137 = vunpack.c.l.b16 %v4009
        %v4138 = vunpack.c.l.b16 %v4010
        %v4139 = vunpack.c.l.b16 %v4011
        %v4140 = vunpack.c.l.b16 %v4012
        %v4141 = vunpack.c.l.b16 %v4013
        %v4142 = vunpack.c.l.b16 %v4014
        %v4143 = vunpack.c.l.b16 %v4015
        %v4144 = vunpack.c.l.b16 %v4016
        %v4145 = vunpack.c.l.b16 %v4017
        %v4146 = vunpack.c.l.b16 %v4018
        %v4147 = vunpack.c.l.b16 %v4019
        %v4148 = vunpack.c.l.b16 %v4020
        %v4149 = vunpack.c.l.b16 %v4021
        %v4150 = vpack.c.b16 %v4135, %v4134
        %v4151 = vpack.c.b16 %v4137, %v4136
        %v4152 = vpack.c.b16 %v4139, %v4138
        %v4153 = vpack.c.b16 %v4141, %v4140
        %v4154 = vpack.c.b16 %v4143, %v4142
        %v4155 = vpack.c.b16 %v4145, %v4144
        %v4156 = vpack.c.b16 %v4147, %v4146
        %v4157 = vpack.c.b16 %v4149, %v4148
        %4166 = vmatpush.bf16.msra.mxu0 %v4157
        %4167 = vmatpush.bf16.msra.mxu0 %v4156
        %4168 = vmatpush.bf16.msra.mxu0 %v4155
        %4169 = vmatpush.bf16.msra.mxu0 %v4154
        %4170 = vmatpush.bf16.msra.mxu0 %v4153
        %4171 = vmatpush.bf16.msra.mxu0 %v4152
        %4172 = vmatpush.bf16.msra.mxu0 %v4151
        %4173 = vmatpush.bf16.msra.mxu0 %v4150
        %4174 = vmatmul.bf16.gmra.mxu0 %v4086
        %v4175 = vpop.f32.mrf.mxu0
        %v4176 = vadd.f32 0.0, %v4175
        %v4177 = vpop.f32.mrf.mxu0
        %v4178 = vadd.f32 0.0, %v4177
        %4179 = vmatmul.bf16.gmra.mxu0 %v4087
        %v4180 = vpop.f32.mrf.mxu0
        %v4181 = vadd.f32 0.0, %v4180
        %v4182 = vpop.f32.mrf.mxu0
        %v4183 = vadd.f32 0.0, %v4182
        %4184 = vmatmul.bf16.gmra.mxu0 %v4088
        %v4185 = vpop.f32.mrf.mxu0
        %v4186 = vadd.f32 0.0, %v4185
        %v4187 = vpop.f32.mrf.mxu0
        %v4188 = vadd.f32 0.0, %v4187
        %4189 = vmatmul.bf16.gmra.mxu0 %v4089
        %v4190 = vpop.f32.mrf.mxu0
        %v4191 = vadd.f32 0.0, %v4190
        %v4192 = vpop.f32.mrf.mxu0
        %v4193 = vadd.f32 0.0, %v4192
        %4194 = vmatmul.bf16.gmra.mxu0 %v4090
        %v4195 = vpop.f32.mrf.mxu0
        %v4196 = vadd.f32 0.0, %v4195
        %v4197 = vpop.f32.mrf.mxu0
        %v4198 = vadd.f32 0.0, %v4197
        %4199 = vmatmul.bf16.gmra.mxu0 %v4091
        %v4200 = vpop.f32.mrf.mxu0
        %v4201 = vadd.f32 0.0, %v4200
        %v4202 = vpop.f32.mrf.mxu0
        %v4203 = vadd.f32 0.0, %v4202
        %4204 = vmatmul.bf16.gmra.mxu0 %v4092
        %v4205 = vpop.f32.mrf.mxu0
        %v4206 = vadd.f32 0.0, %v4205
        %v4207 = vpop.f32.mrf.mxu0
        %v4208 = vadd.f32 0.0, %v4207
        %4209 = vmatmul.bf16.gmra.mxu0 %v4093
        %v4210 = vpop.f32.mrf.mxu0
        %v4211 = vadd.f32 0.0, %v4210
        %v4212 = vpop.f32.mrf.mxu0
        %v4213 = vadd.f32 0.0, %v4212
        %4214 = vmatmul.bf16.gmra.mxu0 %v4094
        %v4215 = vpop.f32.mrf.mxu0
        %v4216 = vadd.f32 0.0, %v4215
        %v4217 = vpop.f32.mrf.mxu0
        %v4218 = vadd.f32 0.0, %v4217
        %4219 = vmatmul.bf16.gmra.mxu0 %v4095
        %v4220 = vpop.f32.mrf.mxu0
        %v4221 = vadd.f32 0.0, %v4220
        %v4222 = vpop.f32.mrf.mxu0
        %v4223 = vadd.f32 0.0, %v4222
        %4224 = vmatmul.bf16.gmra.mxu0 %v4096
        %v4225 = vpop.f32.mrf.mxu0
        %v4226 = vadd.f32 0.0, %v4225
        %v4227 = vpop.f32.mrf.mxu0
        %v4228 = vadd.f32 0.0, %v4227
        %4229 = vmatmul.bf16.gmra.mxu0 %v4097
        %v4230 = vpop.f32.mrf.mxu0
        %v4231 = vadd.f32 0.0, %v4230
        %v4232 = vpop.f32.mrf.mxu0
        %v4233 = vadd.f32 0.0, %v4232
        %4234 = vmatmul.bf16.gmra.mxu0 %v4098
        %v4235 = vpop.f32.mrf.mxu0
        %v4236 = vadd.f32 0.0, %v4235
        %v4237 = vpop.f32.mrf.mxu0
        %v4238 = vadd.f32 0.0, %v4237
        %4239 = vmatmul.bf16.gmra.mxu0 %v4099
        %v4240 = vpop.f32.mrf.mxu0
        %v4241 = vadd.f32 0.0, %v4240
        %v4242 = vpop.f32.mrf.mxu0
        %v4243 = vadd.f32 0.0, %v4242
        %4244 = vmatmul.bf16.gmra.mxu0 %v4100
        %v4245 = vpop.f32.mrf.mxu0
        %v4246 = vadd.f32 0.0, %v4245
        %v4247 = vpop.f32.mrf.mxu0
        %v4248 = vadd.f32 0.0, %v4247
        %4249 = vmatmul.bf16.gmra.mxu0 %v4101
        %v4250 = vpop.f32.mrf.mxu0
        %v4251 = vadd.f32 0.0, %v4250
        %v4252 = vpop.f32.mrf.mxu0
        %v4253 = vadd.f32 0.0, %v4252
        %4254 = vdwg.mxu0
        %v4255 = vadd.f32 %v3940, %v4176
        %v4256 = vadd.f32 %v3941, %v4178
        %v4257 = vadd.f32 %v3942, %v4181
        %v4258 = vadd.f32 %v3943, %v4183
        %v4259 = vadd.f32 %v3944, %v4186
        %v4260 = vadd.f32 %v3945, %v4188
        %v4261 = vadd.f32 %v3946, %v4191
        %v4262 = vadd.f32 %v3947, %v4193
        %v4263 = vadd.f32 %v3948, %v4196
        %v4264 = vadd.f32 %v3949, %v4198
        %v4265 = vadd.f32 %v3950, %v4201
        %v4266 = vadd.f32 %v3951, %v4203
        %v4267 = vadd.f32 %v3952, %v4206
        %v4268 = vadd.f32 %v3953, %v4208
        %v4269 = vadd.f32 %v3954, %v4211
        %v4270 = vadd.f32 %v3955, %v4213
        %v4271 = vadd.f32 %v3956, %v4216
        %v4272 = vadd.f32 %v3957, %v4218
        %v4273 = vadd.f32 %v3958, %v4221
        %v4274 = vadd.f32 %v3959, %v4223
        %v4275 = vadd.f32 %v3960, %v4226
        %v4276 = vadd.f32 %v3961, %v4228
        %v4277 = vadd.f32 %v3962, %v4231
        %v4278 = vadd.f32 %v3963, %v4233
        %v4279 = vadd.f32 %v3964, %v4236
        %v4280 = vadd.f32 %v3965, %v4238
        %v4281 = vadd.f32 %v3966, %v4241
        %v4282 = vadd.f32 %v3967, %v4243
        %v4283 = vadd.f32 %v3968, %v4246
        %v4284 = vadd.f32 %v3969, %v4248
        %v4285 = vadd.f32 %v3970, %v4251
        %v4286 = vadd.f32 %v3971, %v4253
        %v4287 = vld [vmem:[%s3972] sm:$0xf]
        %v4288 = vld [vmem:[%s3972 + $0x4] sm:$0xf]
        %v4289 = vld [vmem:[%s3972 + $0x8] sm:$0x1]
        %v4290 = vld [vmem:[%s3972 + $0xc] sm:$0xf]
        %v4291 = vld [vmem:[%s3972 + $0x10] sm:$0xf]
        %v4292 = vld [vmem:[%s3972 + $0x14] sm:$0x1]
        %v4293 = vld [vmem:[%s3972 + $0x18] sm:$0xf]
        %v4294 = vld [vmem:[%s3972 + $0x1c] sm:$0xf]
        %v4295 = vld [vmem:[%s3972 + $0x20] sm:$0x1]
        %v4296 = vld [vmem:[%s3972 + $0x24] sm:$0xf]
        %v4297 = vld [vmem:[%s3972 + $0x28] sm:$0xf]
        %v4298 = vld [vmem:[%s3972 + $0x2c] sm:$0x1]
        %v4299 = vld [vmem:[%s3972 + $0x30] sm:$0xf]
        %v4300 = vld [vmem:[%s3972 + $0x34] sm:$0xf]
        %v4301 = vld [vmem:[%s3972 + $0x38] sm:$0x1]
        %v4302 = vld [vmem:[%s3972 + $0x3c] sm:$0xf]
        %v4303 = vld [vmem:[%s3972 + $0x40] sm:$0xf]
        %v4304 = vld [vmem:[%s3972 + $0x44] sm:$0x1]
        %v4305 = vld [vmem:[%s3972 + $0x48] sm:$0xf]
        %v4306 = vld [vmem:[%s3972 + $0x4c] sm:$0xf]
        %v4307 = vld [vmem:[%s3972 + $0x50] sm:$0x1]
        %v4308 = vld [vmem:[%s3972 + $0x54] sm:$0xf]
        %v4309 = vld [vmem:[%s3972 + $0x58] sm:$0xf]
        %v4310 = vld [vmem:[%s3972 + $0x5c] sm:$0x1]
        %v4311 = vld [vmem:[%s3972 + $0x60] sm:$0xf]
        %v4312 = vld [vmem:[%s3972 + $0x64] sm:$0xf]
        %v4313 = vld [vmem:[%s3972 + $0x68] sm:$0x1]
        %v4314 = vld [vmem:[%s3972 + $0x6c] sm:$0xf]
        %v4315 = vld [vmem:[%s3972 + $0x70] sm:$0xf]
        %v4316 = vld [vmem:[%s3972 + $0x74] sm:$0x1]
        %v4317 = vld [vmem:[%s3972 + $0x78] sm:$0xf]
        %v4318 = vld [vmem:[%s3972 + $0x7c] sm:$0xf]
        %v4319 = vld [vmem:[%s3972 + $0x80] sm:$0x1]
        %v4320 = vld [vmem:[%s3972 + $0x84] sm:$0xf]
        %v4321 = vld [vmem:[%s3972 + $0x88] sm:$0xf]
        %v4322 = vld [vmem:[%s3972 + $0x8c] sm:$0x1]
        %v4323 = vld [vmem:[%s3972 + $0x90] sm:$0xf]
        %v4324 = vld [vmem:[%s3972 + $0x94] sm:$0xf]
        %v4325 = vld [vmem:[%s3972 + $0x98] sm:$0x1]
        %v4326 = vld [vmem:[%s3972 + $0x9c] sm:$0xf]
        %v4327 = vld [vmem:[%s3972 + $0xa0] sm:$0xf]
        %v4328 = vld [vmem:[%s3972 + $0xa4] sm:$0x1]
        %v4329 = vld [vmem:[%s3972 + $0xa8] sm:$0xf]
        %v4330 = vld [vmem:[%s3972 + $0xac] sm:$0xf]
        %v4331 = vld [vmem:[%s3972 + $0xb0] sm:$0x1]
        %v4332 = vld [vmem:[%s3972 + $0xb4] sm:$0xf]
        %v4333 = vld [vmem:[%s3972 + $0xb8] sm:$0xf]
        %v4334 = vld [vmem:[%s3972 + $0xbc] sm:$0x1]
        %v4336 = vshrl.u32 %v4287, 16
        %v4338 = vrot.slane %v4336, 4
        %v4339 = vshll.u32 %v4287, 16
        %v4341 = vrot.slane %v4339, 5
        %v4342 = vor.u32 %v4338, %v4341
        %v4343 = vrot.slane %v4342, 4
        %v4345 = vshll.u32 %v4288, 16
        %v4347 = vrot.slane %v4345, 5
        %v4348 = vsel %vm1300, %v4343, %v4347
        %v4349 = vshrl.u32 %v4288, 16
        %v4351 = vrot.slane %v4349, 4
        %v4352 = vor.u32 %v4351, %v4347
        %v4353 = vrot.slane %v4352, 4
        %v4355 = vshll.u32 %v4289, 16
        %v4357 = vrot.slane %v4355, 5
        %v4358 = vsel %vm1300, %v4353, %v4357
        %v4360 = vshrl.u32 %v4290, 16
        %v4362 = vrot.slane %v4360, 4
        %v4363 = vshll.u32 %v4290, 16
        %v4365 = vrot.slane %v4363, 5
        %v4366 = vor.u32 %v4362, %v4365
        %v4367 = vrot.slane %v4366, 4
        %v4369 = vshll.u32 %v4291, 16
        %v4371 = vrot.slane %v4369, 5
        %v4372 = vsel %vm1300, %v4367, %v4371
        %v4373 = vshrl.u32 %v4291, 16
        %v4375 = vrot.slane %v4373, 4
        %v4376 = vor.u32 %v4375, %v4371
        %v4377 = vrot.slane %v4376, 4
        %v4379 = vshll.u32 %v4292, 16
        %v4381 = vrot.slane %v4379, 5
        %v4382 = vsel %vm1300, %v4377, %v4381
        %v4384 = vshrl.u32 %v4293, 16
        %v4386 = vrot.slane %v4384, 4
        %v4387 = vshll.u32 %v4293, 16
        %v4389 = vrot.slane %v4387, 5
        %v4390 = vor.u32 %v4386, %v4389
        %v4391 = vrot.slane %v4390, 4
        %v4393 = vshll.u32 %v4294, 16
        %v4395 = vrot.slane %v4393, 5
        %v4396 = vsel %vm1300, %v4391, %v4395
        %v4397 = vshrl.u32 %v4294, 16
        %v4399 = vrot.slane %v4397, 4
        %v4400 = vor.u32 %v4399, %v4395
        %v4401 = vrot.slane %v4400, 4
        %v4403 = vshll.u32 %v4295, 16
        %v4405 = vrot.slane %v4403, 5
        %v4406 = vsel %vm1300, %v4401, %v4405
        %v4408 = vshrl.u32 %v4296, 16
        %v4410 = vrot.slane %v4408, 4
        %v4411 = vshll.u32 %v4296, 16
        %v4413 = vrot.slane %v4411, 5
        %v4414 = vor.u32 %v4410, %v4413
        %v4415 = vrot.slane %v4414, 4
        %v4417 = vshll.u32 %v4297, 16
        %v4419 = vrot.slane %v4417, 5
        %v4420 = vsel %vm1300, %v4415, %v4419
        %v4421 = vshrl.u32 %v4297, 16
        %v4423 = vrot.slane %v4421, 4
        %v4424 = vor.u32 %v4423, %v4419
        %v4425 = vrot.slane %v4424, 4
        %v4427 = vshll.u32 %v4298, 16
        %v4429 = vrot.slane %v4427, 5
        %v4430 = vsel %vm1300, %v4425, %v4429
        %v4432 = vshrl.u32 %v4299, 16
        %v4434 = vrot.slane %v4432, 4
        %v4435 = vshll.u32 %v4299, 16
        %v4437 = vrot.slane %v4435, 5
        %v4438 = vor.u32 %v4434, %v4437
        %v4439 = vrot.slane %v4438, 4
        %v4441 = vshll.u32 %v4300, 16
        %v4443 = vrot.slane %v4441, 5
        %v4444 = vsel %vm1300, %v4439, %v4443
        %v4445 = vshrl.u32 %v4300, 16
        %v4447 = vrot.slane %v4445, 4
        %v4448 = vor.u32 %v4447, %v4443
        %v4449 = vrot.slane %v4448, 4
        %v4451 = vshll.u32 %v4301, 16
        %v4453 = vrot.slane %v4451, 5
        %v4454 = vsel %vm1300, %v4449, %v4453
        %v4456 = vshrl.u32 %v4302, 16
        %v4458 = vrot.slane %v4456, 4
        %v4459 = vshll.u32 %v4302, 16
        %v4461 = vrot.slane %v4459, 5
        %v4462 = vor.u32 %v4458, %v4461
        %v4463 = vrot.slane %v4462, 4
        %v4465 = vshll.u32 %v4303, 16
        %v4467 = vrot.slane %v4465, 5
        %v4468 = vsel %vm1300, %v4463, %v4467
        %v4469 = vshrl.u32 %v4303, 16
        %v4471 = vrot.slane %v4469, 4
        %v4472 = vor.u32 %v4471, %v4467
        %v4473 = vrot.slane %v4472, 4
        %v4475 = vshll.u32 %v4304, 16
        %v4477 = vrot.slane %v4475, 5
        %v4478 = vsel %vm1300, %v4473, %v4477
        %v4480 = vshrl.u32 %v4305, 16
        %v4482 = vrot.slane %v4480, 4
        %v4483 = vshll.u32 %v4305, 16
        %v4485 = vrot.slane %v4483, 5
        %v4486 = vor.u32 %v4482, %v4485
        %v4487 = vrot.slane %v4486, 4
        %v4489 = vshll.u32 %v4306, 16
        %v4491 = vrot.slane %v4489, 5
        %v4492 = vsel %vm1300, %v4487, %v4491
        %v4493 = vshrl.u32 %v4306, 16
        %v4495 = vrot.slane %v4493, 4
        %v4496 = vor.u32 %v4495, %v4491
        %v4497 = vrot.slane %v4496, 4
        %v4499 = vshll.u32 %v4307, 16
        %v4501 = vrot.slane %v4499, 5
        %v4502 = vsel %vm1300, %v4497, %v4501
        %v4504 = vshrl.u32 %v4308, 16
        %v4506 = vrot.slane %v4504, 4
        %v4507 = vshll.u32 %v4308, 16
        %v4509 = vrot.slane %v4507, 5
        %v4510 = vor.u32 %v4506, %v4509
        %v4511 = vrot.slane %v4510, 4
        %v4513 = vshll.u32 %v4309, 16
        %v4515 = vrot.slane %v4513, 5
        %v4516 = vsel %vm1300, %v4511, %v4515
        %v4517 = vshrl.u32 %v4309, 16
        %v4519 = vrot.slane %v4517, 4
        %v4520 = vor.u32 %v4519, %v4515
        %v4521 = vrot.slane %v4520, 4
        %v4523 = vshll.u32 %v4310, 16
        %v4525 = vrot.slane %v4523, 5
        %v4526 = vsel %vm1300, %v4521, %v4525
        %v4528 = vshrl.u32 %v4311, 16
        %v4530 = vrot.slane %v4528, 4
        %v4531 = vshll.u32 %v4311, 16
        %v4533 = vrot.slane %v4531, 5
        %v4534 = vor.u32 %v4530, %v4533
        %v4535 = vrot.slane %v4534, 4
        %v4537 = vshll.u32 %v4312, 16
        %v4539 = vrot.slane %v4537, 5
        %v4540 = vsel %vm1300, %v4535, %v4539
        %v4541 = vshrl.u32 %v4312, 16
        %v4543 = vrot.slane %v4541, 4
        %v4544 = vor.u32 %v4543, %v4539
        %v4545 = vrot.slane %v4544, 4
        %v4547 = vshll.u32 %v4313, 16
        %v4549 = vrot.slane %v4547, 5
        %v4550 = vsel %vm1300, %v4545, %v4549
        %v4552 = vshrl.u32 %v4314, 16
        %v4554 = vrot.slane %v4552, 4
        %v4555 = vshll.u32 %v4314, 16
        %v4557 = vrot.slane %v4555, 5
        %v4558 = vor.u32 %v4554, %v4557
        %v4559 = vrot.slane %v4558, 4
        %v4561 = vshll.u32 %v4315, 16
        %v4563 = vrot.slane %v4561, 5
        %v4564 = vsel %vm1300, %v4559, %v4563
        %v4565 = vshrl.u32 %v4315, 16
        %v4567 = vrot.slane %v4565, 4
        %v4568 = vor.u32 %v4567, %v4563
        %v4569 = vrot.slane %v4568, 4
        %v4571 = vshll.u32 %v4316, 16
        %v4573 = vrot.slane %v4571, 5
        %v4574 = vsel %vm1300, %v4569, %v4573
        %v4576 = vshrl.u32 %v4317, 16
        %v4578 = vrot.slane %v4576, 4
        %v4579 = vshll.u32 %v4317, 16
        %v4581 = vrot.slane %v4579, 5
        %v4582 = vor.u32 %v4578, %v4581
        %v4583 = vrot.slane %v4582, 4
        %v4585 = vshll.u32 %v4318, 16
        %v4587 = vrot.slane %v4585, 5
        %v4588 = vsel %vm1300, %v4583, %v4587
        %v4589 = vshrl.u32 %v4318, 16
        %v4591 = vrot.slane %v4589, 4
        %v4592 = vor.u32 %v4591, %v4587
        %v4593 = vrot.slane %v4592, 4
        %v4595 = vshll.u32 %v4319, 16
        %v4597 = vrot.slane %v4595, 5
        %v4598 = vsel %vm1300, %v4593, %v4597
        %v4600 = vshrl.u32 %v4320, 16
        %v4602 = vrot.slane %v4600, 4
        %v4603 = vshll.u32 %v4320, 16
        %v4605 = vrot.slane %v4603, 5
        %v4606 = vor.u32 %v4602, %v4605
        %v4607 = vrot.slane %v4606, 4
        %v4609 = vshll.u32 %v4321, 16
        %v4611 = vrot.slane %v4609, 5
        %v4612 = vsel %vm1300, %v4607, %v4611
        %v4613 = vshrl.u32 %v4321, 16
        %v4615 = vrot.slane %v4613, 4
        %v4616 = vor.u32 %v4615, %v4611
        %v4617 = vrot.slane %v4616, 4
        %v4619 = vshll.u32 %v4322, 16
        %v4621 = vrot.slane %v4619, 5
        %v4622 = vsel %vm1300, %v4617, %v4621
        %v4624 = vshrl.u32 %v4323, 16
        %v4626 = vrot.slane %v4624, 4
        %v4627 = vshll.u32 %v4323, 16
        %v4629 = vrot.slane %v4627, 5
        %v4630 = vor.u32 %v4626, %v4629
        %v4631 = vrot.slane %v4630, 4
        %v4633 = vshll.u32 %v4324, 16
        %v4635 = vrot.slane %v4633, 5
        %v4636 = vsel %vm1300, %v4631, %v4635
        %v4637 = vshrl.u32 %v4324, 16
        %v4639 = vrot.slane %v4637, 4
        %v4640 = vor.u32 %v4639, %v4635
        %v4641 = vrot.slane %v4640, 4
        %v4643 = vshll.u32 %v4325, 16
        %v4645 = vrot.slane %v4643, 5
        %v4646 = vsel %vm1300, %v4641, %v4645
        %v4648 = vshrl.u32 %v4326, 16
        %v4650 = vrot.slane %v4648, 4
        %v4651 = vshll.u32 %v4326, 16
        %v4653 = vrot.slane %v4651, 5
        %v4654 = vor.u32 %v4650, %v4653
        %v4655 = vrot.slane %v4654, 4
        %v4657 = vshll.u32 %v4327, 16
        %v4659 = vrot.slane %v4657, 5
        %v4660 = vsel %vm1300, %v4655, %v4659
        %v4661 = vshrl.u32 %v4327, 16
        %v4663 = vrot.slane %v4661, 4
        %v4664 = vor.u32 %v4663, %v4659
        %v4665 = vrot.slane %v4664, 4
        %v4667 = vshll.u32 %v4328, 16
        %v4669 = vrot.slane %v4667, 5
        %v4670 = vsel %vm1300, %v4665, %v4669
        %v4672 = vshrl.u32 %v4329, 16
        %v4674 = vrot.slane %v4672, 4
        %v4675 = vshll.u32 %v4329, 16
        %v4677 = vrot.slane %v4675, 5
        %v4678 = vor.u32 %v4674, %v4677
        %v4679 = vrot.slane %v4678, 4
        %v4681 = vshll.u32 %v4330, 16
        %v4683 = vrot.slane %v4681, 5
        %v4684 = vsel %vm1300, %v4679, %v4683
        %v4685 = vshrl.u32 %v4330, 16
        %v4687 = vrot.slane %v4685, 4
        %v4688 = vor.u32 %v4687, %v4683
        %v4689 = vrot.slane %v4688, 4
        %v4691 = vshll.u32 %v4331, 16
        %v4693 = vrot.slane %v4691, 5
        %v4694 = vsel %vm1300, %v4689, %v4693
        %v4696 = vshrl.u32 %v4332, 16
        %v4698 = vrot.slane %v4696, 4
        %v4699 = vshll.u32 %v4332, 16
        %v4701 = vrot.slane %v4699, 5
        %v4702 = vor.u32 %v4698, %v4701
        %v4703 = vrot.slane %v4702, 4
        %v4705 = vshll.u32 %v4333, 16
        %v4707 = vrot.slane %v4705, 5
        %v4708 = vsel %vm1300, %v4703, %v4707
        %v4709 = vshrl.u32 %v4333, 16
        %v4711 = vrot.slane %v4709, 4
        %v4712 = vor.u32 %v4711, %v4707
        %v4713 = vrot.slane %v4712, 4
        %v4715 = vshll.u32 %v4334, 16
        %v4717 = vrot.slane %v4715, 5
        %v4718 = vsel %vm1300, %v4713, %v4717
        %s4719 = scalar_lea.vmem [#allocation8], 448
        %v4720 = vld [vmem:[%s4719] sm:$0xf]
        %v4721 = vld [vmem:[%s4719 + $0x4] sm:$0xf]
        %v4722 = vld [vmem:[%s4719 + $0x8] sm:$0xf]
        %v4723 = vld [vmem:[%s4719 + $0xc] sm:$0xf]
        %v4724 = vld [vmem:[%s4719 + $0x10] sm:$0xf]
        %v4725 = vld [vmem:[%s4719 + $0x14] sm:$0xf]
        %v4726 = vld [vmem:[%s4719 + $0x18] sm:$0xf]
        %v4727 = vld [vmem:[%s4719 + $0x1c] sm:$0xf]
        %v4728 = vld [vmem:[%s4719 + $0x20] sm:$0xf]
        %v4729 = vld [vmem:[%s4719 + $0x24] sm:$0xf]
        %v4730 = vld [vmem:[%s4719 + $0x28] sm:$0xf]
        %v4731 = vld [vmem:[%s4719 + $0x2c] sm:$0xf]
        %v4732 = vld [vmem:[%s4719 + $0x30] sm:$0xf]
        %v4733 = vld [vmem:[%s4719 + $0x34] sm:$0xf]
        %v4734 = vld [vmem:[%s4719 + $0x38] sm:$0xf]
        %v4735 = vld [vmem:[%s4719 + $0x3c] sm:$0xf]
        %v4736 = vunpack.c.l.b16 %v4348
        %v4737 = vunpack.c.l.b16 %v4358
        %v4738 = vunpack.c.l.b16 %v4372
        %v4739 = vunpack.c.l.b16 %v4382
        %v4740 = vunpack.c.l.b16 %v4396
        %v4741 = vunpack.c.l.b16 %v4406
        %v4742 = vunpack.c.l.b16 %v4420
        %v4743 = vunpack.c.l.b16 %v4430
        %v4744 = vunpack.c.l.b16 %v4444
        %v4745 = vunpack.c.l.b16 %v4454
        %v4746 = vunpack.c.l.b16 %v4468
        %v4747 = vunpack.c.l.b16 %v4478
        %v4748 = vunpack.c.l.b16 %v4492
        %v4749 = vunpack.c.l.b16 %v4502
        %v4750 = vunpack.c.l.b16 %v4516
        %v4751 = vunpack.c.l.b16 %v4526
        %v4752 = vunpack.c.l.b16 %v4540
        %v4753 = vunpack.c.l.b16 %v4550
        %v4754 = vunpack.c.l.b16 %v4564
        %v4755 = vunpack.c.l.b16 %v4574
        %v4756 = vunpack.c.l.b16 %v4588
        %v4757 = vunpack.c.l.b16 %v4598
        %v4758 = vunpack.c.l.b16 %v4612
        %v4759 = vunpack.c.l.b16 %v4622
        %v4760 = vunpack.c.l.b16 %v4636
        %v4761 = vunpack.c.l.b16 %v4646
        %v4762 = vunpack.c.l.b16 %v4660
        %v4763 = vunpack.c.l.b16 %v4670
        %v4764 = vunpack.c.l.b16 %v4684
        %v4765 = vunpack.c.l.b16 %v4694
        %v4766 = vunpack.c.l.b16 %v4708
        %v4767 = vunpack.c.l.b16 %v4718
        %v4768 = vpack.c.b16 %v4737, %v4736
        %v4769 = vpack.c.b16 %v4739, %v4738
        %v4770 = vpack.c.b16 %v4741, %v4740
        %v4771 = vpack.c.b16 %v4743, %v4742
        %v4772 = vpack.c.b16 %v4745, %v4744
        %v4773 = vpack.c.b16 %v4747, %v4746
        %v4774 = vpack.c.b16 %v4749, %v4748
        %v4775 = vpack.c.b16 %v4751, %v4750
        %v4776 = vpack.c.b16 %v4753, %v4752
        %v4777 = vpack.c.b16 %v4755, %v4754
        %v4778 = vpack.c.b16 %v4757, %v4756
        %v4779 = vpack.c.b16 %v4759, %v4758
        %v4780 = vpack.c.b16 %v4761, %v4760
        %v4781 = vpack.c.b16 %v4763, %v4762
        %v4782 = vpack.c.b16 %v4765, %v4764
        %v4783 = vpack.c.b16 %v4767, %v4766
        %v4816 = vunpack.c.l.b16 %v4720
        %v4817 = vunpack.c.l.b16 %v4721
        %v4818 = vunpack.c.l.b16 %v4722
        %v4819 = vunpack.c.l.b16 %v4723
        %v4820 = vunpack.c.l.b16 %v4724
        %v4821 = vunpack.c.l.b16 %v4725
        %v4822 = vunpack.c.l.b16 %v4726
        %v4823 = vunpack.c.l.b16 %v4727
        %v4824 = vunpack.c.l.b16 %v4728
        %v4825 = vunpack.c.l.b16 %v4729
        %v4826 = vunpack.c.l.b16 %v4730
        %v4827 = vunpack.c.l.b16 %v4731
        %v4828 = vunpack.c.l.b16 %v4732
        %v4829 = vunpack.c.l.b16 %v4733
        %v4830 = vunpack.c.l.b16 %v4734
        %v4831 = vunpack.c.l.b16 %v4735
        %v4832 = vpack.c.b16 %v4817, %v4816
        %v4833 = vpack.c.b16 %v4819, %v4818
        %v4834 = vpack.c.b16 %v4821, %v4820
        %v4835 = vpack.c.b16 %v4823, %v4822
        %v4836 = vpack.c.b16 %v4825, %v4824
        %v4837 = vpack.c.b16 %v4827, %v4826
        %v4838 = vpack.c.b16 %v4829, %v4828
        %v4839 = vpack.c.b16 %v4831, %v4830
        %4848 = vmatpush.bf16.msra.mxu0 %v4839
        %4849 = vmatpush.bf16.msra.mxu0 %v4838
        %4850 = vmatpush.bf16.msra.mxu0 %v4837
        %4851 = vmatpush.bf16.msra.mxu0 %v4836
        %4852 = vmatpush.bf16.msra.mxu0 %v4835
        %4853 = vmatpush.bf16.msra.mxu0 %v4834
        %4854 = vmatpush.bf16.msra.mxu0 %v4833
        %4855 = vmatpush.bf16.msra.mxu0 %v4832
        %4856 = vmatmul.bf16.gmra.mxu0 %v4768
        %v4857 = vpop.f32.mrf.mxu0
        %v4858 = vadd.f32 0.0, %v4857
        %v4859 = vpop.f32.mrf.mxu0
        %v4860 = vadd.f32 0.0, %v4859
        %4861 = vmatmul.bf16.gmra.mxu0 %v4769
        %v4862 = vpop.f32.mrf.mxu0
        %v4863 = vadd.f32 0.0, %v4862
        %v4864 = vpop.f32.mrf.mxu0
        %v4865 = vadd.f32 0.0, %v4864
        %4866 = vmatmul.bf16.gmra.mxu0 %v4770
        %v4867 = vpop.f32.mrf.mxu0
        %v4868 = vadd.f32 0.0, %v4867
        %v4869 = vpop.f32.mrf.mxu0
        %v4870 = vadd.f32 0.0, %v4869
        %4871 = vmatmul.bf16.gmra.mxu0 %v4771
        %v4872 = vpop.f32.mrf.mxu0
        %v4873 = vadd.f32 0.0, %v4872
        %v4874 = vpop.f32.mrf.mxu0
        %v4875 = vadd.f32 0.0, %v4874
        %4876 = vmatmul.bf16.gmra.mxu0 %v4772
        %v4877 = vpop.f32.mrf.mxu0
        %v4878 = vadd.f32 0.0, %v4877
        %v4879 = vpop.f32.mrf.mxu0
        %v4880 = vadd.f32 0.0, %v4879
        %4881 = vmatmul.bf16.gmra.mxu0 %v4773
        %v4882 = vpop.f32.mrf.mxu0
        %v4883 = vadd.f32 0.0, %v4882
        %v4884 = vpop.f32.mrf.mxu0
        %v4885 = vadd.f32 0.0, %v4884
        %4886 = vmatmul.bf16.gmra.mxu0 %v4774
        %v4887 = vpop.f32.mrf.mxu0
        %v4888 = vadd.f32 0.0, %v4887
        %v4889 = vpop.f32.mrf.mxu0
        %v4890 = vadd.f32 0.0, %v4889
        %4891 = vmatmul.bf16.gmra.mxu0 %v4775
        %v4892 = vpop.f32.mrf.mxu0
        %v4893 = vadd.f32 0.0, %v4892
        %v4894 = vpop.f32.mrf.mxu0
        %v4895 = vadd.f32 0.0, %v4894
        %4896 = vmatmul.bf16.gmra.mxu0 %v4776
        %v4897 = vpop.f32.mrf.mxu0
        %v4898 = vadd.f32 0.0, %v4897
        %v4899 = vpop.f32.mrf.mxu0
        %v4900 = vadd.f32 0.0, %v4899
        %4901 = vmatmul.bf16.gmra.mxu0 %v4777
        %v4902 = vpop.f32.mrf.mxu0
        %v4903 = vadd.f32 0.0, %v4902
        %v4904 = vpop.f32.mrf.mxu0
        %v4905 = vadd.f32 0.0, %v4904
        %4906 = vmatmul.bf16.gmra.mxu0 %v4778
        %v4907 = vpop.f32.mrf.mxu0
        %v4908 = vadd.f32 0.0, %v4907
        %v4909 = vpop.f32.mrf.mxu0
        %v4910 = vadd.f32 0.0, %v4909
        %4911 = vmatmul.bf16.gmra.mxu0 %v4779
        %v4912 = vpop.f32.mrf.mxu0
        %v4913 = vadd.f32 0.0, %v4912
        %v4914 = vpop.f32.mrf.mxu0
        %v4915 = vadd.f32 0.0, %v4914
        %4916 = vmatmul.bf16.gmra.mxu0 %v4780
        %v4917 = vpop.f32.mrf.mxu0
        %v4918 = vadd.f32 0.0, %v4917
        %v4919 = vpop.f32.mrf.mxu0
        %v4920 = vadd.f32 0.0, %v4919
        %4921 = vmatmul.bf16.gmra.mxu0 %v4781
        %v4922 = vpop.f32.mrf.mxu0
        %v4923 = vadd.f32 0.0, %v4922
        %v4924 = vpop.f32.mrf.mxu0
        %v4925 = vadd.f32 0.0, %v4924
        %4926 = vmatmul.bf16.gmra.mxu0 %v4782
        %v4927 = vpop.f32.mrf.mxu0
        %v4928 = vadd.f32 0.0, %v4927
        %v4929 = vpop.f32.mrf.mxu0
        %v4930 = vadd.f32 0.0, %v4929
        %4931 = vmatmul.bf16.gmra.mxu0 %v4783
        %v4932 = vpop.f32.mrf.mxu0
        %v4933 = vadd.f32 0.0, %v4932
        %v4934 = vpop.f32.mrf.mxu0
        %v4935 = vadd.f32 0.0, %v4934
        %4936 = vdwg.mxu0
        %v4937 = vadd.f32 %v4255, %v4858
        %v4938 = vadd.f32 %v4256, %v4860
        %v4939 = vadd.f32 %v4257, %v4863
        %v4940 = vadd.f32 %v4258, %v4865
        %v4941 = vadd.f32 %v4259, %v4868
        %v4942 = vadd.f32 %v4260, %v4870
        %v4943 = vadd.f32 %v4261, %v4873
        %v4944 = vadd.f32 %v4262, %v4875
        %v4945 = vadd.f32 %v4263, %v4878
        %v4946 = vadd.f32 %v4264, %v4880
        %v4947 = vadd.f32 %v4265, %v4883
        %v4948 = vadd.f32 %v4266, %v4885
        %v4949 = vadd.f32 %v4267, %v4888
        %v4950 = vadd.f32 %v4268, %v4890
        %v4951 = vadd.f32 %v4269, %v4893
        %v4952 = vadd.f32 %v4270, %v4895
        %v4953 = vadd.f32 %v4271, %v4898
        %v4954 = vadd.f32 %v4272, %v4900
        %v4955 = vadd.f32 %v4273, %v4903
        %v4956 = vadd.f32 %v4274, %v4905
        %v4957 = vadd.f32 %v4275, %v4908
        %v4958 = vadd.f32 %v4276, %v4910
        %v4959 = vadd.f32 %v4277, %v4913
        %v4960 = vadd.f32 %v4278, %v4915
        %v4961 = vadd.f32 %v4279, %v4918
        %v4962 = vadd.f32 %v4280, %v4920
        %v4963 = vadd.f32 %v4281, %v4923
        %v4964 = vadd.f32 %v4282, %v4925
        %v4965 = vadd.f32 %v4283, %v4928
        %v4966 = vadd.f32 %v4284, %v4930
        %v4967 = vadd.f32 %v4285, %v4933
        %v4968 = vadd.f32 %v4286, %v4935
        %v4969 = vld [vmem:[%s3972] sm:$0xe]
        %v4970 = vld [vmem:[%s3972 + $0xc] sm:$0xe]
        %v4971 = vld [vmem:[%s3972 + $0x18] sm:$0xe]
        %v4972 = vld [vmem:[%s3972 + $0x24] sm:$0xe]
        %v4973 = vld [vmem:[%s3972 + $0x30] sm:$0xe]
        %v4974 = vld [vmem:[%s3972 + $0x3c] sm:$0xe]
        %v4975 = vld [vmem:[%s3972 + $0x48] sm:$0xe]
        %v4976 = vld [vmem:[%s3972 + $0x54] sm:$0xe]
        %v4977 = vld [vmem:[%s3972 + $0x60] sm:$0xe]
        %v4978 = vld [vmem:[%s3972 + $0x6c] sm:$0xe]
        %v4979 = vld [vmem:[%s3972 + $0x78] sm:$0xe]
        %v4980 = vld [vmem:[%s3972 + $0x84] sm:$0xe]
        %v4981 = vld [vmem:[%s3972 + $0x90] sm:$0xe]
        %v4982 = vld [vmem:[%s3972 + $0x9c] sm:$0xe]
        %v4983 = vld [vmem:[%s3972 + $0xa8] sm:$0xe]
        %v4984 = vld [vmem:[%s3972 + $0xb4] sm:$0xe]
        %v5033 = vrot.slane %v4969, 5
        %v5034 = vrot.slane %v5033, 4
        %v5035 = vrot.slane %v4288, 5
        %v5036 = vsel %vm2186, %v5034, %v5035
        %v5037 = vrot.slane %v5035, 4
        %v5038 = vrot.slane %v4289, 5
        %v5039 = vsel %vm2186, %v5037, %v5038
        %v5040 = vrot.slane %v4970, 5
        %v5041 = vrot.slane %v5040, 4
        %v5042 = vrot.slane %v4291, 5
        %v5043 = vsel %vm2186, %v5041, %v5042
        %v5044 = vrot.slane %v5042, 4
        %v5045 = vrot.slane %v4292, 5
        %v5046 = vsel %vm2186, %v5044, %v5045
        %v5047 = vrot.slane %v4971, 5
        %v5048 = vrot.slane %v5047, 4
        %v5049 = vrot.slane %v4294, 5
        %v5050 = vsel %vm2186, %v5048, %v5049
        %v5051 = vrot.slane %v5049, 4
        %v5052 = vrot.slane %v4295, 5
        %v5053 = vsel %vm2186, %v5051, %v5052
        %v5054 = vrot.slane %v4972, 5
        %v5055 = vrot.slane %v5054, 4
        %v5056 = vrot.slane %v4297, 5
        %v5057 = vsel %vm2186, %v5055, %v5056
        %v5058 = vrot.slane %v5056, 4
        %v5059 = vrot.slane %v4298, 5
        %v5060 = vsel %vm2186, %v5058, %v5059
        %v5061 = vrot.slane %v4973, 5
        %v5062 = vrot.slane %v5061, 4
        %v5063 = vrot.slane %v4300, 5
        %v5064 = vsel %vm2186, %v5062, %v5063
        %v5065 = vrot.slane %v5063, 4
        %v5066 = vrot.slane %v4301, 5
        %v5067 = vsel %vm2186, %v5065, %v5066
        %v5068 = vrot.slane %v4974, 5
        %v5069 = vrot.slane %v5068, 4
        %v5070 = vrot.slane %v4303, 5
        %v5071 = vsel %vm2186, %v5069, %v5070
        %v5072 = vrot.slane %v5070, 4
        %v5073 = vrot.slane %v4304, 5
        %v5074 = vsel %vm2186, %v5072, %v5073
        %v5075 = vrot.slane %v4975, 5
        %v5076 = vrot.slane %v5075, 4
        %v5077 = vrot.slane %v4306, 5
        %v5078 = vsel %vm2186, %v5076, %v5077
        %v5079 = vrot.slane %v5077, 4
        %v5080 = vrot.slane %v4307, 5
        %v5081 = vsel %vm2186, %v5079, %v5080
        %v5082 = vrot.slane %v4976, 5
        %v5083 = vrot.slane %v5082, 4
        %v5084 = vrot.slane %v4309, 5
        %v5085 = vsel %vm2186, %v5083, %v5084
        %v5086 = vrot.slane %v5084, 4
        %v5087 = vrot.slane %v4310, 5
        %v5088 = vsel %vm2186, %v5086, %v5087
        %v5089 = vrot.slane %v4977, 5
        %v5090 = vrot.slane %v5089, 4
        %v5091 = vrot.slane %v4312, 5
        %v5092 = vsel %vm2186, %v5090, %v5091
        %v5093 = vrot.slane %v5091, 4
        %v5094 = vrot.slane %v4313, 5
        %v5095 = vsel %vm2186, %v5093, %v5094
        %v5096 = vrot.slane %v4978, 5
        %v5097 = vrot.slane %v5096, 4
        %v5098 = vrot.slane %v4315, 5
        %v5099 = vsel %vm2186, %v5097, %v5098
        %v5100 = vrot.slane %v5098, 4
        %v5101 = vrot.slane %v4316, 5
        %v5102 = vsel %vm2186, %v5100, %v5101
        %v5103 = vrot.slane %v4979, 5
        %v5104 = vrot.slane %v5103, 4
        %v5105 = vrot.slane %v4318, 5
        %v5106 = vsel %vm2186, %v5104, %v5105
        %v5107 = vrot.slane %v5105, 4
        %v5108 = vrot.slane %v4319, 5
        %v5109 = vsel %vm2186, %v5107, %v5108
        %v5110 = vrot.slane %v4980, 5
        %v5111 = vrot.slane %v5110, 4
        %v5112 = vrot.slane %v4321, 5
        %v5113 = vsel %vm2186, %v5111, %v5112
        %v5114 = vrot.slane %v5112, 4
        %v5115 = vrot.slane %v4322, 5
        %v5116 = vsel %vm2186, %v5114, %v5115
        %v5117 = vrot.slane %v4981, 5
        %v5118 = vrot.slane %v5117, 4
        %v5119 = vrot.slane %v4324, 5
        %v5120 = vsel %vm2186, %v5118, %v5119
        %v5121 = vrot.slane %v5119, 4
        %v5122 = vrot.slane %v4325, 5
        %v5123 = vsel %vm2186, %v5121, %v5122
        %v5124 = vrot.slane %v4982, 5
        %v5125 = vrot.slane %v5124, 4
        %v5126 = vrot.slane %v4327, 5
        %v5127 = vsel %vm2186, %v5125, %v5126
        %v5128 = vrot.slane %v5126, 4
        %v5129 = vrot.slane %v4328, 5
        %v5130 = vsel %vm2186, %v5128, %v5129
        %v5131 = vrot.slane %v4983, 5
        %v5132 = vrot.slane %v5131, 4
        %v5133 = vrot.slane %v4330, 5
        %v5134 = vsel %vm2186, %v5132, %v5133
        %v5135 = vrot.slane %v5133, 4
        %v5136 = vrot.slane %v4331, 5
        %v5137 = vsel %vm2186, %v5135, %v5136
        %v5138 = vrot.slane %v4984, 5
        %v5139 = vrot.slane %v5138, 4
        %v5140 = vrot.slane %v4333, 5
        %v5141 = vsel %vm2186, %v5139, %v5140
        %v5142 = vrot.slane %v5140, 4
        %v5143 = vrot.slane %v4334, 5
        %v5144 = vsel %vm2186, %v5142, %v5143
        %s5145 = scalar_lea.vmem [#allocation8], 512
        %v5146 = vld [vmem:[%s5145] sm:$0xf]
        %v5147 = vld [vmem:[%s5145 + $0x4] sm:$0xf]
        %v5148 = vld [vmem:[%s5145 + $0x8] sm:$0xf]
        %v5149 = vld [vmem:[%s5145 + $0xc] sm:$0xf]
        %v5150 = vld [vmem:[%s5145 + $0x10] sm:$0xf]
        %v5151 = vld [vmem:[%s5145 + $0x14] sm:$0xf]
        %v5152 = vld [vmem:[%s5145 + $0x18] sm:$0xf]
        %v5153 = vld [vmem:[%s5145 + $0x1c] sm:$0xf]
        %v5154 = vld [vmem:[%s5145 + $0x20] sm:$0xf]
        %v5155 = vld [vmem:[%s5145 + $0x24] sm:$0xf]
        %v5156 = vld [vmem:[%s5145 + $0x28] sm:$0xf]
        %v5157 = vld [vmem:[%s5145 + $0x2c] sm:$0xf]
        %v5158 = vld [vmem:[%s5145 + $0x30] sm:$0xf]
        %v5159 = vld [vmem:[%s5145 + $0x34] sm:$0xf]
        %v5160 = vld [vmem:[%s5145 + $0x38] sm:$0xf]
        %v5161 = vld [vmem:[%s5145 + $0x3c] sm:$0xf]
        %v5162 = vunpack.c.l.b16 %v5036
        %v5163 = vunpack.c.l.b16 %v5039
        %v5164 = vunpack.c.l.b16 %v5043
        %v5165 = vunpack.c.l.b16 %v5046
        %v5166 = vunpack.c.l.b16 %v5050
        %v5167 = vunpack.c.l.b16 %v5053
        %v5168 = vunpack.c.l.b16 %v5057
        %v5169 = vunpack.c.l.b16 %v5060
        %v5170 = vunpack.c.l.b16 %v5064
        %v5171 = vunpack.c.l.b16 %v5067
        %v5172 = vunpack.c.l.b16 %v5071
        %v5173 = vunpack.c.l.b16 %v5074
        %v5174 = vunpack.c.l.b16 %v5078
        %v5175 = vunpack.c.l.b16 %v5081
        %v5176 = vunpack.c.l.b16 %v5085
        %v5177 = vunpack.c.l.b16 %v5088
        %v5178 = vunpack.c.l.b16 %v5092
        %v5179 = vunpack.c.l.b16 %v5095
        %v5180 = vunpack.c.l.b16 %v5099
        %v5181 = vunpack.c.l.b16 %v5102
        %v5182 = vunpack.c.l.b16 %v5106
        %v5183 = vunpack.c.l.b16 %v5109
        %v5184 = vunpack.c.l.b16 %v5113
        %v5185 = vunpack.c.l.b16 %v5116
        %v5186 = vunpack.c.l.b16 %v5120
        %v5187 = vunpack.c.l.b16 %v5123
        %v5188 = vunpack.c.l.b16 %v5127
        %v5189 = vunpack.c.l.b16 %v5130
        %v5190 = vunpack.c.l.b16 %v5134
        %v5191 = vunpack.c.l.b16 %v5137
        %v5192 = vunpack.c.l.b16 %v5141
        %v5193 = vunpack.c.l.b16 %v5144
        %v5194 = vpack.c.b16 %v5163, %v5162
        %v5195 = vpack.c.b16 %v5165, %v5164
        %v5196 = vpack.c.b16 %v5167, %v5166
        %v5197 = vpack.c.b16 %v5169, %v5168
        %v5198 = vpack.c.b16 %v5171, %v5170
        %v5199 = vpack.c.b16 %v5173, %v5172
        %v5200 = vpack.c.b16 %v5175, %v5174
        %v5201 = vpack.c.b16 %v5177, %v5176
        %v5202 = vpack.c.b16 %v5179, %v5178
        %v5203 = vpack.c.b16 %v5181, %v5180
        %v5204 = vpack.c.b16 %v5183, %v5182
        %v5205 = vpack.c.b16 %v5185, %v5184
        %v5206 = vpack.c.b16 %v5187, %v5186
        %v5207 = vpack.c.b16 %v5189, %v5188
        %v5208 = vpack.c.b16 %v5191, %v5190
        %v5209 = vpack.c.b16 %v5193, %v5192
        %v5242 = vunpack.c.l.b16 %v5146
        %v5243 = vunpack.c.l.b16 %v5147
        %v5244 = vunpack.c.l.b16 %v5148
        %v5245 = vunpack.c.l.b16 %v5149
        %v5246 = vunpack.c.l.b16 %v5150
        %v5247 = vunpack.c.l.b16 %v5151
        %v5248 = vunpack.c.l.b16 %v5152
        %v5249 = vunpack.c.l.b16 %v5153
        %v5250 = vunpack.c.l.b16 %v5154
        %v5251 = vunpack.c.l.b16 %v5155
        %v5252 = vunpack.c.l.b16 %v5156
        %v5253 = vunpack.c.l.b16 %v5157
        %v5254 = vunpack.c.l.b16 %v5158
        %v5255 = vunpack.c.l.b16 %v5159
        %v5256 = vunpack.c.l.b16 %v5160
        %v5257 = vunpack.c.l.b16 %v5161
        %v5258 = vpack.c.b16 %v5243, %v5242
        %v5259 = vpack.c.b16 %v5245, %v5244
        %v5260 = vpack.c.b16 %v5247, %v5246
        %v5261 = vpack.c.b16 %v5249, %v5248
        %v5262 = vpack.c.b16 %v5251, %v5250
        %v5263 = vpack.c.b16 %v5253, %v5252
        %v5264 = vpack.c.b16 %v5255, %v5254
        %v5265 = vpack.c.b16 %v5257, %v5256
        %5274 = vmatpush.bf16.msra.mxu0 %v5265
        %5275 = vmatpush.bf16.msra.mxu0 %v5264
        %5276 = vmatpush.bf16.msra.mxu0 %v5263
        %5277 = vmatpush.bf16.msra.mxu0 %v5262
        %5278 = vmatpush.bf16.msra.mxu0 %v5261
        %5279 = vmatpush.bf16.msra.mxu0 %v5260
        %5280 = vmatpush.bf16.msra.mxu0 %v5259
        %5281 = vmatpush.bf16.msra.mxu0 %v5258
        %5282 = vmatmul.bf16.gmra.mxu0 %v5194
        %v5283 = vpop.f32.mrf.mxu0
        %v5284 = vadd.f32 0.0, %v5283
        %v5285 = vpop.f32.mrf.mxu0
        %v5286 = vadd.f32 0.0, %v5285
        %5287 = vmatmul.bf16.gmra.mxu0 %v5195
        %v5288 = vpop.f32.mrf.mxu0
        %v5289 = vadd.f32 0.0, %v5288
        %v5290 = vpop.f32.mrf.mxu0
        %v5291 = vadd.f32 0.0, %v5290
        %5292 = vmatmul.bf16.gmra.mxu0 %v5196
        %v5293 = vpop.f32.mrf.mxu0
        %v5294 = vadd.f32 0.0, %v5293
        %v5295 = vpop.f32.mrf.mxu0
        %v5296 = vadd.f32 0.0, %v5295
        %5297 = vmatmul.bf16.gmra.mxu0 %v5197
        %v5298 = vpop.f32.mrf.mxu0
        %v5299 = vadd.f32 0.0, %v5298
        %v5300 = vpop.f32.mrf.mxu0
        %v5301 = vadd.f32 0.0, %v5300
        %5302 = vmatmul.bf16.gmra.mxu0 %v5198
        %v5303 = vpop.f32.mrf.mxu0
        %v5304 = vadd.f32 0.0, %v5303
        %v5305 = vpop.f32.mrf.mxu0
        %v5306 = vadd.f32 0.0, %v5305
        %5307 = vmatmul.bf16.gmra.mxu0 %v5199
        %v5308 = vpop.f32.mrf.mxu0
        %v5309 = vadd.f32 0.0, %v5308
        %v5310 = vpop.f32.mrf.mxu0
        %v5311 = vadd.f32 0.0, %v5310
        %5312 = vmatmul.bf16.gmra.mxu0 %v5200
        %v5313 = vpop.f32.mrf.mxu0
        %v5314 = vadd.f32 0.0, %v5313
        %v5315 = vpop.f32.mrf.mxu0
        %v5316 = vadd.f32 0.0, %v5315
        %5317 = vmatmul.bf16.gmra.mxu0 %v5201
        %v5318 = vpop.f32.mrf.mxu0
        %v5319 = vadd.f32 0.0, %v5318
        %v5320 = vpop.f32.mrf.mxu0
        %v5321 = vadd.f32 0.0, %v5320
        %5322 = vmatmul.bf16.gmra.mxu0 %v5202
        %v5323 = vpop.f32.mrf.mxu0
        %v5324 = vadd.f32 0.0, %v5323
        %v5325 = vpop.f32.mrf.mxu0
        %v5326 = vadd.f32 0.0, %v5325
        %5327 = vmatmul.bf16.gmra.mxu0 %v5203
        %v5328 = vpop.f32.mrf.mxu0
        %v5329 = vadd.f32 0.0, %v5328
        %v5330 = vpop.f32.mrf.mxu0
        %v5331 = vadd.f32 0.0, %v5330
        %5332 = vmatmul.bf16.gmra.mxu0 %v5204
        %v5333 = vpop.f32.mrf.mxu0
        %v5334 = vadd.f32 0.0, %v5333
        %v5335 = vpop.f32.mrf.mxu0
        %v5336 = vadd.f32 0.0, %v5335
        %5337 = vmatmul.bf16.gmra.mxu0 %v5205
        %v5338 = vpop.f32.mrf.mxu0
        %v5339 = vadd.f32 0.0, %v5338
        %v5340 = vpop.f32.mrf.mxu0
        %v5341 = vadd.f32 0.0, %v5340
        %5342 = vmatmul.bf16.gmra.mxu0 %v5206
        %v5343 = vpop.f32.mrf.mxu0
        %v5344 = vadd.f32 0.0, %v5343
        %v5345 = vpop.f32.mrf.mxu0
        %v5346 = vadd.f32 0.0, %v5345
        %5347 = vmatmul.bf16.gmra.mxu0 %v5207
        %v5348 = vpop.f32.mrf.mxu0
        %v5349 = vadd.f32 0.0, %v5348
        %v5350 = vpop.f32.mrf.mxu0
        %v5351 = vadd.f32 0.0, %v5350
        %5352 = vmatmul.bf16.gmra.mxu0 %v5208
        %v5353 = vpop.f32.mrf.mxu0
        %v5354 = vadd.f32 0.0, %v5353
        %v5355 = vpop.f32.mrf.mxu0
        %v5356 = vadd.f32 0.0, %v5355
        %5357 = vmatmul.bf16.gmra.mxu0 %v5209
        %v5358 = vpop.f32.mrf.mxu0
        %v5359 = vadd.f32 0.0, %v5358
        %v5360 = vpop.f32.mrf.mxu0
        %v5361 = vadd.f32 0.0, %v5360
        %5362 = vdwg.mxu0
        %v5363 = vadd.f32 %v4937, %v5284
        %v5364 = vadd.f32 %v4938, %v5286
        %v5365 = vadd.f32 %v4939, %v5289
        %v5366 = vadd.f32 %v4940, %v5291
        %v5367 = vadd.f32 %v4941, %v5294
        %v5368 = vadd.f32 %v4942, %v5296
        %v5369 = vadd.f32 %v4943, %v5299
        %v5370 = vadd.f32 %v4944, %v5301
        %v5371 = vadd.f32 %v4945, %v5304
        %v5372 = vadd.f32 %v4946, %v5306
        %v5373 = vadd.f32 %v4947, %v5309
        %v5374 = vadd.f32 %v4948, %v5311
        %v5375 = vadd.f32 %v4949, %v5314
        %v5376 = vadd.f32 %v4950, %v5316
        %v5377 = vadd.f32 %v4951, %v5319
        %v5378 = vadd.f32 %v4952, %v5321
        %v5379 = vadd.f32 %v4953, %v5324
        %v5380 = vadd.f32 %v4954, %v5326
        %v5381 = vadd.f32 %v4955, %v5329
        %v5382 = vadd.f32 %v4956, %v5331
        %v5383 = vadd.f32 %v4957, %v5334
        %v5384 = vadd.f32 %v4958, %v5336
        %v5385 = vadd.f32 %v4959, %v5339
        %v5386 = vadd.f32 %v4960, %v5341
        %v5387 = vadd.f32 %v4961, %v5344
        %v5388 = vadd.f32 %v4962, %v5346
        %v5389 = vadd.f32 %v4963, %v5349
        %v5390 = vadd.f32 %v4964, %v5351
        %v5391 = vadd.f32 %v4965, %v5354
        %v5392 = vadd.f32 %v4966, %v5356
        %v5393 = vadd.f32 %v4967, %v5359
        %v5394 = vadd.f32 %v4968, %v5361
        %v5395 = vld [vmem:[%s4] sm:$0x1]
        %v5397 = vperm.slane %v5395, 0
        %v5399 = vadd.f32 %v5363, %v5397
        %v5400 = vadd.f32 %v5364, %v5397
        %v5401 = vadd.f32 %v5365, %v5397
        %v5402 = vadd.f32 %v5366, %v5397
        %v5403 = vadd.f32 %v5367, %v5397
        %v5404 = vadd.f32 %v5368, %v5397
        %v5405 = vadd.f32 %v5369, %v5397
        %v5406 = vadd.f32 %v5370, %v5397
        %v5407 = vadd.f32 %v5371, %v5397
        %v5408 = vadd.f32 %v5372, %v5397
        %v5409 = vadd.f32 %v5373, %v5397
        %v5410 = vadd.f32 %v5374, %v5397
        %v5411 = vadd.f32 %v5375, %v5397
        %v5412 = vadd.f32 %v5376, %v5397
        %v5413 = vadd.f32 %v5377, %v5397
        %v5414 = vadd.f32 %v5378, %v5397
        %v5415 = vadd.f32 %v5379, %v5397
        %v5416 = vadd.f32 %v5380, %v5397
        %v5417 = vadd.f32 %v5381, %v5397
        %v5418 = vadd.f32 %v5382, %v5397
        %v5419 = vadd.f32 %v5383, %v5397
        %v5420 = vadd.f32 %v5384, %v5397
        %v5421 = vadd.f32 %v5385, %v5397
        %v5422 = vadd.f32 %v5386, %v5397
        %v5423 = vadd.f32 %v5387, %v5397
        %v5424 = vadd.f32 %v5388, %v5397
        %v5425 = vadd.f32 %v5389, %v5397
        %v5426 = vadd.f32 %v5390, %v5397
        %v5427 = vadd.f32 %v5391, %v5397
        %v5428 = vadd.f32 %v5392, %v5397
        %v5429 = vadd.f32 %v5393, %v5397
        %v5430 = vadd.f32 %v5394, %v5397
        %v5431 = vmax.f32 %v5399, 0.0
        %v5432 = vmax.f32 %v5400, 0.0
        %v5433 = vmax.f32 %v5401, 0.0
        %v5434 = vmax.f32 %v5402, 0.0
        %v5435 = vmax.f32 %v5403, 0.0
        %v5436 = vmax.f32 %v5404, 0.0
        %v5437 = vmax.f32 %v5405, 0.0
        %v5438 = vmax.f32 %v5406, 0.0
        %v5439 = vmax.f32 %v5407, 0.0
        %v5440 = vmax.f32 %v5408, 0.0
        %v5441 = vmax.f32 %v5409, 0.0
        %v5442 = vmax.f32 %v5410, 0.0
        %v5443 = vmax.f32 %v5411, 0.0
        %v5444 = vmax.f32 %v5412, 0.0
        %v5445 = vmax.f32 %v5413, 0.0
        %v5446 = vmax.f32 %v5414, 0.0
        %v5447 = vmax.f32 %v5415, 0.0
        %v5448 = vmax.f32 %v5416, 0.0
        %v5449 = vmax.f32 %v5417, 0.0
        %v5450 = vmax.f32 %v5418, 0.0
        %v5451 = vmax.f32 %v5419, 0.0
        %v5452 = vmax.f32 %v5420, 0.0
        %v5453 = vmax.f32 %v5421, 0.0
        %v5454 = vmax.f32 %v5422, 0.0
        %v5455 = vmax.f32 %v5423, 0.0
        %v5456 = vmax.f32 %v5424, 0.0
        %v5457 = vmax.f32 %v5425, 0.0
        %v5458 = vmax.f32 %v5426, 0.0
        %v5459 = vmax.f32 %v5427, 0.0
        %v5460 = vmax.f32 %v5428, 0.0
        %v5461 = vmax.f32 %v5429, 0.0
        %v5462 = vmax.f32 %v5430, 0.0
        %v5463 = vpack.c.bf16 %v5432, %v5431
        %v5464 = vpack.c.bf16 %v5434, %v5433
        %v5465 = vpack.c.bf16 %v5436, %v5435
        %v5466 = vpack.c.bf16 %v5438, %v5437
        %v5467 = vpack.c.bf16 %v5440, %v5439
        %v5468 = vpack.c.bf16 %v5442, %v5441
        %v5469 = vpack.c.bf16 %v5444, %v5443
        %v5470 = vpack.c.bf16 %v5446, %v5445
        %v5471 = vpack.c.bf16 %v5448, %v5447
        %v5472 = vpack.c.bf16 %v5450, %v5449
        %v5473 = vpack.c.bf16 %v5452, %v5451
        %v5474 = vpack.c.bf16 %v5454, %v5453
        %v5475 = vpack.c.bf16 %v5456, %v5455
        %v5476 = vpack.c.bf16 %v5458, %v5457
        %v5477 = vpack.c.bf16 %v5460, %v5459
        %v5478 = vpack.c.bf16 %v5462, %v5461
        %v5479 = vld [vmem:[#allocation10] sm:$0xf]
        %v5480 = vld [vmem:[#allocation10 + $0x4] sm:$0xf]
        %v5481 = vld [vmem:[#allocation10 + $0x8] sm:$0xf]
        %v5482 = vld [vmem:[#allocation10 + $0xc] sm:$0xf]
        %v5483 = vld [vmem:[#allocation10 + $0x10] sm:$0xf]
        %v5484 = vld [vmem:[#allocation10 + $0x14] sm:$0xf]
        %v5485 = vld [vmem:[#allocation10 + $0x18] sm:$0xf]
        %v5486 = vld [vmem:[#allocation10 + $0x1c] sm:$0xf]
        %v5487 = vld [vmem:[#allocation10 + $0x20] sm:$0xf]
        %v5488 = vld [vmem:[#allocation10 + $0x24] sm:$0xf]
        %v5489 = vld [vmem:[#allocation10 + $0x28] sm:$0xf]
        %v5490 = vld [vmem:[#allocation10 + $0x2c] sm:$0xf]
        %v5491 = vld [vmem:[#allocation10 + $0x30] sm:$0xf]
        %v5492 = vld [vmem:[#allocation10 + $0x34] sm:$0xf]
        %v5493 = vld [vmem:[#allocation10 + $0x38] sm:$0xf]
        %v5494 = vld [vmem:[#allocation10 + $0x3c] sm:$0xf]
        %v5495 = vld [vmem:[%s6] sm:$0x1]
        %v5497 = vperm.slane %v5495, 0
        %v5515 = vunpack.c.l.b16 %v5479
        %v5516 = vunpack.c.l.b16 %v5480
        %v5517 = vunpack.c.l.b16 %v5481
        %v5518 = vunpack.c.l.b16 %v5482
        %v5519 = vunpack.c.l.b16 %v5483
        %v5520 = vunpack.c.l.b16 %v5484
        %v5521 = vunpack.c.l.b16 %v5485
        %v5522 = vunpack.c.l.b16 %v5486
        %v5523 = vunpack.c.l.b16 %v5487
        %v5524 = vunpack.c.l.b16 %v5488
        %v5525 = vunpack.c.l.b16 %v5489
        %v5526 = vunpack.c.l.b16 %v5490
        %v5527 = vunpack.c.l.b16 %v5491
        %v5528 = vunpack.c.l.b16 %v5492
        %v5529 = vunpack.c.l.b16 %v5493
        %v5530 = vunpack.c.l.b16 %v5494
        %v5531 = vpack.c.b16 %v5516, %v5515
        %v5532 = vpack.c.b16 %v5518, %v5517
        %v5533 = vpack.c.b16 %v5520, %v5519
        %v5534 = vpack.c.b16 %v5522, %v5521
        %v5535 = vpack.c.b16 %v5524, %v5523
        %v5536 = vpack.c.b16 %v5526, %v5525
        %v5537 = vpack.c.b16 %v5528, %v5527
        %v5538 = vpack.c.b16 %v5530, %v5529
        %5547 = vmatpush.bf16.msra.mxu0 %v5538
        %5548 = vmatpush.bf16.msra.mxu0 %v5537
        %5549 = vmatpush.bf16.msra.mxu0 %v5536
        %5550 = vmatpush.bf16.msra.mxu0 %v5535
        %5551 = vmatpush.bf16.msra.mxu0 %v5534
        %5552 = vmatpush.bf16.msra.mxu0 %v5533
        %5553 = vmatpush.bf16.msra.mxu0 %v5532
        %5554 = vmatpush.bf16.msra.mxu0 %v5531
        %5555 = vmatmul.bf16.gmra.mxu0 %v5463
        %v5556 = vpop.f32.mrf.mxu0
        %v5557 = vadd.f32 %v5497, %v5556
        %v5558 = vpop.f32.mrf.mxu0
        %v5559 = vadd.f32 %v5497, %v5558
        %5560 = vmatmul.bf16.gmra.mxu0 %v5464
        %v5561 = vpop.f32.mrf.mxu0
        %v5562 = vadd.f32 %v5497, %v5561
        %v5563 = vpop.f32.mrf.mxu0
        %v5564 = vadd.f32 %v5497, %v5563
        %5565 = vmatmul.bf16.gmra.mxu0 %v5465
        %v5566 = vpop.f32.mrf.mxu0
        %v5567 = vadd.f32 %v5497, %v5566
        %v5568 = vpop.f32.mrf.mxu0
        %v5569 = vadd.f32 %v5497, %v5568
        %5570 = vmatmul.bf16.gmra.mxu0 %v5466
        %v5571 = vpop.f32.mrf.mxu0
        %v5572 = vadd.f32 %v5497, %v5571
        %v5573 = vpop.f32.mrf.mxu0
        %v5574 = vadd.f32 %v5497, %v5573
        %5575 = vmatmul.bf16.gmra.mxu0 %v5467
        %v5576 = vpop.f32.mrf.mxu0
        %v5577 = vadd.f32 %v5497, %v5576
        %v5578 = vpop.f32.mrf.mxu0
        %v5579 = vadd.f32 %v5497, %v5578
        %5580 = vmatmul.bf16.gmra.mxu0 %v5468
        %v5581 = vpop.f32.mrf.mxu0
        %v5582 = vadd.f32 %v5497, %v5581
        %v5583 = vpop.f32.mrf.mxu0
        %v5584 = vadd.f32 %v5497, %v5583
        %5585 = vmatmul.bf16.gmra.mxu0 %v5469
        %v5586 = vpop.f32.mrf.mxu0
        %v5587 = vadd.f32 %v5497, %v5586
        %v5588 = vpop.f32.mrf.mxu0
        %v5589 = vadd.f32 %v5497, %v5588
        %5590 = vmatmul.bf16.gmra.mxu0 %v5470
        %v5591 = vpop.f32.mrf.mxu0
        %v5592 = vadd.f32 %v5497, %v5591
        %v5593 = vpop.f32.mrf.mxu0
        %v5594 = vadd.f32 %v5497, %v5593
        %5595 = vmatmul.bf16.gmra.mxu0 %v5471
        %v5596 = vpop.f32.mrf.mxu0
        %v5597 = vadd.f32 %v5497, %v5596
        %v5598 = vpop.f32.mrf.mxu0
        %v5599 = vadd.f32 %v5497, %v5598
        %5600 = vmatmul.bf16.gmra.mxu0 %v5472
        %v5601 = vpop.f32.mrf.mxu0
        %v5602 = vadd.f32 %v5497, %v5601
        %v5603 = vpop.f32.mrf.mxu0
        %v5604 = vadd.f32 %v5497, %v5603
        %5605 = vmatmul.bf16.gmra.mxu0 %v5473
        %v5606 = vpop.f32.mrf.mxu0
        %v5607 = vadd.f32 %v5497, %v5606
        %v5608 = vpop.f32.mrf.mxu0
        %v5609 = vadd.f32 %v5497, %v5608
        %5610 = vmatmul.bf16.gmra.mxu0 %v5474
        %v5611 = vpop.f32.mrf.mxu0
        %v5612 = vadd.f32 %v5497, %v5611
        %v5613 = vpop.f32.mrf.mxu0
        %v5614 = vadd.f32 %v5497, %v5613
        %5615 = vmatmul.bf16.gmra.mxu0 %v5475
        %v5616 = vpop.f32.mrf.mxu0
        %v5617 = vadd.f32 %v5497, %v5616
        %v5618 = vpop.f32.mrf.mxu0
        %v5619 = vadd.f32 %v5497, %v5618
        %5620 = vmatmul.bf16.gmra.mxu0 %v5476
        %v5621 = vpop.f32.mrf.mxu0
        %v5622 = vadd.f32 %v5497, %v5621
        %v5623 = vpop.f32.mrf.mxu0
        %v5624 = vadd.f32 %v5497, %v5623
        %5625 = vmatmul.bf16.gmra.mxu0 %v5477
        %v5626 = vpop.f32.mrf.mxu0
        %v5627 = vadd.f32 %v5497, %v5626
        %v5628 = vpop.f32.mrf.mxu0
        %v5629 = vadd.f32 %v5497, %v5628
        %5630 = vmatmul.bf16.gmra.mxu0 %v5478
        %v5631 = vpop.f32.mrf.mxu0
        %v5632 = vadd.f32 %v5497, %v5631
        %v5633 = vpop.f32.mrf.mxu0
        %v5634 = vadd.f32 %v5497, %v5633
        %5635 = vdwg.mxu0
        %s5636 = scalar_lea.vmem [#allocation2], 16
        %v5637 = vld [vmem:[%s5636] sm:$0xff]
        %v5638 = vld [vmem:[%s5636 + $0x8] sm:$0xff]
        %v5639 = vld [vmem:[%s5636 + $0x10] sm:$0xff]
        %v5640 = vld [vmem:[%s5636 + $0x18] sm:$0xff]
        %v5641 = vld [vmem:[%s5636 + $0x20] sm:$0xff]
        %v5642 = vld [vmem:[%s5636 + $0x28] sm:$0xff]
        %v5643 = vld [vmem:[%s5636 + $0x30] sm:$0xff]
        %v5644 = vld [vmem:[%s5636 + $0x38] sm:$0xff]
        %v5645 = vld [vmem:[%s5636 + $0x40] sm:$0xff]
        %v5646 = vld [vmem:[%s5636 + $0x48] sm:$0xff]
        %v5647 = vld [vmem:[%s5636 + $0x50] sm:$0xff]
        %v5648 = vld [vmem:[%s5636 + $0x58] sm:$0xff]
        %v5649 = vld [vmem:[%s5636 + $0x60] sm:$0xff]
        %v5650 = vld [vmem:[%s5636 + $0x68] sm:$0xff]
        %v5651 = vld [vmem:[%s5636 + $0x70] sm:$0xff]
        %v5652 = vld [vmem:[%s5636 + $0x78] sm:$0xff]
        %v5653 = vld [vmem:[%s5636 + $0x80] sm:$0xff]
        %v5654 = vld [vmem:[%s5636 + $0x88] sm:$0xff]
        %v5655 = vld [vmem:[%s5636 + $0x90] sm:$0xff]
        %v5656 = vld [vmem:[%s5636 + $0x98] sm:$0xff]
        %v5657 = vld [vmem:[%s5636 + $0xa0] sm:$0xff]
        %v5658 = vld [vmem:[%s5636 + $0xa8] sm:$0xff]
        %v5659 = vld [vmem:[%s5636 + $0xb0] sm:$0xff]
        %v5660 = vld [vmem:[%s5636 + $0xb8] sm:$0xff]
        %v5661 = vld [vmem:[%s5636 + $0xc0] sm:$0xff]
        %v5662 = vld [vmem:[%s5636 + $0xc8] sm:$0xff]
        %v5663 = vld [vmem:[%s5636 + $0xd0] sm:$0xff]
        %v5664 = vld [vmem:[%s5636 + $0xd8] sm:$0xff]
        %v5665 = vld [vmem:[%s5636 + $0xe0] sm:$0xff]
        %v5666 = vld [vmem:[%s5636 + $0xe8] sm:$0xff]
        %v5667 = vld [vmem:[%s5636 + $0xf0] sm:$0xff]
        %v5668 = vld [vmem:[%s5636 + $0xf8] sm:$0xff]
        %v5669 = vadd.f32 %v5557, %v5637
        %v5670 = vadd.f32 %v5559, %v5638
        %v5671 = vadd.f32 %v5562, %v5639
        %v5672 = vadd.f32 %v5564, %v5640
        %v5673 = vadd.f32 %v5567, %v5641
        %v5674 = vadd.f32 %v5569, %v5642
        %v5675 = vadd.f32 %v5572, %v5643
        %v5676 = vadd.f32 %v5574, %v5644
        %v5677 = vadd.f32 %v5577, %v5645
        %v5678 = vadd.f32 %v5579, %v5646
        %v5679 = vadd.f32 %v5582, %v5647
        %v5680 = vadd.f32 %v5584, %v5648
        %v5681 = vadd.f32 %v5587, %v5649
        %v5682 = vadd.f32 %v5589, %v5650
        %v5683 = vadd.f32 %v5592, %v5651
        %v5684 = vadd.f32 %v5594, %v5652
        %v5685 = vadd.f32 %v5597, %v5653
        %v5686 = vadd.f32 %v5599, %v5654
        %v5687 = vadd.f32 %v5602, %v5655
        %v5688 = vadd.f32 %v5604, %v5656
        %v5689 = vadd.f32 %v5607, %v5657
        %v5690 = vadd.f32 %v5609, %v5658
        %v5691 = vadd.f32 %v5612, %v5659
        %v5692 = vadd.f32 %v5614, %v5660
        %v5693 = vadd.f32 %v5617, %v5661
        %v5694 = vadd.f32 %v5619, %v5662
        %v5695 = vadd.f32 %v5622, %v5663
        %v5696 = vadd.f32 %v5624, %v5664
        %v5697 = vadd.f32 %v5627, %v5665
        %v5698 = vadd.f32 %v5629, %v5666
        %v5699 = vadd.f32 %v5632, %v5667
        %v5700 = vadd.f32 %v5634, %v5668
        %v5701 = vmax.f32 %v5669, 0.0
        %v5702 = vmax.f32 %v5670, 0.0
        %v5703 = vmax.f32 %v5671, 0.0
        %v5704 = vmax.f32 %v5672, 0.0
        %v5705 = vmax.f32 %v5673, 0.0
        %v5706 = vmax.f32 %v5674, 0.0
        %v5707 = vmax.f32 %v5675, 0.0
        %v5708 = vmax.f32 %v5676, 0.0
        %v5709 = vmax.f32 %v5677, 0.0
        %v5710 = vmax.f32 %v5678, 0.0
        %v5711 = vmax.f32 %v5679, 0.0
        %v5712 = vmax.f32 %v5680, 0.0
        %v5713 = vmax.f32 %v5681, 0.0
        %v5714 = vmax.f32 %v5682, 0.0
        %v5715 = vmax.f32 %v5683, 0.0
        %v5716 = vmax.f32 %v5684, 0.0
        %v5717 = vmax.f32 %v5685, 0.0
        %v5718 = vmax.f32 %v5686, 0.0
        %v5719 = vmax.f32 %v5687, 0.0
        %v5720 = vmax.f32 %v5688, 0.0
        %v5721 = vmax.f32 %v5689, 0.0
        %v5722 = vmax.f32 %v5690, 0.0
        %v5723 = vmax.f32 %v5691, 0.0
        %v5724 = vmax.f32 %v5692, 0.0
        %v5725 = vmax.f32 %v5693, 0.0
        %v5726 = vmax.f32 %v5694, 0.0
        %v5727 = vmax.f32 %v5695, 0.0
        %v5728 = vmax.f32 %v5696, 0.0
        %v5729 = vmax.f32 %v5697, 0.0
        %v5730 = vmax.f32 %v5698, 0.0
        %v5731 = vmax.f32 %v5699, 0.0
        %v5732 = vmax.f32 %v5700, 0.0
        %5733 = vst [vmem:[%s294] sm:$0xff] %v5701
        %5734 = vst [vmem:[%s294 + $0x8] sm:$0xff] %v5702
        %5735 = vst [vmem:[%s294 + $0x10] sm:$0xff] %v5703
        %5736 = vst [vmem:[%s294 + $0x18] sm:$0xff] %v5704
        %5737 = vst [vmem:[%s294 + $0x20] sm:$0xff] %v5705
        %5738 = vst [vmem:[%s294 + $0x28] sm:$0xff] %v5706
        %5739 = vst [vmem:[%s294 + $0x30] sm:$0xff] %v5707
        %5740 = vst [vmem:[%s294 + $0x38] sm:$0xff] %v5708
        %5741 = vst [vmem:[%s294 + $0x40] sm:$0xff] %v5709
        %5742 = vst [vmem:[%s294 + $0x48] sm:$0xff] %v5710
        %5743 = vst [vmem:[%s294 + $0x50] sm:$0xff] %v5711
        %5744 = vst [vmem:[%s294 + $0x58] sm:$0xff] %v5712
        %5745 = vst [vmem:[%s294 + $0x60] sm:$0xff] %v5713
        %5746 = vst [vmem:[%s294 + $0x68] sm:$0xff] %v5714
        %5747 = vst [vmem:[%s294 + $0x70] sm:$0xff] %v5715
        %5748 = vst [vmem:[%s294 + $0x78] sm:$0xff] %v5716
        %5749 = vst [vmem:[%s294 + $0x80] sm:$0xff] %v5717
        %5750 = vst [vmem:[%s294 + $0x88] sm:$0xff] %v5718
        %5751 = vst [vmem:[%s294 + $0x90] sm:$0xff] %v5719
        %5752 = vst [vmem:[%s294 + $0x98] sm:$0xff] %v5720
        %5753 = vst [vmem:[%s294 + $0xa0] sm:$0xff] %v5721
        %5754 = vst [vmem:[%s294 + $0xa8] sm:$0xff] %v5722
        %5755 = vst [vmem:[%s294 + $0xb0] sm:$0xff] %v5723
        %5756 = vst [vmem:[%s294 + $0xb8] sm:$0xff] %v5724
        %5757 = vst [vmem:[%s294 + $0xc0] sm:$0xff] %v5725
        %5758 = vst [vmem:[%s294 + $0xc8] sm:$0xff] %v5726
        %5759 = vst [vmem:[%s294 + $0xd0] sm:$0xff] %v5727
        %5760 = vst [vmem:[%s294 + $0xd8] sm:$0xff] %v5728
        %5761 = vst [vmem:[%s294 + $0xe0] sm:$0xff] %v5729
        %5762 = vst [vmem:[%s294 + $0xe8] sm:$0xff] %v5730
        %5763 = vst [vmem:[%s294 + $0xf0] sm:$0xff] %v5731
        %5764 = vst [vmem:[%s294 + $0xf8] sm:$0xff] %v5732
        %s5765 = sand.u32 %s171, 1
        %s5766 = scalar_lea.sflag [#allocation7], %s5765
        %s5767 = sand.u32 %s171, 1
        %s5768 = smul.addr %s5767, 256
        %s5769 = scalar_lea.vmem [#allocation11], %s5768
        // Predicated region
        $region65: #{tpu_custom_call.1} parent=43 // pred_check
          %p5770 = pneg %p181
        $region66: #{tpu_custom_call.1} parent=43 // pred_check_branch
          %5772 = sbr.rel (%p5770) target = $region68
        $region67: #{tpu_custom_call.1} parent=43 // pred_region
          %s5773 = smul.u32 16, %s28
          %5775 = vsyncadd %s5766, 0
          %s5776 = smul.addr %s5773, 2
          %s5777 = smul.addr %s27, 32
          %s5778 = sadd.s32 %s5776, %s5777
          %s5779 = smul.addr %s5778, 8
          %s5780 = scalar_lea.hbm %s7, %s5779
          %s5781 = sshll.u32 %s5769, 4
          %s5782 = int_to_ptr.vmem [resolvable:$true] %s5781
          %s5783 = sshll.u32 %s5780, 4
          %s5784 = int_to_ptr.hbm [resolvable:$true] %s5783
          %5789 = dma.vmem_to_hbm [thread:$0]  %s5782, 4096, %s5784, %s5766, 128, 128, 8
        $region68: #{tpu_custom_call.1} parent=43 // pred_fallthru
          _
      $region44: #{tpu_custom_call.1} parent=5 // pred_fallthru
        _
      %p5790 = scmp.le.s32.totalorder 2, %s18
      // Predicated region
      $region69: #{tpu_custom_call.1} parent=5 // pred_check
        %p5791 = pneg %p5790
      $region70: #{tpu_custom_call.1} parent=5 // pred_check_branch
        %5793 = sbr.rel (%p5791) target = $region72
      $region71: #{tpu_custom_call.1} parent=5 // pred_region
        %s5794 = ssub.s32 %s18, 2
        // Predicated region
        $region73: #{tpu_custom_call.1} parent=71 // pred_check
          %p5795 = pneg %p187
        $region74: #{tpu_custom_call.1} parent=71 // pred_check_branch
          %5797 = sbr.rel (%p5795) target = $region76
        $region75: #{tpu_custom_call.1} parent=71 // pred_region
          %s5798 = sand.u32 %s172, 1
          %s5799 = scalar_lea.sflag [#allocation7], %s5798
          %s5800 = sand.u32 %s172, 1
          %s5801 = smul.addr %s5800, 256
          %s5802 = scalar_lea.vmem [#allocation11], %s5801
          %5804 = dma.done %s5799, 4096
        $region76: #{tpu_custom_call.1} parent=71 // pred_fallthru
          _
      $region72: #{tpu_custom_call.1} parent=5 // pred_fallthru
        _
    $region6: #{tpu_custom_call.1} parent=1 // loop_footer
      %s22 = sadd.s32 1, %s18
    $region7: #{tpu_custom_call.1} parent=1 // loop_footer_branch
      %17 = sbr.rel target = $region3
    $region8: #{tpu_custom_call.1} parent=1 // loop_exit
      _
    %5805 = vsyncpa [#allocation6], 1
    %s5806 = scalar_lea.sflag [#allocation6], 1
    %5807 = vsyncpa %s5806, 1
    %5808 = vsyncpa [#allocation9], 1
    %5809 = vsyncpa [#allocation7], 1
    %s5810 = scalar_lea.sflag [#allocation7], 1
    %5811 = vsyncpa %s5810, 1
  %5812 = vsyncmov [#allocation4]
  %s5813 = vpop.sfrf %5812
  %p5814 = scmp.eq.s32.totalorder %s5813, 0
  %p5815 = pneg %p5814
  %5817 = shalt.err (%p5815)

</llo_original>
